<compile_context>
chip_gen: v7x
topology: tpu7x:2x2x1
jax: 0.10.0
libtpu: 0.0.40
codegen_flags: <defaults>
</compile_context>

<pallas_src>
import functools
import math

import numpy as np
import jax
import jax.numpy as jnp
from jax.experimental import pallas as pl
from jax.experimental.pallas import tpu as pltpu


# ------------------------------- Pallas kernels ------------------------------ #

def _full_spec(shape):
    # Whole array as a single block (block == full dims satisfies TPU tiling).
    return pl.BlockSpec(shape, lambda i: (0,) * len(shape))


_ARBITRARY_1D = pltpu.CompilerParams(dimension_semantics=("arbitrary",))


def _conv1_pool_kernel(cols_ref, w_ref, b_ref, o_ref, *, m):
    """Fused conv1 + bias + ReLU + 2x2 max-pool.

    cols_ref: (4*m, K) bf16  phase-major im2col rows (K = 5*5*Cin)
    w_ref:    (K, C)   bf16  conv weights, rows ordered (ky, kx, cin)
    b_ref:    (1, C)   f32
    o_ref:    (m, C)   bf16  = maxpool2x2(relu(conv1(x) + b))
    (bias/ReLU commute with the phase max, so max is done on the raw dots.)
    """
    acc = jnp.dot(cols_ref[...], w_ref[...], preferred_element_type=jnp.float32)
    pooled = jnp.maximum(jnp.maximum(acc[0 * m:1 * m], acc[1 * m:2 * m]),
                         jnp.maximum(acc[2 * m:3 * m], acc[3 * m:4 * m]))
    o_ref[...] = jnp.maximum(pooled + b_ref[...], 0.0).astype(o_ref.dtype)


def _conv2_fc_kernel(a_ref, cw2_ref, cb2_ref,
                     w1_ref, b1_ref, w12_ref, b12_ref,
                     w2_ref, b2_ref, w3_ref, b3_ref, o_ref, *, q):
    """Fused conv2(+pool+ReLU, densified) + whole FC head + log_softmax.

    a_ref:   (N, F1)      bf16  conv1-pooled activation, (i, j, c)-flattened
    cw2_ref: (F1, 4*q)    bf16  densified conv2+pool weights, phase-major
                                 column blocks of q = Cout2*hp2*wp2 (torch
                                 NCHW-flatten order inside each block)
    cb2_ref: (1, q)       f32   conv2 bias tiled per (c, i, j)
    w*_ref / b*_ref:      bf16 / f32  fc1, fc12, fc2, fc3 (already (in, out))
    o_ref:   (N, classes) f32   log_softmax output
    All dots are bf16 x bf16 with f32 accumulation; epilogue stays f32.
    """
    bf = jnp.bfloat16
    z = jnp.dot(a_ref[...], cw2_ref[...], preferred_element_type=jnp.float32)
    h = jnp.maximum(jnp.maximum(z[:, 0 * q:1 * q], z[:, 1 * q:2 * q]),
                    jnp.maximum(z[:, 2 * q:3 * q], z[:, 3 * q:4 * q]))
    h = jnp.maximum(h + cb2_ref[...], 0.0)                 # pooled conv2, flat
    h = jnp.dot(h.astype(bf), w1_ref[...],
                preferred_element_type=jnp.float32) + b1_ref[...]      # fc1
    h = jnp.dot(h.astype(bf), w12_ref[...],
                preferred_element_type=jnp.float32) + b12_ref[...]     # fc12
    h = jnp.dot(h.astype(bf), w2_ref[...],
                preferred_element_type=jnp.float32) + b2_ref[...]      # fc2
    logits = jnp.dot(h.astype(bf), w3_ref[...],
                     preferred_element_type=jnp.float32) + b3_ref[...]  # fc3
    mx = jnp.max(logits, axis=-1, keepdims=True)            # log_softmax(dim=1)
    s = logits - mx
    lse = jnp.log(jnp.sum(jnp.exp(s), axis=-1, keepdims=True))
    o_ref[...] = (s - lse).astype(o_ref.dtype)


# --------------------------------- Wrappers ---------------------------------- #

def conv1_stage(x_nhwc, w_mat, b_row):
    """x_nhwc: (N,H,W,Cin) f32; w_mat: (k*k*Cin, C) bf16 rows ordered (ky,kx,cin);
    b_row: (1, C) f32.  Returns conv1-pooled activation flattened per sample in
    (i, j, c) order: (N, hp*wp*C) bf16."""
    n, h, w, cin = x_nhwc.shape
    kkc, cout = w_mat.shape
    k = math.isqrt(kkc // cin)
    assert k * k * cin == kkc
    ho, wo = h - k + 1, w - k + 1
    hp, wp = ho // 2, wo // 2                  # floor, matching torch MaxPool2d
    assert hp >= 1 and wp >= 1
    m = n * hp * wp

    # Pooling-phase im2col built in the jitted wrapper (fused XLA gather):
    #   cols[d*m + (n,i,j), (ky,kx,c)] = x[n, 2i+dy+ky, 2j+dx+kx, c]
    def phase_cols(dy, dx):
        taps = []
        for ky in range(k):
            for kx in range(k):
                r0, c0 = dy + ky, dx + kx
                taps.append(x_nhwc[:, r0:r0 + 2 * hp - 1:2,
                                   c0:c0 + 2 * wp - 1:2, :])
        p = jnp.stack(taps, axis=3)                      # (N, hp, wp, k*k, Cin)
        return p.reshape(m, kkc)

    cols = jnp.concatenate([phase_cols(dy, dx) for dy in (0, 1) for dx in (0, 1)],
                           axis=0).astype(jnp.bfloat16)  # (4*m, k*k*Cin)

    out = pl.pallas_call(
        functools.partial(_conv1_pool_kernel, m=m),
        grid=(1,),
        in_specs=[_full_spec(cols.shape), _full_spec(w_mat.shape),
                  _full_spec(b_row.shape)],
        out_specs=_full_spec((m, cout)),
        out_shape=jax.ShapeDtypeStruct((m, cout), jnp.bfloat16),
        compiler_params=_ARBITRARY_1D,
    )(cols, w_mat, b_row)
    # row-major (n,i,j) x (c)  ->  per-sample flat index (i*wp + j)*C + c
    return out.reshape(n, hp * wp * cout)


def conv2_fc_stage(a1, p):
    """Fused conv2+pool+ReLU (densified) + fc1 -> fc12 -> fc2 -> fc3 + log_softmax."""
    n = a1.shape[0]
    num_classes = p["fc3_w"].shape[1]
    q = p["conv2_b"].shape[1]
    args = (a1, p["conv2_w"], p["conv2_b"], p["fc1_w"], p["fc1_b"],
            p["fc12_w"], p["fc12_b"], p["fc2_w"], p["fc2_b"],
            p["fc3_w"], p["fc3_b"])
    return pl.pallas_call(
        functools.partial(_conv2_fc_kernel, q=q),
        grid=(1,),
        in_specs=[_full_spec(a.shape) for a in args],
        out_specs=_full_spec((n, num_classes)),
        out_shape=jax.ShapeDtypeStruct((n, num_classes), jnp.float32),
        compiler_params=_ARBITRARY_1D,
    )(*args)


def net1_forward(params, x_nchw):
    x = jnp.transpose(x_nchw, (0, 2, 3, 1))               # NCHW -> NHWC
    a1 = conv1_stage(x, params["conv1_w"], params["conv1_b"])
    # TODO(synk): reference forward() calls undefined `self.conv12` and feeds
    # fc1(2000) into fc2(120); only the __init__-consistent two-conv path is
    # runnable, so that is what is implemented here.
    return conv2_fc_stage(a1, params)


# --------------------------- Parameters (torch layout) ------------------------ #

def init_params_torch(key, img_size, num_classes):
    """Random params in PyTorch layouts (Conv2d: (Cout,Cin,KH,KW); Linear: (out,in))."""
    if img_size <= 16:
        raise NotImplementedError
    _f = int(img_size / 4) - 3
    nflat = 16 * _f * _f

    def uniform(k, shape, fan_in):
        bound = 1.0 / math.sqrt(fan_in)
        return jax.random.uniform(k, shape, jnp.float32, -bound, bound)

    ks = jax.random.split(key, 12)
    params = {
        "conv1_w": uniform(ks[0], (6, 3, 5, 5), 3 * 25),
        "conv1_b": uniform(ks[1], (6,), 3 * 25),
        "conv2_w": uniform(ks[2], (16, 6, 5, 5), 6 * 25),
        "conv2_b": uniform(ks[3], (16,), 6 * 25),
        "fc1_w": uniform(ks[4], (2000, nflat), nflat),
        "fc1_b": uniform(ks[5], (2000,), nflat),
        "fc12_w": uniform(ks[6], (120, 2000), 2000),
        "fc12_b": uniform(ks[7], (120,), 2000),
        "fc2_w": uniform(ks[8], (84, 120), 120),
        "fc2_b": uniform(ks[9], (84,), 120),
        "fc3_w": uniform(ks[10], (num_classes, 84), 84),
        "fc3_b": uniform(ks[11], (num_classes,), 84),
    }
    return params, nflat


def _conv_pool_dense_matrix(w_torch, hp_in, wp_in, hp_out, wp_out):
    """Densified weight for conv(k,VALID,stride 1) + 2x2 floor max-pool phases,
    acting on an input map flattened per sample in (i, j, cin) order.
    Returns (hp_in*wp_in*Cin, 4*Cout*hp_out*wp_out) with phase-major column
    blocks; inside each block columns follow torch NCHW flatten order (c,h,w)."""
    w = np.asarray(w_torch, dtype=np.float32)              # (Cout, Cin, K, K)
    cout, cin, kk, _ = w.shape
    nin = hp_in * wp_in * cin
    nout = cout * hp_out * wp_out
    mat = np.zeros((nin, 4, nout), np.float32)
    for d, (dy, dx) in enumerate(((0, 0), (0, 1), (1, 0), (1, 1))):
        for i2 in range(hp_out):
            for j2 in range(wp_out):
                for ky in range(kk):
                    for kx in range(kk):
                        i = 2 * i2 + dy + ky
                        j = 2 * j2 + dx + kx
                        rows = (i * wp_in + j) * cin + np.arange(cin)
                        cols = np.arange(cout) * (hp_out * wp_out) + i2 * wp_out + j2
                        mat[rows[:, None], d, cols[None, :]] = w[:, :, ky, kx].T
    return mat.reshape(nin, 4 * nout)


def prepare_params(tp, img_size):
    """One-time conversion of torch-layout weights into kernel layouts (bf16 for
    all dot operands, f32 biases):
      conv1 -> (ky,kx,cin)-major (K, 6) matrix;
      conv2 -> densified conv+pool matrix (see _conv_pool_dense_matrix);
      Linear -> (in, out).  Flatten order already matches torch NCHW view()."""
    hp1 = (img_size - 4) // 2
    hp2 = (hp1 - 4) // 2
    bf = jnp.bfloat16

    def conv_mat(w):
        cout, cin, kh, kw = w.shape
        return jnp.transpose(w, (2, 3, 1, 0)).reshape(kh * kw * cin, cout)

    w2big = _conv_pool_dense_matrix(tp["conv2_w"], hp1, hp1, hp2, hp2)
    b2row = np.repeat(np.asarray(tp["conv2_b"], np.float32), hp2 * hp2)[None, :]

    return {
        "conv1_w": conv_mat(tp["conv1_w"]).astype(bf),
        "conv1_b": tp["conv1_b"].reshape(1, -1),
        "conv2_w": jnp.asarray(w2big, bf),
        "conv2_b": jnp.asarray(b2row, jnp.float32),
        "fc1_w": tp["fc1_w"].T.astype(bf),   "fc1_b": tp["fc1_b"].reshape(1, -1),
        "fc12_w": tp["fc12_w"].T.astype(bf), "fc12_b": tp["fc12_b"].reshape(1, -1),
        "fc2_w": tp["fc2_w"].T.astype(bf),   "fc2_b": tp["fc2_b"].reshape(1, -1),
        "fc3_w": tp["fc3_w"].T.astype(bf),   "fc3_b": tp["fc3_b"].reshape(1, -1),
    }


# -------------------------------- XLA reference ------------------------------- #

def reference_forward(tp, x_nchw):
    """Pure-XLA f32 reference of the same __init__-consistent path (validation)."""
    prec = jax.lax.Precision.HIGHEST

    def conv(x, w, b):
        y = jax.lax.conv_general_dilated(
            x, w, window_strides=(1, 1), padding="VALID",
            dimension_numbers=("NCHW", "OIHW", "NCHW"), precision=prec)
        return y + b[None, :, None, None]

    def pool(x):
        return jax.lax.reduce_window(x, -jnp.inf, jax.lax.max,
                                     (1, 1, 2, 2), (1, 1, 2, 2), "VALID")

    x = pool(jax.nn.relu(conv(x_nchw, tp["conv1_w"], tp["conv1_b"])))
    x = pool(jax.nn.relu(conv(x, tp["conv2_w"], tp["conv2_b"])))
    x = x.reshape(x.shape[0], -1)                  # torch NCHW flatten order
    x = jnp.dot(x, tp["fc1_w"].T, precision=prec) + tp["fc1_b"]
    x = jnp.dot(x, tp["fc12_w"].T, precision=prec) + tp["fc12_b"]
    x = jnp.dot(x, tp["fc2_w"].T, precision=prec) + tp["fc2_b"]
    x = jnp.dot(x, tp["fc3_w"].T, precision=prec) + tp["fc3_b"]
    return jax.nn.log_softmax(x, axis=1)


# ------------------------------------ Main ------------------------------------ #

if __name__ == "__main__":
    img_size = 20            # module requires img_size > 16
    num_classes = 10
    batch = 2

    key = jax.random.PRNGKey(0)
    pkey, xkey = jax.random.split(key)
    torch_params, nflat = init_params_torch(pkey, img_size, num_classes)

    f1 = (img_size - 4) // 2             # spatial after conv1 + pool
    f2 = (f1 - 4) // 2                   # spatial after conv2 + pool
    assert 16 * f2 * f2 == nflat, "img_size incompatible with fc1 sizing"
    params = prepare_params(torch_params, img_size)

    x = jax.random.normal(xkey, (batch, 3, img_size, img_size), jnp.float32)

    fwd = jax.jit(net1_forward)
    out = jax.block_until_ready(fwd(params, x))

    assert out.shape == (batch, num_classes), out.shape
    # log_softmax rows should sum (in prob space) to ~1
    assert jnp.allclose(jnp.sum(jnp.exp(out), axis=1), 1.0, atol=1e-4)
    # cross-check against the pure-XLA f32 reference of the same path
    # (kernel dots use bf16 operands with f32 accumulation -> slightly looser tol)
    ref = reference_forward(torch_params, x)
    assert jnp.allclose(out, ref, atol=2e-2, rtol=2e-2), \
        float(jnp.max(jnp.abs(out - ref)))
    print("KERNEL_OK")
</pallas_src>

<mosaic_0001>
module attributes {stable_mosaic.version = 11 : i64} {
  func.func @_conv1_pool_kernel(%arg0: i32, %arg1: memref<512x75xbf16, #tpu.memory_space<vmem>>, %arg2: memref<75x6xbf16, #tpu.memory_space<vmem>>, %arg3: memref<1x6xf32, #tpu.memory_space<vmem>>, %arg4: memref<128x6xbf16, #tpu.memory_space<vmem>>) attributes {dimension_semantics = [#tpu.dimension_semantics<arbitrary>], iteration_bounds = array<i64: 1>, scalar_prefetch = 0 : i64, scratch_operands = 0 : i64, tpu.core_type = #tpu.core_type<tc>, window_params = [{pipeline_mode = #tpu.pipeline_mode<synchronous>, transform_indices = @transform_0, window_bounds = array<i64: 512, 75>}, {pipeline_mode = #tpu.pipeline_mode<synchronous>, transform_indices = @transform_1, window_bounds = array<i64: 75, 6>}, {pipeline_mode = #tpu.pipeline_mode<synchronous>, transform_indices = @transform_2, window_bounds = array<i64: 1, 6>}, {pipeline_mode = #tpu.pipeline_mode<synchronous>, transform_indices = @transform_3, window_bounds = array<i64: 128, 6>}]} {
    %c0 = arith.constant 0 : index
    %c0_0 = arith.constant 0 : index
    %0 = vector.load %arg1[%c0, %c0_0] : memref<512x75xbf16, #tpu.memory_space<vmem>>, vector<512x75xbf16>
    %c0_1 = arith.constant 0 : index
    %c0_2 = arith.constant 0 : index
    %1 = vector.load %arg2[%c0_1, %c0_2] : memref<75x6xbf16, #tpu.memory_space<vmem>>, vector<75x6xbf16>
    %cst = arith.constant dense<0.000000e+00> : vector<512x6xf32>
    %2 = tpu.matmul %0, %1, %cst {dimension_numbers = #tpu.dot_dimension_numbers<[1], [0], [0], [1], [0, 0, 1, 1], [], []>} : vector<512x75xbf16>, vector<75x6xbf16>, vector<512x6xf32> -> vector<512x6xf32>
    %3 = vector.extract_strided_slice %2 {offsets = [0, 0], sizes = [128, 6], strides = [1, 1]} : vector<512x6xf32> to vector<128x6xf32>
    %4 = vector.extract_strided_slice %2 {offsets = [128, 0], sizes = [128, 6], strides = [1, 1]} : vector<512x6xf32> to vector<128x6xf32>
    %5 = arith.maximumf %3, %4 : vector<128x6xf32>
    %6 = vector.extract_strided_slice %2 {offsets = [256, 0], sizes = [128, 6], strides = [1, 1]} : vector<512x6xf32> to vector<128x6xf32>
    %7 = vector.extract_strided_slice %2 {offsets = [384, 0], sizes = [128, 6], strides = [1, 1]} : vector<512x6xf32> to vector<128x6xf32>
    %8 = arith.maximumf %6, %7 : vector<128x6xf32>
    %9 = arith.maximumf %5, %8 : vector<128x6xf32>
    %c0_3 = arith.constant 0 : index
    %c0_4 = arith.constant 0 : index
    %10 = vector.load %arg3[%c0_3, %c0_4] : memref<1x6xf32, #tpu.memory_space<vmem>>, vector<1x6xf32>
    %11 = vector.broadcast %10 : vector<1x6xf32> to vector<128x6xf32>
    %12 = arith.addf %9, %11 : vector<128x6xf32>
    %cst_5 = arith.constant 0.000000e+00 : f32
    %13 = vector.broadcast %cst_5 : f32 to vector<128x6xf32>
    %14 = arith.maximumf %12, %13 : vector<128x6xf32>
    %15 = arith.truncf %14 : vector<128x6xf32> to vector<128x6xbf16>
    %c0_6 = arith.constant 0 : index
    %c0_7 = arith.constant 0 : index
    %16 = vector.load %arg4[%c0_6, %c0_7] : memref<128x6xbf16, #tpu.memory_space<vmem>>, vector<128x6xbf16>
    tpu.vector_store %arg4[%c0_6, %c0_7], %15 {strides = array<i32>} : memref<128x6xbf16, #tpu.memory_space<vmem>>, vector<128x6xbf16>,
    return
  }
  func.func @transform_0(%arg0: i32) -> (i32, i32) {
    %c0_i32 = arith.constant 0 : i32
    %c0_i32_0 = arith.constant 0 : i32
    %c0_i32_1 = arith.constant 0 : i32
    return %c0_i32, %c0_i32_0 : i32, i32
  }
  func.func @transform_1(%arg0: i32) -> (i32, i32) {
    %c0_i32 = arith.constant 0 : i32
    %c0_i32_0 = arith.constant 0 : i32
    %c0_i32_1 = arith.constant 0 : i32
    return %c0_i32, %c0_i32_0 : i32, i32
  }
  func.func @transform_2(%arg0: i32) -> (i32, i32) {
    %c0_i32 = arith.constant 0 : i32
    %c0_i32_0 = arith.constant 0 : i32
    %c0_i32_1 = arith.constant 0 : i32
    return %c0_i32, %c0_i32_0 : i32, i32
  }
  func.func @transform_3(%arg0: i32) -> (i32, i32) {
    %c0_i32 = arith.constant 0 : i32
    %c0_i32_0 = arith.constant 0 : i32
    %c0_i32_1 = arith.constant 0 : i32
    return %c0_i32, %c0_i32_0 : i32, i32
  }
}

module attributes {stable_mosaic.version = 11 : i64} {
  func.func @_conv2_fc_kernel(%arg0: i32, %arg1: memref<2x384xbf16, #tpu.memory_space<vmem>>, %arg2: memref<384x256xbf16, #tpu.memory_space<vmem>>, %arg3: memref<1x64xf32, #tpu.memory_space<vmem>>, %arg4: memref<64x2000xbf16, #tpu.memory_space<vmem>>, %arg5: memref<1x2000xf32, #tpu.memory_space<vmem>>, %arg6: memref<2000x120xbf16, #tpu.memory_space<vmem>>, %arg7: memref<1x120xf32, #tpu.memory_space<vmem>>, %arg8: memref<120x84xbf16, #tpu.memory_space<vmem>>, %arg9: memref<1x84xf32, #tpu.memory_space<vmem>>, %arg10: memref<84x10xbf16, #tpu.memory_space<vmem>>, %arg11: memref<1x10xf32, #tpu.memory_space<vmem>>, %arg12: memref<2x10xf32, #tpu.memory_space<vmem>>) attributes {dimension_semantics = [#tpu.dimension_semantics<arbitrary>], iteration_bounds = array<i64: 1>, scalar_prefetch = 0 : i64, scratch_operands = 0 : i64, tpu.core_type = #tpu.core_type<tc>, window_params = [{pipeline_mode = #tpu.pipeline_mode<synchronous>, transform_indices = @transform_0, window_bounds = array<i64: 2, 384>}, {pipeline_mode = #tpu.pipeline_mode<synchronous>, transform_indices = @transform_1, window_bounds = array<i64: 384, 256>}, {pipeline_mode = #tpu.pipeline_mode<synchronous>, transform_indices = @transform_2, window_bounds = array<i64: 1, 64>}, {pipeline_mode = #tpu.pipeline_mode<synchronous>, transform_indices = @transform_3, window_bounds = array<i64: 64, 2000>}, {pipeline_mode = #tpu.pipeline_mode<synchronous>, transform_indices = @transform_4, window_bounds = array<i64: 1, 2000>}, {pipeline_mode = #tpu.pipeline_mode<synchronous>, transform_indices = @transform_5, window_bounds = array<i64: 2000, 120>}, {pipeline_mode = #tpu.pipeline_mode<synchronous>, transform_indices = @transform_6, window_bounds = array<i64: 1, 120>}, {pipeline_mode = #tpu.pipeline_mode<synchronous>, transform_indices = @transform_7, window_bounds = array<i64: 120, 84>}, {pipeline_mode = #tpu.pipeline_mode<synchronous>, transform_indices = @transform_8, window_bounds = array<i64: 1, 84>}, {pipeline_mode = #tpu.pipeline_mode<synchronous>, transform_indices = @transform_9, window_bounds = array<i64: 84, 10>}, {pipeline_mode = #tpu.pipeline_mode<synchronous>, transform_indices = @transform_10, window_bounds = array<i64: 1, 10>}, {pipeline_mode = #tpu.pipeline_mode<synchronous>, transform_indices = @transform_11, window_bounds = array<i64: 2, 10>}]} {
    %c0 = arith.constant 0 : index
    %c0_0 = arith.constant 0 : index
    %0 = vector.load %arg1[%c0, %c0_0] : memref<2x384xbf16, #tpu.memory_space<vmem>>, vector<2x384xbf16>
    %c0_1 = arith.constant 0 : index
    %c0_2 = arith.constant 0 : index
    %1 = vector.load %arg2[%c0_1, %c0_2] : memref<384x256xbf16, #tpu.memory_space<vmem>>, vector<384x256xbf16>
    %cst = arith.constant dense<0.000000e+00> : vector<2x256xf32>
    %2 = tpu.matmul %0, %1, %cst {dimension_numbers = #tpu.dot_dimension_numbers<[1], [0], [0], [1], [0, 0, 1, 1], [], []>} : vector<2x384xbf16>, vector<384x256xbf16>, vector<2x256xf32> -> vector<2x256xf32>
    %3 = vector.extract_strided_slice %2 {offsets = [0, 0], sizes = [2, 64], strides = [1, 1]} : vector<2x256xf32> to vector<2x64xf32>
    %4 = vector.extract_strided_slice %2 {offsets = [0, 64], sizes = [2, 64], strides = [1, 1]} : vector<2x256xf32> to vector<2x64xf32>
    %5 = arith.maximumf %3, %4 : vector<2x64xf32>
    %6 = vector.extract_strided_slice %2 {offsets = [0, 128], sizes = [2, 64], strides = [1, 1]} : vector<2x256xf32> to vector<2x64xf32>
    %7 = vector.extract_strided_slice %2 {offsets = [0, 192], sizes = [2, 64], strides = [1, 1]} : vector<2x256xf32> to vector<2x64xf32>
    %8 = arith.maximumf %6, %7 : vector<2x64xf32>
    %9 = arith.maximumf %5, %8 : vector<2x64xf32>
    %c0_3 = arith.constant 0 : index
    %c0_4 = arith.constant 0 : index
    %10 = vector.load %arg3[%c0_3, %c0_4] : memref<1x64xf32, #tpu.memory_space<vmem>>, vector<1x64xf32>
    %11 = vector.broadcast %10 : vector<1x64xf32> to vector<2x64xf32>
    %12 = arith.addf %9, %11 : vector<2x64xf32>
    %cst_5 = arith.constant 0.000000e+00 : f32
    %13 = vector.broadcast %cst_5 : f32 to vector<2x64xf32>
    %14 = arith.maximumf %12, %13 : vector<2x64xf32>
    %15 = arith.truncf %14 : vector<2x64xf32> to vector<2x64xbf16>
    %c0_6 = arith.constant 0 : index
    %c0_7 = arith.constant 0 : index
    %16 = vector.load %arg4[%c0_6, %c0_7] : memref<64x2000xbf16, #tpu.memory_space<vmem>>, vector<64x2000xbf16>
    %cst_8 = arith.constant dense<0.000000e+00> : vector<2x2000xf32>
    %17 = tpu.matmul %15, %16, %cst_8 {dimension_numbers = #tpu.dot_dimension_numbers<[1], [0], [0], [1], [0, 0, 1, 1], [], []>} : vector<2x64xbf16>, vector<64x2000xbf16>, vector<2x2000xf32> -> vector<2x2000xf32>
    %c0_9 = arith.constant 0 : index
    %c0_10 = arith.constant 0 : index
    %18 = vector.load %arg5[%c0_9, %c0_10] : memref<1x2000xf32, #tpu.memory_space<vmem>>, vector<1x2000xf32>
    %19 = vector.broadcast %18 : vector<1x2000xf32> to vector<2x2000xf32>
    %20 = arith.addf %17, %19 : vector<2x2000xf32>
    %21 = arith.truncf %20 : vector<2x2000xf32> to vector<2x2000xbf16>
    %c0_11 = arith.constant 0 : index
    %c0_12 = arith.constant 0 : index
    %22 = vector.load %arg6[%c0_11, %c0_12] : memref<2000x120xbf16, #tpu.memory_space<vmem>>, vector<2000x120xbf16>
    %cst_13 = arith.constant dense<0.000000e+00> : vector<2x120xf32>
    %23 = tpu.matmul %21, %22, %cst_13 {dimension_numbers = #tpu.dot_dimension_numbers<[1], [0], [0], [1], [0, 0, 1, 1], [], []>} : vector<2x2000xbf16>, vector<2000x120xbf16>, vector<2x120xf32> -> vector<2x120xf32>
    %c0_14 = arith.constant 0 : index
    %c0_15 = arith.constant 0 : index
    %24 = vector.load %arg7[%c0_14, %c0_15] : memref<1x120xf32, #tpu.memory_space<vmem>>, vector<1x120xf32>
    %25 = vector.broadcast %24 : vector<1x120xf32> to vector<2x120xf32>
    %26 = arith.addf %23, %25 : vector<2x120xf32>
    %27 = arith.truncf %26 : vector<2x120xf32> to vector<2x120xbf16>
    %c0_16 = arith.constant 0 : index
    %c0_17 = arith.constant 0 : index
    %28 = vector.load %arg8[%c0_16, %c0_17] : memref<120x84xbf16, #tpu.memory_space<vmem>>, vector<120x84xbf16>
    %cst_18 = arith.constant dense<0.000000e+00> : vector<2x84xf32>
    %29 = tpu.matmul %27, %28, %cst_18 {dimension_numbers = #tpu.dot_dimension_numbers<[1], [0], [0], [1], [0, 0, 1, 1], [], []>} : vector<2x120xbf16>, vector<120x84xbf16>, vector<2x84xf32> -> vector<2x84xf32>
    %c0_19 = arith.constant 0 : index
    %c0_20 = arith.constant 0 : index
    %30 = vector.load %arg9[%c0_19, %c0_20] : memref<1x84xf32, #tpu.memory_space<vmem>>, vector<1x84xf32>
    %31 = vector.broadcast %30 : vector<1x84xf32> to vector<2x84xf32>
    %32 = arith.addf %29, %31 : vector<2x84xf32>
    %33 = arith.truncf %32 : vector<2x84xf32> to vector<2x84xbf16>
    %c0_21 = arith.constant 0 : index
    %c0_22 = arith.constant 0 : index
    %34 = vector.load %arg10[%c0_21, %c0_22] : memref<84x10xbf16, #tpu.memory_space<vmem>>, vector<84x10xbf16>
    %cst_23 = arith.constant dense<0.000000e+00> : vector<2x10xf32>
    %35 = tpu.matmul %33, %34, %cst_23 {dimension_numbers = #tpu.dot_dimension_numbers<[1], [0], [0], [1], [0, 0, 1, 1], [], []>} : vector<2x84xbf16>, vector<84x10xbf16>, vector<2x10xf32> -> vector<2x10xf32>
    %c0_24 = arith.constant 0 : index
    %c0_25 = arith.constant 0 : index
    %36 = vector.load %arg11[%c0_24, %c0_25] : memref<1x10xf32, #tpu.memory_space<vmem>>, vector<1x10xf32>
    %37 = vector.broadcast %36 : vector<1x10xf32> to vector<2x10xf32>
    %38 = arith.addf %35, %37 : vector<2x10xf32>
    %cst_26 = arith.constant dense<0xFF800000> : vector<2xf32>
    %39 = vector.multi_reduction <maximumf>, %38, %cst_26 [1] : vector<2x10xf32> to vector<2xf32>
    %40 = vector.shape_cast %39 : vector<2xf32> to vector<2x1xf32>
    %41 = vector.broadcast %40 : vector<2x1xf32> to vector<2x10xf32>
    %42 = arith.subf %38, %41 : vector<2x10xf32>
    %43 = math.exp %42 : vector<2x10xf32>
    %cst_27 = arith.constant dense<0.000000e+00> : vector<2xf32>
    %44 = vector.multi_reduction <add>, %43, %cst_27 [1] : vector<2x10xf32> to vector<2xf32>
    %45 = vector.shape_cast %44 : vector<2xf32> to vector<2x1xf32>
    %46 = math.log %45 : vector<2x1xf32>
    %47 = vector.broadcast %46 : vector<2x1xf32> to vector<2x10xf32>
    %48 = arith.subf %42, %47 : vector<2x10xf32>
    %c0_28 = arith.constant 0 : index
    %c0_29 = arith.constant 0 : index
    %49 = vector.load %arg12[%c0_28, %c0_29] : memref<2x10xf32, #tpu.memory_space<vmem>>, vector<2x10xf32>
    tpu.vector_store %arg12[%c0_28, %c0_29], %48 {strides = array<i32>} : memref<2x10xf32, #tpu.memory_space<vmem>>, vector<2x10xf32>,
    return
  }
  func.func @transform_0(%arg0: i32) -> (i32, i32) {
    %c0_i32 = arith.constant 0 : i32
    %c0_i32_0 = arith.constant 0 : i32
    %c0_i32_1 = arith.constant 0 : i32
    return %c0_i32, %c0_i32_0 : i32, i32
  }
  func.func @transform_1(%arg0: i32) -> (i32, i32) {
    %c0_i32 = arith.constant 0 : i32
    %c0_i32_0 = arith.constant 0 : i32
    %c0_i32_1 = arith.constant 0 : i32
    return %c0_i32, %c0_i32_0 : i32, i32
  }
  func.func @transform_2(%arg0: i32) -> (i32, i32) {
    %c0_i32 = arith.constant 0 : i32
    %c0_i32_0 = arith.constant 0 : i32
    %c0_i32_1 = arith.constant 0 : i32
    return %c0_i32, %c0_i32_0 : i32, i32
  }
  func.func @transform_3(%arg0: i32) -> (i32, i32) {
    %c0_i32 = arith.constant 0 : i32
    %c0_i32_0 = arith.constant 0 : i32
    %c0_i32_1 = arith.constant 0 : i32
    return %c0_i32, %c0_i32_0 : i32, i32
  }
  func.func @transform_4(%arg0: i32) -> (i32, i32) {
    %c0_i32 = arith.constant 0 : i32
    %c0_i32_0 = arith.constant 0 : i32
    %c0_i32_1 = arith.constant 0 : i32
    return %c0_i32, %c0_i32_0 : i32, i32
  }
  func.func @transform_5(%arg0: i32) -> (i32, i32) {
    %c0_i32 = arith.constant 0 : i32
    %c0_i32_0 = arith.constant 0 : i32
    %c0_i32_1 = arith.constant 0 : i32
    return %c0_i32, %c0_i32_0 : i32, i32
  }
  func.func @transform_6(%arg0: i32) -> (i32, i32) {
    %c0_i32 = arith.constant 0 : i32
    %c0_i32_0 = arith.constant 0 : i32
    %c0_i32_1 = arith.constant 0 : i32
    return %c0_i32, %c0_i32_0 : i32, i32
  }
  func.func @transform_7(%arg0: i32) -> (i32, i32) {
    %c0_i32 = arith.constant 0 : i32
    %c0_i32_0 = arith.constant 0 : i32
    %c0_i32_1 = arith.constant 0 : i32
    return %c0_i32, %c0_i32_0 : i32, i32
  }
  func.func @transform_8(%arg0: i32) -> (i32, i32) {
    %c0_i32 = arith.constant 0 : i32
    %c0_i32_0 = arith.constant 0 : i32
    %c0_i32_1 = arith.constant 0 : i32
    return %c0_i32, %c0_i32_0 : i32, i32
  }
  func.func @transform_9(%arg0: i32) -> (i32, i32) {
    %c0_i32 = arith.constant 0 : i32
    %c0_i32_0 = arith.constant 0 : i32
    %c0_i32_1 = arith.constant 0 : i32
    return %c0_i32, %c0_i32_0 : i32, i32
  }
  func.func @transform_10(%arg0: i32) -> (i32, i32) {
    %c0_i32 = arith.constant 0 : i32
    %c0_i32_0 = arith.constant 0 : i32
    %c0_i32_1 = arith.constant 0 : i32
    return %c0_i32, %c0_i32_0 : i32, i32
  }
  func.func @transform_11(%arg0: i32) -> (i32, i32) {
    %c0_i32 = arith.constant 0 : i32
    %c0_i32_0 = arith.constant 0 : i32
    %c0_i32_1 = arith.constant 0 : i32
    return %c0_i32, %c0_i32_0 : i32, i32
  }
}

</mosaic_0001>

<llo_original>
// kernel: net1_forward.2
$region0: #{net1_forward.2}
  #allocation0 [shape = 'u32[]', space=smem, size = 0x4, offset = 0x4, fixed_abs, tag = 'smem constant byte address 0x4 - core index']
  #allocation1 [shape = 'u32[144,128]{1,0:T(1,128)}', space=vmem, size = 0x12000, scoped, tag = 'internal scratch']
  %s0 = inlined_call_operand.vmem [shape: bf16[512,75], index: 0, kind: input, shape index: {}]
  %s1 = inlined_call_operand.vmem [shape: bf16[75,6], index: 1, kind: input, shape index: {}]
  %s2 = inlined_call_operand.vmem [shape: f32[1,6], index: 2, kind: input, shape index: {}]
  %s3 = inlined_call_operand.vmem [shape: bf16[128,6], index: 3, kind: output, shape index: {}]
  %s4 = sld [smem:[#allocation0]]
  $region22: #{net1_forward.2} parent=0
    _
  %s6 = ssub.s32 1, %s4
  %s7 = scalar_select 0, %s6, %s4
  // Predicated region
  $region2: #{net1_forward.2} parent=0 // pred_check
    _
  $region3: #{net1_forward.2} parent=0 // pred_check_branch
    %9 = sbr.rel (0) target = $region5
  $region4: #{net1_forward.2} parent=0 // pred_region
    _
  $region5: #{net1_forward.2} parent=0 // pred_fallthru
    _
  // Predicated region
  $region6: #{net1_forward.2} parent=0 // pred_check
    _
  $region7: #{net1_forward.2} parent=0 // pred_check_branch
    %11 = sbr.rel (0) target = $region9
  $region8: #{net1_forward.2} parent=0 // pred_region
    _
  $region9: #{net1_forward.2} parent=0 // pred_fallthru
    _
  // Predicated region
  $region10: #{net1_forward.2} parent=0 // pred_check
    _
  $region11: #{net1_forward.2} parent=0 // pred_check_branch
    %13 = sbr.rel (0) target = $region13
  $region12: #{net1_forward.2} parent=0 // pred_region
    _
  $region13: #{net1_forward.2} parent=0 // pred_fallthru
    _
  %v15 = vld [vmem:[%s0] sm:$0xf]
  %v16 = vld [vmem:[%s0 + $0x4] sm:$0xf]
  %v17 = vld [vmem:[%s0 + $0x8] sm:$0xf]
  %v18 = vld [vmem:[%s0 + $0xc] sm:$0xf]
  %v19 = vld [vmem:[%s0 + $0x10] sm:$0xf]
  %v20 = vld [vmem:[%s0 + $0x14] sm:$0xf]
  %v21 = vld [vmem:[%s0 + $0x18] sm:$0xf]
  %v22 = vld [vmem:[%s0 + $0x1c] sm:$0xf]
  %v23 = vld [vmem:[%s0 + $0x20] sm:$0xf]
  %v24 = vld [vmem:[%s0 + $0x24] sm:$0xf]
  %v25 = vld [vmem:[%s0 + $0x28] sm:$0xf]
  %v26 = vld [vmem:[%s0 + $0x2c] sm:$0xf]
  %v27 = vld [vmem:[%s0 + $0x30] sm:$0xf]
  %v28 = vld [vmem:[%s0 + $0x34] sm:$0xf]
  %v29 = vld [vmem:[%s0 + $0x38] sm:$0xf]
  %v30 = vld [vmem:[%s0 + $0x3c] sm:$0xf]
  %v31 = vld [vmem:[%s0 + $0x40] sm:$0xf]
  %v32 = vld [vmem:[%s0 + $0x44] sm:$0xf]
  %v33 = vld [vmem:[%s0 + $0x48] sm:$0xf]
  %v34 = vld [vmem:[%s0 + $0x4c] sm:$0xf]
  %v35 = vld [vmem:[%s0 + $0x50] sm:$0xf]
  %v36 = vld [vmem:[%s0 + $0x54] sm:$0xf]
  %v37 = vld [vmem:[%s0 + $0x58] sm:$0xf]
  %v38 = vld [vmem:[%s0 + $0x5c] sm:$0xf]
  %v39 = vld [vmem:[%s0 + $0x60] sm:$0xf]
  %v40 = vld [vmem:[%s0 + $0x64] sm:$0xf]
  %v41 = vld [vmem:[%s0 + $0x68] sm:$0xf]
  %v42 = vld [vmem:[%s0 + $0x6c] sm:$0xf]
  %v43 = vld [vmem:[%s0 + $0x70] sm:$0xf]
  %v44 = vld [vmem:[%s0 + $0x74] sm:$0xf]
  %v45 = vld [vmem:[%s0 + $0x78] sm:$0xf]
  %v46 = vld [vmem:[%s0 + $0x7c] sm:$0xf]
  %v47 = vld [vmem:[%s0 + $0x80] sm:$0xf]
  %v48 = vld [vmem:[%s0 + $0x84] sm:$0xf]
  %v49 = vld [vmem:[%s0 + $0x88] sm:$0xf]
  %v50 = vld [vmem:[%s0 + $0x8c] sm:$0xf]
  %v51 = vld [vmem:[%s0 + $0x90] sm:$0xf]
  %v52 = vld [vmem:[%s0 + $0x94] sm:$0xf]
  %v53 = vld [vmem:[%s0 + $0x98] sm:$0xf]
  %v54 = vld [vmem:[%s0 + $0x9c] sm:$0xf]
  %v55 = vld [vmem:[%s0 + $0xa0] sm:$0xf]
  %v56 = vld [vmem:[%s0 + $0xa4] sm:$0xf]
  %v57 = vld [vmem:[%s0 + $0xa8] sm:$0xf]
  %v58 = vld [vmem:[%s0 + $0xac] sm:$0xf]
  %v59 = vld [vmem:[%s0 + $0xb0] sm:$0xf]
  %v60 = vld [vmem:[%s0 + $0xb4] sm:$0xf]
  %v61 = vld [vmem:[%s0 + $0xb8] sm:$0xf]
  %v62 = vld [vmem:[%s0 + $0xbc] sm:$0xf]
  %v63 = vld [vmem:[%s0 + $0xc0] sm:$0xf]
  %v64 = vld [vmem:[%s0 + $0xc4] sm:$0xf]
  %v65 = vld [vmem:[%s0 + $0xc8] sm:$0xf]
  %v66 = vld [vmem:[%s0 + $0xcc] sm:$0xf]
  %v67 = vld [vmem:[%s0 + $0xd0] sm:$0xf]
  %v68 = vld [vmem:[%s0 + $0xd4] sm:$0xf]
  %v69 = vld [vmem:[%s0 + $0xd8] sm:$0xf]
  %v70 = vld [vmem:[%s0 + $0xdc] sm:$0xf]
  %v71 = vld [vmem:[%s0 + $0xe0] sm:$0xf]
  %v72 = vld [vmem:[%s0 + $0xe4] sm:$0xf]
  %v73 = vld [vmem:[%s0 + $0xe8] sm:$0xf]
  %v74 = vld [vmem:[%s0 + $0xec] sm:$0xf]
  %v75 = vld [vmem:[%s0 + $0xf0] sm:$0xf]
  %v76 = vld [vmem:[%s0 + $0xf4] sm:$0xf]
  %v77 = vld [vmem:[%s0 + $0xf8] sm:$0xf]
  %v78 = vld [vmem:[%s0 + $0xfc] sm:$0xf]
  %v79 = vld [vmem:[%s1] sm:$0xf]
  %v80 = vld [vmem:[%s1 + $0x4] sm:$0xf]
  %v81 = vld [vmem:[%s1 + $0x8] sm:$0xf]
  %v82 = vld [vmem:[%s1 + $0xc] sm:$0xf]
  %v83 = vld [vmem:[%s1 + $0x10] sm:$0xf]
  %v84 = vld [vmem:[%s1 + $0x14] sm:$0xf]
  %v85 = vld [vmem:[%s1 + $0x18] sm:$0xf]
  %v86 = vld [vmem:[%s1 + $0x1c] sm:$0xf]
  %v87 = vld [vmem:[%s1 + $0x20] sm:$0xf]
  %v88 = vld [vmem:[%s1 + $0x24] sm:$0x3]
  %v153 = vunpack.c.l.b16 %v15
  %v154 = vunpack.c.l.b16 %v16
  %v155 = vunpack.c.l.b16 %v17
  %v156 = vunpack.c.l.b16 %v18
  %v157 = vunpack.c.l.b16 %v19
  %v158 = vunpack.c.l.b16 %v20
  %v159 = vunpack.c.l.b16 %v21
  %v160 = vunpack.c.l.b16 %v22
  %v161 = vunpack.c.l.b16 %v23
  %v162 = vunpack.c.l.b16 %v24
  %v163 = vunpack.c.l.b16 %v25
  %v164 = vunpack.c.l.b16 %v26
  %v165 = vunpack.c.l.b16 %v27
  %v166 = vunpack.c.l.b16 %v28
  %v167 = vunpack.c.l.b16 %v29
  %v168 = vunpack.c.l.b16 %v30
  %v169 = vunpack.c.l.b16 %v31
  %v170 = vunpack.c.l.b16 %v32
  %v171 = vunpack.c.l.b16 %v33
  %v172 = vunpack.c.l.b16 %v34
  %v173 = vunpack.c.l.b16 %v35
  %v174 = vunpack.c.l.b16 %v36
  %v175 = vunpack.c.l.b16 %v37
  %v176 = vunpack.c.l.b16 %v38
  %v177 = vunpack.c.l.b16 %v39
  %v178 = vunpack.c.l.b16 %v40
  %v179 = vunpack.c.l.b16 %v41
  %v180 = vunpack.c.l.b16 %v42
  %v181 = vunpack.c.l.b16 %v43
  %v182 = vunpack.c.l.b16 %v44
  %v183 = vunpack.c.l.b16 %v45
  %v184 = vunpack.c.l.b16 %v46
  %v185 = vunpack.c.l.b16 %v47
  %v186 = vunpack.c.l.b16 %v48
  %v187 = vunpack.c.l.b16 %v49
  %v188 = vunpack.c.l.b16 %v50
  %v189 = vunpack.c.l.b16 %v51
  %v190 = vunpack.c.l.b16 %v52
  %v191 = vunpack.c.l.b16 %v53
  %v192 = vunpack.c.l.b16 %v54
  %v193 = vunpack.c.l.b16 %v55
  %v194 = vunpack.c.l.b16 %v56
  %v195 = vunpack.c.l.b16 %v57
  %v196 = vunpack.c.l.b16 %v58
  %v197 = vunpack.c.l.b16 %v59
  %v198 = vunpack.c.l.b16 %v60
  %v199 = vunpack.c.l.b16 %v61
  %v200 = vunpack.c.l.b16 %v62
  %v201 = vunpack.c.l.b16 %v63
  %v202 = vunpack.c.l.b16 %v64
  %v203 = vunpack.c.l.b16 %v65
  %v204 = vunpack.c.l.b16 %v66
  %v205 = vunpack.c.l.b16 %v67
  %v206 = vunpack.c.l.b16 %v68
  %v207 = vunpack.c.l.b16 %v69
  %v208 = vunpack.c.l.b16 %v70
  %v209 = vunpack.c.l.b16 %v71
  %v210 = vunpack.c.l.b16 %v72
  %v211 = vunpack.c.l.b16 %v73
  %v212 = vunpack.c.l.b16 %v74
  %v213 = vunpack.c.l.b16 %v75
  %v214 = vunpack.c.l.b16 %v76
  %v215 = vunpack.c.l.b16 %v77
  %v216 = vunpack.c.l.b16 %v78
  %v217 = vpack.c.b16 %v154, %v153
  %v218 = vpack.c.b16 %v156, %v155
  %v219 = vpack.c.b16 %v158, %v157
  %v220 = vpack.c.b16 %v160, %v159
  %v221 = vpack.c.b16 %v162, %v161
  %v222 = vpack.c.b16 %v164, %v163
  %v223 = vpack.c.b16 %v166, %v165
  %v224 = vpack.c.b16 %v168, %v167
  %v225 = vpack.c.b16 %v170, %v169
  %v226 = vpack.c.b16 %v172, %v171
  %v227 = vpack.c.b16 %v174, %v173
  %v228 = vpack.c.b16 %v176, %v175
  %v229 = vpack.c.b16 %v178, %v177
  %v230 = vpack.c.b16 %v180, %v179
  %v231 = vpack.c.b16 %v182, %v181
  %v232 = vpack.c.b16 %v184, %v183
  %v233 = vpack.c.b16 %v186, %v185
  %v234 = vpack.c.b16 %v188, %v187
  %v235 = vpack.c.b16 %v190, %v189
  %v236 = vpack.c.b16 %v192, %v191
  %v237 = vpack.c.b16 %v194, %v193
  %v238 = vpack.c.b16 %v196, %v195
  %v239 = vpack.c.b16 %v198, %v197
  %v240 = vpack.c.b16 %v200, %v199
  %v241 = vpack.c.b16 %v202, %v201
  %v242 = vpack.c.b16 %v204, %v203
  %v243 = vpack.c.b16 %v206, %v205
  %v244 = vpack.c.b16 %v208, %v207
  %v245 = vpack.c.b16 %v210, %v209
  %v246 = vpack.c.b16 %v212, %v211
  %v247 = vpack.c.b16 %v214, %v213
  %v248 = vpack.c.b16 %v216, %v215
  %v259 = vunpack.c.l.b16 %v79
  %v260 = vunpack.c.l.b16 %v80
  %v261 = vunpack.c.l.b16 %v81
  %v262 = vunpack.c.l.b16 %v82
  %v263 = vunpack.c.l.b16 %v83
  %v264 = vunpack.c.l.b16 %v84
  %v265 = vunpack.c.l.b16 %v85
  %v266 = vunpack.c.l.b16 %v86
  %v267 = vunpack.c.l.b16 %v87
  %v268 = vunpack.c.l.b16 %v88
  %v269 = vpack.c.b16 %v260, %v259
  %v270 = vpack.c.b16 %v262, %v261
  %v271 = vpack.c.b16 %v264, %v263
  %v272 = vpack.c.b16 %v266, %v265
  %v273 = vpack.c.b16 %v268, %v267
  %vm278 = vcmask 613376
  %v280 = vsel %vm278, %v217, 0
  %v283 = vsel %vm278, %v218, 0
  %v286 = vsel %vm278, %v219, 0
  %v289 = vsel %vm278, %v220, 0
  %v292 = vsel %vm278, %v221, 0
  %v295 = vsel %vm278, %v222, 0
  %v298 = vsel %vm278, %v223, 0
  %v301 = vsel %vm278, %v224, 0
  %v304 = vsel %vm278, %v225, 0
  %v307 = vsel %vm278, %v226, 0
  %v310 = vsel %vm278, %v227, 0
  %v313 = vsel %vm278, %v228, 0
  %v316 = vsel %vm278, %v229, 0
  %v319 = vsel %vm278, %v230, 0
  %v322 = vsel %vm278, %v231, 0
  %v325 = vsel %vm278, %v232, 0
  %v328 = vsel %vm278, %v233, 0
  %v331 = vsel %vm278, %v234, 0
  %v334 = vsel %vm278, %v235, 0
  %v337 = vsel %vm278, %v236, 0
  %v340 = vsel %vm278, %v237, 0
  %v343 = vsel %vm278, %v238, 0
  %v346 = vsel %vm278, %v239, 0
  %v349 = vsel %vm278, %v240, 0
  %v352 = vsel %vm278, %v241, 0
  %v355 = vsel %vm278, %v242, 0
  %v358 = vsel %vm278, %v243, 0
  %v361 = vsel %vm278, %v244, 0
  %v364 = vsel %vm278, %v245, 0
  %v367 = vsel %vm278, %v246, 0
  %v370 = vsel %vm278, %v247, 0
  %v373 = vsel %vm278, %v248, 0
  %vm375 = vcmask 1044480
  %vm376 = vcmask 1045504
  %v377 = vsel %vm375, 4294967295, 65535
  %v378 = vsel %vm376, %v377, 0
  %v380 = vand.u32 %v273, %v378
  %382 = vmatprep.subr.bf16.mxu0 0
  %383 = vmatpush1.bf16.msra.mxu0 %v269
  %384 = vmatprep.subr.bf16.mxu0 0
  %385 = vmatpush1.bf16.msra.mxu0 %v270
  %386 = vmatprep.subr.bf16.mxu0 0
  %387 = vmatpush1.bf16.msra.mxu0 %v271
  %388 = vmatprep.subr.bf16.mxu0 0
  %389 = vmatpush1.bf16.msra.mxu0 %v272
  %390 = vmatprep.subr.bf16.mxu0 0
  %391 = vmatpush1.bf16.msra.mxu0 %v380
  %392 = vmatprep.subr.bf16.mxu0 0
  %393 = vmatpush1.bf16.msra.mxu0 0
  %394 = vmatprep.subr.bf16.mxu0 0
  %395 = vmatpush1.bf16.msra.mxu0 0
  %396 = vmatprep.subr.bf16.mxu0 0
  %397 = vmatpush1.bf16.msra.mxu0 0
  %398 = vmatprep.subr.bf16.mxu0 0
  %399 = vmatpush1.bf16.msra.mxu0 0
  %400 = vmatprep.subr.bf16.mxu0 0
  %401 = vmatpush1.bf16.msra.mxu0 0
  %402 = vmatprep.subr.bf16.mxu0 0
  %403 = vmatpush1.bf16.msra.mxu0 0
  %404 = vmatprep.subr.bf16.mxu0 0
  %405 = vmatpush1.bf16.msra.mxu0 0
  %406 = vmatprep.subr.bf16.mxu0 0
  %407 = vmatpush1.bf16.msra.mxu0 0
  %408 = vmatprep.subr.bf16.mxu0 0
  %409 = vmatpush1.bf16.msra.mxu0 0
  %410 = vmatprep.subr.bf16.mxu0 0
  %411 = vmatpush1.bf16.msra.mxu0 0
  %412 = vmatprep.subr.bf16.mxu0 0
  %413 = vmatpush1.bf16.msra.mxu0 0
  %414 = vmatprep.mubr.bf16.mxu0 0
  %415 = vmatmul.mubr.bf16.gmra.mrb[0].mxu0 %v280
  %v416 = vpop.f32.mrb[0].mxu0
  %v417 = vadd.f32 0.0, %v416
  %v418 = vpop.f32.mrb[0].mxu0
  %v419 = vpop.f32.mrb[0].mxu0
  %v420 = vadd.f32 0.0, %v419
  %v421 = vpop.f32.mrb[0].mxu0
  %422 = vmatprep.mubr.bf16.mxu0 0
  %423 = vmatmul.mubr.bf16.gmra.mrb[0].mxu0 %v283
  %v424 = vpop.f32.mrb[0].mxu0
  %v425 = vadd.f32 0.0, %v424
  %v426 = vpop.f32.mrb[0].mxu0
  %v427 = vpop.f32.mrb[0].mxu0
  %v428 = vadd.f32 0.0, %v427
  %v429 = vpop.f32.mrb[0].mxu0
  %430 = vmatprep.mubr.bf16.mxu0 0
  %431 = vmatmul.mubr.bf16.gmra.mrb[0].mxu0 %v286
  %v432 = vpop.f32.mrb[0].mxu0
  %v433 = vadd.f32 0.0, %v432
  %v434 = vpop.f32.mrb[0].mxu0
  %v435 = vpop.f32.mrb[0].mxu0
  %v436 = vadd.f32 0.0, %v435
  %v437 = vpop.f32.mrb[0].mxu0
  %438 = vmatprep.mubr.bf16.mxu0 0
  %439 = vmatmul.mubr.bf16.gmra.mrb[0].mxu0 %v289
  %v440 = vpop.f32.mrb[0].mxu0
  %v441 = vadd.f32 0.0, %v440
  %v442 = vpop.f32.mrb[0].mxu0
  %v443 = vpop.f32.mrb[0].mxu0
  %v444 = vadd.f32 0.0, %v443
  %v445 = vpop.f32.mrb[0].mxu0
  %446 = vmatprep.mubr.bf16.mxu0 0
  %447 = vmatmul.mubr.bf16.gmra.mrb[0].mxu0 %v292
  %v448 = vpop.f32.mrb[0].mxu0
  %v449 = vadd.f32 0.0, %v448
  %v450 = vpop.f32.mrb[0].mxu0
  %v451 = vpop.f32.mrb[0].mxu0
  %v452 = vadd.f32 0.0, %v451
  %v453 = vpop.f32.mrb[0].mxu0
  %454 = vmatprep.mubr.bf16.mxu0 0
  %455 = vmatmul.mubr.bf16.gmra.mrb[0].mxu0 %v295
  %v456 = vpop.f32.mrb[0].mxu0
  %v457 = vadd.f32 0.0, %v456
  %v458 = vpop.f32.mrb[0].mxu0
  %v459 = vpop.f32.mrb[0].mxu0
  %v460 = vadd.f32 0.0, %v459
  %v461 = vpop.f32.mrb[0].mxu0
  %462 = vmatprep.mubr.bf16.mxu0 0
  %463 = vmatmul.mubr.bf16.gmra.mrb[0].mxu0 %v298
  %v464 = vpop.f32.mrb[0].mxu0
  %v465 = vadd.f32 0.0, %v464
  %v466 = vpop.f32.mrb[0].mxu0
  %v467 = vpop.f32.mrb[0].mxu0
  %v468 = vadd.f32 0.0, %v467
  %v469 = vpop.f32.mrb[0].mxu0
  %470 = vmatprep.mubr.bf16.mxu0 0
  %471 = vmatmul.mubr.bf16.gmra.mrb[0].mxu0 %v301
  %v472 = vpop.f32.mrb[0].mxu0
  %v473 = vadd.f32 0.0, %v472
  %v474 = vpop.f32.mrb[0].mxu0
  %v475 = vpop.f32.mrb[0].mxu0
  %v476 = vadd.f32 0.0, %v475
  %v477 = vpop.f32.mrb[0].mxu0
  %478 = vmatprep.mubr.bf16.mxu0 0
  %479 = vmatmul.mubr.bf16.gmra.mrb[0].mxu0 %v304
  %v480 = vpop.f32.mrb[0].mxu0
  %v481 = vadd.f32 0.0, %v480
  %v482 = vpop.f32.mrb[0].mxu0
  %v483 = vpop.f32.mrb[0].mxu0
  %v484 = vadd.f32 0.0, %v483
  %v485 = vpop.f32.mrb[0].mxu0
  %486 = vmatprep.mubr.bf16.mxu0 0
  %487 = vmatmul.mubr.bf16.gmra.mrb[0].mxu0 %v307
  %v488 = vpop.f32.mrb[0].mxu0
  %v489 = vadd.f32 0.0, %v488
  %v490 = vpop.f32.mrb[0].mxu0
  %v491 = vpop.f32.mrb[0].mxu0
  %v492 = vadd.f32 0.0, %v491
  %v493 = vpop.f32.mrb[0].mxu0
  %494 = vmatprep.mubr.bf16.mxu0 0
  %495 = vmatmul.mubr.bf16.gmra.mrb[0].mxu0 %v310
  %v496 = vpop.f32.mrb[0].mxu0
  %v497 = vadd.f32 0.0, %v496
  %v498 = vpop.f32.mrb[0].mxu0
  %v499 = vpop.f32.mrb[0].mxu0
  %v500 = vadd.f32 0.0, %v499
  %v501 = vpop.f32.mrb[0].mxu0
  %502 = vmatprep.mubr.bf16.mxu0 0
  %503 = vmatmul.mubr.bf16.gmra.mrb[0].mxu0 %v313
  %v504 = vpop.f32.mrb[0].mxu0
  %v505 = vadd.f32 0.0, %v504
  %v506 = vpop.f32.mrb[0].mxu0
  %v507 = vpop.f32.mrb[0].mxu0
  %v508 = vadd.f32 0.0, %v507
  %v509 = vpop.f32.mrb[0].mxu0
  %510 = vmatprep.mubr.bf16.mxu0 0
  %511 = vmatmul.mubr.bf16.gmra.mrb[0].mxu0 %v316
  %v512 = vpop.f32.mrb[0].mxu0
  %v513 = vadd.f32 0.0, %v512
  %v514 = vpop.f32.mrb[0].mxu0
  %v515 = vpop.f32.mrb[0].mxu0
  %v516 = vadd.f32 0.0, %v515
  %v517 = vpop.f32.mrb[0].mxu0
  %518 = vmatprep.mubr.bf16.mxu0 0
  %519 = vmatmul.mubr.bf16.gmra.mrb[0].mxu0 %v319
  %v520 = vpop.f32.mrb[0].mxu0
  %v521 = vadd.f32 0.0, %v520
  %v522 = vpop.f32.mrb[0].mxu0
  %v523 = vpop.f32.mrb[0].mxu0
  %v524 = vadd.f32 0.0, %v523
  %v525 = vpop.f32.mrb[0].mxu0
  %526 = vmatprep.mubr.bf16.mxu0 0
  %527 = vmatmul.mubr.bf16.gmra.mrb[0].mxu0 %v322
  %v528 = vpop.f32.mrb[0].mxu0
  %v529 = vadd.f32 0.0, %v528
  %v530 = vpop.f32.mrb[0].mxu0
  %v531 = vpop.f32.mrb[0].mxu0
  %v532 = vadd.f32 0.0, %v531
  %v533 = vpop.f32.mrb[0].mxu0
  %534 = vmatprep.mubr.bf16.mxu0 0
  %535 = vmatmul.mubr.bf16.gmra.mrb[0].mxu0 %v325
  %v536 = vpop.f32.mrb[0].mxu0
  %v537 = vadd.f32 0.0, %v536
  %v538 = vpop.f32.mrb[0].mxu0
  %v539 = vpop.f32.mrb[0].mxu0
  %v540 = vadd.f32 0.0, %v539
  %v541 = vpop.f32.mrb[0].mxu0
  %542 = vmatprep.mubr.bf16.mxu0 0
  %543 = vmatmul.mubr.bf16.gmra.mrb[0].mxu0 %v328
  %v544 = vpop.f32.mrb[0].mxu0
  %v545 = vadd.f32 0.0, %v544
  %v546 = vpop.f32.mrb[0].mxu0
  %v547 = vpop.f32.mrb[0].mxu0
  %v548 = vadd.f32 0.0, %v547
  %v549 = vpop.f32.mrb[0].mxu0
  %550 = vmatprep.mubr.bf16.mxu0 0
  %551 = vmatmul.mubr.bf16.gmra.mrb[0].mxu0 %v331
  %v552 = vpop.f32.mrb[0].mxu0
  %v553 = vadd.f32 0.0, %v552
  %v554 = vpop.f32.mrb[0].mxu0
  %v555 = vpop.f32.mrb[0].mxu0
  %v556 = vadd.f32 0.0, %v555
  %v557 = vpop.f32.mrb[0].mxu0
  %558 = vmatprep.mubr.bf16.mxu0 0
  %559 = vmatmul.mubr.bf16.gmra.mrb[0].mxu0 %v334
  %v560 = vpop.f32.mrb[0].mxu0
  %v561 = vadd.f32 0.0, %v560
  %v562 = vpop.f32.mrb[0].mxu0
  %v563 = vpop.f32.mrb[0].mxu0
  %v564 = vadd.f32 0.0, %v563
  %v565 = vpop.f32.mrb[0].mxu0
  %566 = vmatprep.mubr.bf16.mxu0 0
  %567 = vmatmul.mubr.bf16.gmra.mrb[0].mxu0 %v337
  %v568 = vpop.f32.mrb[0].mxu0
  %v569 = vadd.f32 0.0, %v568
  %v570 = vpop.f32.mrb[0].mxu0
  %v571 = vpop.f32.mrb[0].mxu0
  %v572 = vadd.f32 0.0, %v571
  %v573 = vpop.f32.mrb[0].mxu0
  %574 = vmatprep.mubr.bf16.mxu0 0
  %575 = vmatmul.mubr.bf16.gmra.mrb[0].mxu0 %v340
  %v576 = vpop.f32.mrb[0].mxu0
  %v577 = vadd.f32 0.0, %v576
  %v578 = vpop.f32.mrb[0].mxu0
  %v579 = vpop.f32.mrb[0].mxu0
  %v580 = vadd.f32 0.0, %v579
  %v581 = vpop.f32.mrb[0].mxu0
  %582 = vmatprep.mubr.bf16.mxu0 0
  %583 = vmatmul.mubr.bf16.gmra.mrb[0].mxu0 %v343
  %v584 = vpop.f32.mrb[0].mxu0
  %v585 = vadd.f32 0.0, %v584
  %v586 = vpop.f32.mrb[0].mxu0
  %v587 = vpop.f32.mrb[0].mxu0
  %v588 = vadd.f32 0.0, %v587
  %v589 = vpop.f32.mrb[0].mxu0
  %590 = vmatprep.mubr.bf16.mxu0 0
  %591 = vmatmul.mubr.bf16.gmra.mrb[0].mxu0 %v346
  %v592 = vpop.f32.mrb[0].mxu0
  %v593 = vadd.f32 0.0, %v592
  %v594 = vpop.f32.mrb[0].mxu0
  %v595 = vpop.f32.mrb[0].mxu0
  %v596 = vadd.f32 0.0, %v595
  %v597 = vpop.f32.mrb[0].mxu0
  %598 = vmatprep.mubr.bf16.mxu0 0
  %599 = vmatmul.mubr.bf16.gmra.mrb[0].mxu0 %v349
  %v600 = vpop.f32.mrb[0].mxu0
  %v601 = vadd.f32 0.0, %v600
  %v602 = vpop.f32.mrb[0].mxu0
  %v603 = vpop.f32.mrb[0].mxu0
  %v604 = vadd.f32 0.0, %v603
  %v605 = vpop.f32.mrb[0].mxu0
  %606 = vmatprep.mubr.bf16.mxu0 0
  %607 = vmatmul.mubr.bf16.gmra.mrb[0].mxu0 %v352
  %v608 = vpop.f32.mrb[0].mxu0
  %v609 = vadd.f32 0.0, %v608
  %v610 = vpop.f32.mrb[0].mxu0
  %v611 = vpop.f32.mrb[0].mxu0
  %v612 = vadd.f32 0.0, %v611
  %v613 = vpop.f32.mrb[0].mxu0
  %614 = vmatprep.mubr.bf16.mxu0 0
  %615 = vmatmul.mubr.bf16.gmra.mrb[0].mxu0 %v355
  %v616 = vpop.f32.mrb[0].mxu0
  %v617 = vadd.f32 0.0, %v616
  %v618 = vpop.f32.mrb[0].mxu0
  %v619 = vpop.f32.mrb[0].mxu0
  %v620 = vadd.f32 0.0, %v619
  %v621 = vpop.f32.mrb[0].mxu0
  %622 = vmatprep.mubr.bf16.mxu0 0
  %623 = vmatmul.mubr.bf16.gmra.mrb[0].mxu0 %v358
  %v624 = vpop.f32.mrb[0].mxu0
  %v625 = vadd.f32 0.0, %v624
  %v626 = vpop.f32.mrb[0].mxu0
  %v627 = vpop.f32.mrb[0].mxu0
  %v628 = vadd.f32 0.0, %v627
  %v629 = vpop.f32.mrb[0].mxu0
  %630 = vmatprep.mubr.bf16.mxu0 0
  %631 = vmatmul.mubr.bf16.gmra.mrb[0].mxu0 %v361
  %v632 = vpop.f32.mrb[0].mxu0
  %v633 = vadd.f32 0.0, %v632
  %v634 = vpop.f32.mrb[0].mxu0
  %v635 = vpop.f32.mrb[0].mxu0
  %v636 = vadd.f32 0.0, %v635
  %v637 = vpop.f32.mrb[0].mxu0
  %638 = vmatprep.mubr.bf16.mxu0 0
  %639 = vmatmul.mubr.bf16.gmra.mrb[0].mxu0 %v364
  %v640 = vpop.f32.mrb[0].mxu0
  %v641 = vadd.f32 0.0, %v640
  %v642 = vpop.f32.mrb[0].mxu0
  %v643 = vpop.f32.mrb[0].mxu0
  %v644 = vadd.f32 0.0, %v643
  %v645 = vpop.f32.mrb[0].mxu0
  %646 = vmatprep.mubr.bf16.mxu0 0
  %647 = vmatmul.mubr.bf16.gmra.mrb[0].mxu0 %v367
  %v648 = vpop.f32.mrb[0].mxu0
  %v649 = vadd.f32 0.0, %v648
  %v650 = vpop.f32.mrb[0].mxu0
  %v651 = vpop.f32.mrb[0].mxu0
  %v652 = vadd.f32 0.0, %v651
  %v653 = vpop.f32.mrb[0].mxu0
  %654 = vmatprep.mubr.bf16.mxu0 0
  %655 = vmatmul.mubr.bf16.gmra.mrb[0].mxu0 %v370
  %v656 = vpop.f32.mrb[0].mxu0
  %v657 = vadd.f32 0.0, %v656
  %v658 = vpop.f32.mrb[0].mxu0
  %v659 = vpop.f32.mrb[0].mxu0
  %v660 = vadd.f32 0.0, %v659
  %v661 = vpop.f32.mrb[0].mxu0
  %662 = vmatprep.mubr.bf16.mxu0 0
  %663 = vmatmul.mubr.bf16.gmra.mrb[0].mxu0 %v373
  %v664 = vpop.f32.mrb[0].mxu0
  %v665 = vadd.f32 0.0, %v664
  %v666 = vpop.f32.mrb[0].mxu0
  %v667 = vpop.f32.mrb[0].mxu0
  %v668 = vadd.f32 0.0, %v667
  %v669 = vpop.f32.mrb[0].mxu0
  %670 = vdwg.mxu0
  %v671 = vmax.f32 %v417, %v481
  %v672 = vmax.f32 %v420, %v484
  %v673 = vmax.f32 %v425, %v489
  %v674 = vmax.f32 %v428, %v492
  %v675 = vmax.f32 %v433, %v497
  %v676 = vmax.f32 %v436, %v500
  %v677 = vmax.f32 %v441, %v505
  %v678 = vmax.f32 %v444, %v508
  %v679 = vmax.f32 %v449, %v513
  %v680 = vmax.f32 %v452, %v516
  %v681 = vmax.f32 %v457, %v521
  %v682 = vmax.f32 %v460, %v524
  %v683 = vmax.f32 %v465, %v529
  %v684 = vmax.f32 %v468, %v532
  %v685 = vmax.f32 %v473, %v537
  %v686 = vmax.f32 %v476, %v540
  %v687 = vmax.f32 %v545, %v609
  %v688 = vmax.f32 %v548, %v612
  %v689 = vmax.f32 %v553, %v617
  %v690 = vmax.f32 %v556, %v620
  %v691 = vmax.f32 %v561, %v625
  %v692 = vmax.f32 %v564, %v628
  %v693 = vmax.f32 %v569, %v633
  %v694 = vmax.f32 %v572, %v636
  %v695 = vmax.f32 %v577, %v641
  %v696 = vmax.f32 %v580, %v644
  %v697 = vmax.f32 %v585, %v649
  %v698 = vmax.f32 %v588, %v652
  %v699 = vmax.f32 %v593, %v657
  %v700 = vmax.f32 %v596, %v660
  %v701 = vmax.f32 %v601, %v665
  %v702 = vmax.f32 %v604, %v668
  %v703 = vmax.f32 %v671, %v687
  %v704 = vmax.f32 %v672, %v688
  %v705 = vmax.f32 %v673, %v689
  %v706 = vmax.f32 %v674, %v690
  %v707 = vmax.f32 %v675, %v691
  %v708 = vmax.f32 %v676, %v692
  %v709 = vmax.f32 %v677, %v693
  %v710 = vmax.f32 %v678, %v694
  %v711 = vmax.f32 %v679, %v695
  %v712 = vmax.f32 %v680, %v696
  %v713 = vmax.f32 %v681, %v697
  %v714 = vmax.f32 %v682, %v698
  %v715 = vmax.f32 %v683, %v699
  %v716 = vmax.f32 %v684, %v700
  %v717 = vmax.f32 %v685, %v701
  %v718 = vmax.f32 %v686, %v702
  %v719 = vld [vmem:[%s2] sm:$0x1]
  %v721 = vlaneseq
  %v722 = vshrl.u32 %v721, 7
  %v723 = vsub.s32 0, %v722
  %v724 = vrot.slane %v719, %v723
  %v726 = vadd.f32 %v703, %v724
  %v727 = vadd.f32 %v704, %v724
  %v728 = vadd.f32 %v705, %v724
  %v729 = vadd.f32 %v706, %v724
  %v730 = vadd.f32 %v707, %v724
  %v731 = vadd.f32 %v708, %v724
  %v732 = vadd.f32 %v709, %v724
  %v733 = vadd.f32 %v710, %v724
  %v734 = vadd.f32 %v711, %v724
  %v735 = vadd.f32 %v712, %v724
  %v736 = vadd.f32 %v713, %v724
  %v737 = vadd.f32 %v714, %v724
  %v738 = vadd.f32 %v715, %v724
  %v739 = vadd.f32 %v716, %v724
  %v740 = vadd.f32 %v717, %v724
  %v741 = vadd.f32 %v718, %v724
  %v742 = vmax.f32 %v726, 0.0
  %v743 = vmax.f32 %v727, 0.0
  %v744 = vmax.f32 %v728, 0.0
  %v745 = vmax.f32 %v729, 0.0
  %v746 = vmax.f32 %v730, 0.0
  %v747 = vmax.f32 %v731, 0.0
  %v748 = vmax.f32 %v732, 0.0
  %v749 = vmax.f32 %v733, 0.0
  %v750 = vmax.f32 %v734, 0.0
  %v751 = vmax.f32 %v735, 0.0
  %v752 = vmax.f32 %v736, 0.0
  %v753 = vmax.f32 %v737, 0.0
  %v754 = vmax.f32 %v738, 0.0
  %v755 = vmax.f32 %v739, 0.0
  %v756 = vmax.f32 %v740, 0.0
  %v757 = vmax.f32 %v741, 0.0
  %v758 = vpack.c.bf16 %v743, %v742
  %v759 = vpack.c.bf16 %v745, %v744
  %v760 = vpack.c.bf16 %v747, %v746
  %v761 = vpack.c.bf16 %v749, %v748
  %v762 = vpack.c.bf16 %v751, %v750
  %v763 = vpack.c.bf16 %v753, %v752
  %v764 = vpack.c.bf16 %v755, %v754
  %v765 = vpack.c.bf16 %v757, %v756
  %v774 = vunpack.c.l.b16 %v758
  %v775 = vunpack.c.h.b16 %v758
  %v776 = vunpack.c.l.b16 %v759
  %v777 = vunpack.c.h.b16 %v759
  %v778 = vunpack.c.l.b16 %v760
  %v779 = vunpack.c.h.b16 %v760
  %v780 = vunpack.c.l.b16 %v761
  %v781 = vunpack.c.h.b16 %v761
  %v782 = vunpack.c.l.b16 %v762
  %v783 = vunpack.c.h.b16 %v762
  %v784 = vunpack.c.l.b16 %v763
  %v785 = vunpack.c.h.b16 %v763
  %v786 = vunpack.c.l.b16 %v764
  %v787 = vunpack.c.h.b16 %v764
  %v788 = vunpack.c.l.b16 %v765
  %v789 = vunpack.c.h.b16 %v765
  %v790 = vpack.c.b16 %v774, %v774
  %v791 = vpack.c.b16 %v775, %v775
  %v792 = vpack.c.b16 %v776, %v776
  %v793 = vpack.c.b16 %v777, %v777
  %v794 = vpack.c.b16 %v778, %v778
  %v795 = vpack.c.b16 %v779, %v779
  %v796 = vpack.c.b16 %v780, %v780
  %v797 = vpack.c.b16 %v781, %v781
  %v798 = vpack.c.b16 %v782, %v782
  %v799 = vpack.c.b16 %v783, %v783
  %v800 = vpack.c.b16 %v784, %v784
  %v801 = vpack.c.b16 %v785, %v785
  %v802 = vpack.c.b16 %v786, %v786
  %v803 = vpack.c.b16 %v787, %v787
  %v804 = vpack.c.b16 %v788, %v788
  %v805 = vpack.c.b16 %v789, %v789
  %vm822 = vcmask 44032
  %823 = vst.msk [vmem:[%s3] sm:$0xf] %vm822, %v790
  %824 = vst.msk [vmem:[%s3 + $0x4] sm:$0xf] %vm822, %v791
  %825 = vst.msk [vmem:[%s3 + $0x8] sm:$0xf] %vm822, %v792
  %826 = vst.msk [vmem:[%s3 + $0xc] sm:$0xf] %vm822, %v793
  %827 = vst.msk [vmem:[%s3 + $0x10] sm:$0xf] %vm822, %v794
  %828 = vst.msk [vmem:[%s3 + $0x14] sm:$0xf] %vm822, %v795
  %829 = vst.msk [vmem:[%s3 + $0x18] sm:$0xf] %vm822, %v796
  %830 = vst.msk [vmem:[%s3 + $0x1c] sm:$0xf] %vm822, %v797
  %831 = vst.msk [vmem:[%s3 + $0x20] sm:$0xf] %vm822, %v798
  %832 = vst.msk [vmem:[%s3 + $0x24] sm:$0xf] %vm822, %v799
  %833 = vst.msk [vmem:[%s3 + $0x28] sm:$0xf] %vm822, %v800
  %834 = vst.msk [vmem:[%s3 + $0x2c] sm:$0xf] %vm822, %v801
  %835 = vst.msk [vmem:[%s3 + $0x30] sm:$0xf] %vm822, %v802
  %836 = vst.msk [vmem:[%s3 + $0x34] sm:$0xf] %vm822, %v803
  %837 = vst.msk [vmem:[%s3 + $0x38] sm:$0xf] %vm822, %v804
  %838 = vst.msk [vmem:[%s3 + $0x3c] sm:$0xf] %vm822, %v805
  // Predicated region
  $region14: #{net1_forward.2} parent=0 // pred_check
    _
  $region15: #{net1_forward.2} parent=0 // pred_check_branch
    %840 = sbr.rel (0) target = $region17
  $region16: #{net1_forward.2} parent=0 // pred_region
    _
  $region17: #{net1_forward.2} parent=0 // pred_fallthru
    _
  // Predicated region
  $region18: #{net1_forward.2} parent=0 // pred_check
    _
  $region19: #{net1_forward.2} parent=0 // pred_check_branch
    %842 = sbr.rel (0) target = $region21
  $region20: #{net1_forward.2} parent=0 // pred_region
    _
  $region21: #{net1_forward.2} parent=0 // pred_fallthru
    _

// kernel: net1_forward.3
$region0: #{net1_forward.3}
  #allocation0 [shape = 'u32[]', space=smem, size = 0x4, offset = 0x4, fixed_abs, tag = 'smem constant byte address 0x4 - core index']
  #allocation1 [shape = 'u32[144,128]{1,0:T(1,128)}', space=vmem, size = 0x12000, scoped, tag = 'internal scratch']
  %s0 = inlined_call_operand.vmem [shape: bf16[2,384], index: 0, kind: input, shape index: {}]
  %s1 = inlined_call_operand.vmem [shape: bf16[384,256], index: 1, kind: input, shape index: {}]
  %s2 = inlined_call_operand.vmem [shape: f32[1,64], index: 2, kind: input, shape index: {}]
  %s3 = inlined_call_operand.vmem [shape: bf16[64,2000], index: 3, kind: input, shape index: {}]
  %s4 = inlined_call_operand.vmem [shape: f32[1,2000], index: 4, kind: input, shape index: {}]
  %s5 = inlined_call_operand.vmem [shape: bf16[2000,120], index: 5, kind: input, shape index: {}]
  %s6 = inlined_call_operand.vmem [shape: f32[1,120], index: 6, kind: input, shape index: {}]
  %s7 = inlined_call_operand.vmem [shape: bf16[120,84], index: 7, kind: input, shape index: {}]
  %s8 = inlined_call_operand.vmem [shape: f32[1,84], index: 8, kind: input, shape index: {}]
  %s9 = inlined_call_operand.vmem [shape: bf16[84,10], index: 9, kind: input, shape index: {}]
  %s10 = inlined_call_operand.vmem [shape: f32[1,10], index: 10, kind: input, shape index: {}]
  %s11 = inlined_call_operand.hbm [shape: f32[2,10], index: 11, kind: output, shape index: {}]
  %s12 = sld [smem:[#allocation0]]
  $region54: #{net1_forward.3} parent=0
    _
  %s14 = ssub.s32 1, %s12
  %s15 = scalar_select 0, %s14, %s12
  $region1: #{net1_forward.3} parent=0
    #allocation2 [shape = 'u8[1024]{0}', space=vmem, size = 0x400, scoped, tag = 'output window, operand 0, single buffered']
    #allocation3 [shape = 's32[1]{0}', space=sflag, size = 0x4, scoped, tag = 'scoped memory for net1_forward.3']
    %16 = vsyncpa [#allocation3], 0
    // Predicated region
    $region2: #{net1_forward.3} parent=1 // pred_check
      _
    $region3: #{net1_forward.3} parent=1 // pred_check_branch
      %18 = sbr.rel (0) target = $region5
    $region4: #{net1_forward.3} parent=1 // pred_region
      _
    $region5: #{net1_forward.3} parent=1 // pred_fallthru
      _
    // Predicated region
    $region6: #{net1_forward.3} parent=1 // pred_check
      _
    $region7: #{net1_forward.3} parent=1 // pred_check_branch
      %20 = sbr.rel (0) target = $region9
    $region8: #{net1_forward.3} parent=1 // pred_region
      _
    $region9: #{net1_forward.3} parent=1 // pred_fallthru
      _
    // Predicated region
    $region10: #{net1_forward.3} parent=1 // pred_check
      _
    $region11: #{net1_forward.3} parent=1 // pred_check_branch
      %22 = sbr.rel (0) target = $region13
    $region12: #{net1_forward.3} parent=1 // pred_region
      _
    $region13: #{net1_forward.3} parent=1 // pred_fallthru
      _
    // Predicated region
    $region14: #{net1_forward.3} parent=1 // pred_check
      _
    $region15: #{net1_forward.3} parent=1 // pred_check_branch
      %24 = sbr.rel (0) target = $region17
    $region16: #{net1_forward.3} parent=1 // pred_region
      _
    $region17: #{net1_forward.3} parent=1 // pred_fallthru
      _
    // Predicated region
    $region18: #{net1_forward.3} parent=1 // pred_check
      _
    $region19: #{net1_forward.3} parent=1 // pred_check_branch
      %26 = sbr.rel (0) target = $region21
    $region20: #{net1_forward.3} parent=1 // pred_region
      _
    $region21: #{net1_forward.3} parent=1 // pred_fallthru
      _
    // Predicated region
    $region22: #{net1_forward.3} parent=1 // pred_check
      _
    $region23: #{net1_forward.3} parent=1 // pred_check_branch
      %28 = sbr.rel (0) target = $region25
    $region24: #{net1_forward.3} parent=1 // pred_region
      _
    $region25: #{net1_forward.3} parent=1 // pred_fallthru
      _
    // Predicated region
    $region26: #{net1_forward.3} parent=1 // pred_check
      _
    $region27: #{net1_forward.3} parent=1 // pred_check_branch
      %30 = sbr.rel (0) target = $region29
    $region28: #{net1_forward.3} parent=1 // pred_region
      _
    $region29: #{net1_forward.3} parent=1 // pred_fallthru
      _
    // Predicated region
    $region30: #{net1_forward.3} parent=1 // pred_check
      _
    $region31: #{net1_forward.3} parent=1 // pred_check_branch
      %32 = sbr.rel (0) target = $region33
    $region32: #{net1_forward.3} parent=1 // pred_region
      _
    $region33: #{net1_forward.3} parent=1 // pred_fallthru
      _
    // Predicated region
    $region34: #{net1_forward.3} parent=1 // pred_check
      _
    $region35: #{net1_forward.3} parent=1 // pred_check_branch
      %34 = sbr.rel (0) target = $region37
    $region36: #{net1_forward.3} parent=1 // pred_region
      _
    $region37: #{net1_forward.3} parent=1 // pred_fallthru
      _
    // Predicated region
    $region38: #{net1_forward.3} parent=1 // pred_check
      _
    $region39: #{net1_forward.3} parent=1 // pred_check_branch
      %36 = sbr.rel (0) target = $region41
    $region40: #{net1_forward.3} parent=1 // pred_region
      _
    $region41: #{net1_forward.3} parent=1 // pred_fallthru
      _
    // Predicated region
    $region42: #{net1_forward.3} parent=1 // pred_check
      _
    $region43: #{net1_forward.3} parent=1 // pred_check_branch
      %38 = sbr.rel (0) target = $region45
    $region44: #{net1_forward.3} parent=1 // pred_region
      _
    $region45: #{net1_forward.3} parent=1 // pred_fallthru
      _
    %v40 = vld [vmem:[%s0] sm:$0x7]
    %v41 = vld [vmem:[%s1] sm:$0xff]
    %v42 = vld [vmem:[%s1 + $0x8] sm:$0xff]
    %v43 = vld [vmem:[%s1 + $0x10] sm:$0xff]
    %v44 = vld [vmem:[%s1 + $0x18] sm:$0xff]
    %v45 = vld [vmem:[%s1 + $0x20] sm:$0xff]
    %v46 = vld [vmem:[%s1 + $0x28] sm:$0xff]
    %v47 = vld [vmem:[%s1 + $0x30] sm:$0xff]
    %v48 = vld [vmem:[%s1 + $0x38] sm:$0xff]
    %v49 = vld [vmem:[%s1 + $0x40] sm:$0xff]
    %v50 = vld [vmem:[%s1 + $0x48] sm:$0xff]
    %v51 = vld [vmem:[%s1 + $0x50] sm:$0xff]
    %v52 = vld [vmem:[%s1 + $0x58] sm:$0xff]
    %v53 = vld [vmem:[%s1 + $0x60] sm:$0xff]
    %v54 = vld [vmem:[%s1 + $0x68] sm:$0xff]
    %v55 = vld [vmem:[%s1 + $0x70] sm:$0xff]
    %v56 = vld [vmem:[%s1 + $0x78] sm:$0xff]
    %v57 = vld [vmem:[%s1 + $0x80] sm:$0xff]
    %v58 = vld [vmem:[%s1 + $0x88] sm:$0xff]
    %v59 = vld [vmem:[%s1 + $0x90] sm:$0xff]
    %v60 = vld [vmem:[%s1 + $0x98] sm:$0xff]
    %v61 = vld [vmem:[%s1 + $0xa0] sm:$0xff]
    %v62 = vld [vmem:[%s1 + $0xa8] sm:$0xff]
    %v63 = vld [vmem:[%s1 + $0xb0] sm:$0xff]
    %v64 = vld [vmem:[%s1 + $0xb8] sm:$0xff]
    %v65 = vld [vmem:[%s1 + $0xc0] sm:$0xff]
    %v66 = vld [vmem:[%s1 + $0xc8] sm:$0xff]
    %v67 = vld [vmem:[%s1 + $0xd0] sm:$0xff]
    %v68 = vld [vmem:[%s1 + $0xd8] sm:$0xff]
    %v69 = vld [vmem:[%s1 + $0xe0] sm:$0xff]
    %v70 = vld [vmem:[%s1 + $0xe8] sm:$0xff]
    %v71 = vld [vmem:[%s1 + $0xf0] sm:$0xff]
    %v72 = vld [vmem:[%s1 + $0xf8] sm:$0xff]
    %v73 = vld [vmem:[%s1 + $0x100] sm:$0xff]
    %v74 = vld [vmem:[%s1 + $0x108] sm:$0xff]
    %v75 = vld [vmem:[%s1 + $0x110] sm:$0xff]
    %v76 = vld [vmem:[%s1 + $0x118] sm:$0xff]
    %v77 = vld [vmem:[%s1 + $0x120] sm:$0xff]
    %v78 = vld [vmem:[%s1 + $0x128] sm:$0xff]
    %v79 = vld [vmem:[%s1 + $0x130] sm:$0xff]
    %v80 = vld [vmem:[%s1 + $0x138] sm:$0xff]
    %v81 = vld [vmem:[%s1 + $0x140] sm:$0xff]
    %v82 = vld [vmem:[%s1 + $0x148] sm:$0xff]
    %v83 = vld [vmem:[%s1 + $0x150] sm:$0xff]
    %v84 = vld [vmem:[%s1 + $0x158] sm:$0xff]
    %v85 = vld [vmem:[%s1 + $0x160] sm:$0xff]
    %v86 = vld [vmem:[%s1 + $0x168] sm:$0xff]
    %v87 = vld [vmem:[%s1 + $0x170] sm:$0xff]
    %v88 = vld [vmem:[%s1 + $0x178] sm:$0xff]
    %v91 = vunpack.c.l.s4 1966171168
    %v92 = vunpack.c.0.s8 %v91
    %v93 = vlaneseq
    %v94 = vshrl.u32 %v93, 7
    %v95 = vsub.s32 %v92, %v94
    %v96 = vrot.slane %v40, %v95
    %v97 = vcombine.high %v96, %v96
    %v99 = vunpack.c.l.s4 1966171168
    %v100 = vunpack.c.0.s8 %v99
    %v101 = vlaneseq
    %v102 = vshrl.u32 %v101, 7
    %v103 = vsub.s32 %v100, %v102
    %v104 = vrot.slane %v96, %v103
    %v106 = vunpack.c.l.s4 1966171168
    %v107 = vunpack.c.0.s8 %v106
    %v108 = vlaneseq
    %v109 = vshrl.u32 %v108, 7
    %v110 = vsub.s32 %v107, %v109
    %v111 = vrot.slane %v97, %v110
    %v112 = vcombine.high %v104, %v104
    %v164 = vunpack.c.l.b16 %v41
    %v165 = vunpack.c.h.b16 %v41
    %v166 = vunpack.c.l.b16 %v42
    %v167 = vunpack.c.h.b16 %v42
    %v168 = vunpack.c.l.b16 %v43
    %v169 = vunpack.c.h.b16 %v43
    %v170 = vunpack.c.l.b16 %v44
    %v171 = vunpack.c.h.b16 %v44
    %v172 = vunpack.c.l.b16 %v45
    %v173 = vunpack.c.h.b16 %v45
    %v174 = vunpack.c.l.b16 %v46
    %v175 = vunpack.c.h.b16 %v46
    %v176 = vunpack.c.l.b16 %v47
    %v177 = vunpack.c.h.b16 %v47
    %v178 = vunpack.c.l.b16 %v48
    %v179 = vunpack.c.h.b16 %v48
    %v180 = vunpack.c.l.b16 %v49
    %v181 = vunpack.c.h.b16 %v49
    %v182 = vunpack.c.l.b16 %v50
    %v183 = vunpack.c.h.b16 %v50
    %v184 = vunpack.c.l.b16 %v51
    %v185 = vunpack.c.h.b16 %v51
    %v186 = vunpack.c.l.b16 %v52
    %v187 = vunpack.c.h.b16 %v52
    %v188 = vunpack.c.l.b16 %v53
    %v189 = vunpack.c.h.b16 %v53
    %v190 = vunpack.c.l.b16 %v54
    %v191 = vunpack.c.h.b16 %v54
    %v192 = vunpack.c.l.b16 %v55
    %v193 = vunpack.c.h.b16 %v55
    %v194 = vunpack.c.l.b16 %v56
    %v195 = vunpack.c.h.b16 %v56
    %v196 = vunpack.c.l.b16 %v57
    %v197 = vunpack.c.h.b16 %v57
    %v198 = vunpack.c.l.b16 %v58
    %v199 = vunpack.c.h.b16 %v58
    %v200 = vunpack.c.l.b16 %v59
    %v201 = vunpack.c.h.b16 %v59
    %v202 = vunpack.c.l.b16 %v60
    %v203 = vunpack.c.h.b16 %v60
    %v204 = vunpack.c.l.b16 %v61
    %v205 = vunpack.c.h.b16 %v61
    %v206 = vunpack.c.l.b16 %v62
    %v207 = vunpack.c.h.b16 %v62
    %v208 = vunpack.c.l.b16 %v63
    %v209 = vunpack.c.h.b16 %v63
    %v210 = vunpack.c.l.b16 %v64
    %v211 = vunpack.c.h.b16 %v64
    %v212 = vunpack.c.l.b16 %v65
    %v213 = vunpack.c.h.b16 %v65
    %v214 = vunpack.c.l.b16 %v66
    %v215 = vunpack.c.h.b16 %v66
    %v216 = vunpack.c.l.b16 %v67
    %v217 = vunpack.c.h.b16 %v67
    %v218 = vunpack.c.l.b16 %v68
    %v219 = vunpack.c.h.b16 %v68
    %v220 = vunpack.c.l.b16 %v69
    %v221 = vunpack.c.h.b16 %v69
    %v222 = vunpack.c.l.b16 %v70
    %v223 = vunpack.c.h.b16 %v70
    %v224 = vunpack.c.l.b16 %v71
    %v225 = vunpack.c.h.b16 %v71
    %v226 = vunpack.c.l.b16 %v72
    %v227 = vunpack.c.h.b16 %v72
    %v228 = vunpack.c.l.b16 %v73
    %v229 = vunpack.c.h.b16 %v73
    %v230 = vunpack.c.l.b16 %v74
    %v231 = vunpack.c.h.b16 %v74
    %v232 = vunpack.c.l.b16 %v75
    %v233 = vunpack.c.h.b16 %v75
    %v234 = vunpack.c.l.b16 %v76
    %v235 = vunpack.c.h.b16 %v76
    %v236 = vunpack.c.l.b16 %v77
    %v237 = vunpack.c.h.b16 %v77
    %v238 = vunpack.c.l.b16 %v78
    %v239 = vunpack.c.h.b16 %v78
    %v240 = vunpack.c.l.b16 %v79
    %v241 = vunpack.c.h.b16 %v79
    %v242 = vunpack.c.l.b16 %v80
    %v243 = vunpack.c.h.b16 %v80
    %v244 = vunpack.c.l.b16 %v81
    %v245 = vunpack.c.h.b16 %v81
    %v246 = vunpack.c.l.b16 %v82
    %v247 = vunpack.c.h.b16 %v82
    %v248 = vunpack.c.l.b16 %v83
    %v249 = vunpack.c.h.b16 %v83
    %v250 = vunpack.c.l.b16 %v84
    %v251 = vunpack.c.h.b16 %v84
    %v252 = vunpack.c.l.b16 %v85
    %v253 = vunpack.c.h.b16 %v85
    %v254 = vunpack.c.l.b16 %v86
    %v255 = vunpack.c.h.b16 %v86
    %v256 = vunpack.c.l.b16 %v87
    %v257 = vunpack.c.h.b16 %v87
    %v258 = vunpack.c.l.b16 %v88
    %v259 = vunpack.c.h.b16 %v88
    %v260 = vpack.c.b16 %v166, %v164
    %v261 = vpack.c.b16 %v167, %v165
    %v262 = vpack.c.b16 %v170, %v168
    %v263 = vpack.c.b16 %v171, %v169
    %v264 = vpack.c.b16 %v174, %v172
    %v265 = vpack.c.b16 %v175, %v173
    %v266 = vpack.c.b16 %v178, %v176
    %v267 = vpack.c.b16 %v179, %v177
    %v268 = vpack.c.b16 %v182, %v180
    %v269 = vpack.c.b16 %v183, %v181
    %v270 = vpack.c.b16 %v186, %v184
    %v271 = vpack.c.b16 %v187, %v185
    %v272 = vpack.c.b16 %v190, %v188
    %v273 = vpack.c.b16 %v191, %v189
    %v274 = vpack.c.b16 %v194, %v192
    %v275 = vpack.c.b16 %v195, %v193
    %v276 = vpack.c.b16 %v198, %v196
    %v277 = vpack.c.b16 %v199, %v197
    %v278 = vpack.c.b16 %v202, %v200
    %v279 = vpack.c.b16 %v203, %v201
    %v280 = vpack.c.b16 %v206, %v204
    %v281 = vpack.c.b16 %v207, %v205
    %v282 = vpack.c.b16 %v210, %v208
    %v283 = vpack.c.b16 %v211, %v209
    %v284 = vpack.c.b16 %v214, %v212
    %v285 = vpack.c.b16 %v215, %v213
    %v286 = vpack.c.b16 %v218, %v216
    %v287 = vpack.c.b16 %v219, %v217
    %v288 = vpack.c.b16 %v222, %v220
    %v289 = vpack.c.b16 %v223, %v221
    %v290 = vpack.c.b16 %v226, %v224
    %v291 = vpack.c.b16 %v227, %v225
    %v292 = vpack.c.b16 %v230, %v228
    %v293 = vpack.c.b16 %v231, %v229
    %v294 = vpack.c.b16 %v234, %v232
    %v295 = vpack.c.b16 %v235, %v233
    %v296 = vpack.c.b16 %v238, %v236
    %v297 = vpack.c.b16 %v239, %v237
    %v298 = vpack.c.b16 %v242, %v240
    %v299 = vpack.c.b16 %v243, %v241
    %v300 = vpack.c.b16 %v246, %v244
    %v301 = vpack.c.b16 %v247, %v245
    %v302 = vpack.c.b16 %v250, %v248
    %v303 = vpack.c.b16 %v251, %v249
    %v304 = vpack.c.b16 %v254, %v252
    %v305 = vpack.c.b16 %v255, %v253
    %v306 = vpack.c.b16 %v258, %v256
    %v307 = vpack.c.b16 %v259, %v257
    %356 = vmatprep.subr.bf16.mxu0 %v261
    %357 = vmatpush1.bf16.msra.mxu0 %v260
    %358 = vmatprep.subr.bf16.mxu0 %v263
    %359 = vmatpush1.bf16.msra.mxu0 %v262
    %360 = vmatprep.subr.bf16.mxu0 %v265
    %361 = vmatpush1.bf16.msra.mxu0 %v264
    %362 = vmatprep.subr.bf16.mxu0 %v267
    %363 = vmatpush1.bf16.msra.mxu0 %v266
    %364 = vmatprep.subr.bf16.mxu0 %v269
    %365 = vmatpush1.bf16.msra.mxu0 %v268
    %366 = vmatprep.subr.bf16.mxu0 %v271
    %367 = vmatpush1.bf16.msra.mxu0 %v270
    %368 = vmatprep.subr.bf16.mxu0 %v273
    %369 = vmatpush1.bf16.msra.mxu0 %v272
    %370 = vmatprep.subr.bf16.mxu0 %v275
    %371 = vmatpush1.bf16.msra.mxu0 %v274
    %372 = vmatprep.subr.bf16.mxu0 %v277
    %373 = vmatpush1.bf16.msra.mxu0 %v276
    %374 = vmatprep.subr.bf16.mxu0 %v279
    %375 = vmatpush1.bf16.msra.mxu0 %v278
    %376 = vmatprep.subr.bf16.mxu0 %v281
    %377 = vmatpush1.bf16.msra.mxu0 %v280
    %378 = vmatprep.subr.bf16.mxu0 %v283
    %379 = vmatpush1.bf16.msra.mxu0 %v282
    %380 = vmatprep.subr.bf16.mxu0 %v285
    %381 = vmatpush1.bf16.msra.mxu0 %v284
    %382 = vmatprep.subr.bf16.mxu0 %v287
    %383 = vmatpush1.bf16.msra.mxu0 %v286
    %384 = vmatprep.subr.bf16.mxu0 %v289
    %385 = vmatpush1.bf16.msra.mxu0 %v288
    %386 = vmatprep.subr.bf16.mxu0 %v291
    %387 = vmatpush1.bf16.msra.mxu0 %v290
    %388 = vmatprep.mubr.bf16.mxu0 %v111
    %389 = vmatmul.mubr.bf16.gmra.mrb[0].mxu0 %v104
    %v390 = vpop.f32.mrb[0].mxu0
    %v391 = vadd.f32 0.0, %v390
    %v392 = vpop.f32.mrb[0].mxu0
    %v393 = vadd.f32 0.0, %v392
    %v394 = vpop.f32.mrb[0].mxu0
    %v395 = vpop.f32.mrb[0].mxu0
    %396 = vdwg.mxu0
    %397 = vmatprep.subr.bf16.mxu0 %v293
    %398 = vmatpush1.bf16.msra.mxu0 %v292
    %399 = vmatprep.subr.bf16.mxu0 %v295
    %400 = vmatpush1.bf16.msra.mxu0 %v294
    %401 = vmatprep.subr.bf16.mxu0 %v297
    %402 = vmatpush1.bf16.msra.mxu0 %v296
    %403 = vmatprep.subr.bf16.mxu0 %v299
    %404 = vmatpush1.bf16.msra.mxu0 %v298
    %405 = vmatprep.subr.bf16.mxu0 %v301
    %406 = vmatpush1.bf16.msra.mxu0 %v300
    %407 = vmatprep.subr.bf16.mxu0 %v303
    %408 = vmatpush1.bf16.msra.mxu0 %v302
    %409 = vmatprep.subr.bf16.mxu0 %v305
    %410 = vmatpush1.bf16.msra.mxu0 %v304
    %411 = vmatprep.subr.bf16.mxu0 %v307
    %412 = vmatpush1.bf16.msra.mxu0 %v306
    %413 = vmatprep.subr.bf16.mxu0 0
    %414 = vmatpush1.bf16.msra.mxu0 0
    %415 = vmatprep.subr.bf16.mxu0 0
    %416 = vmatpush1.bf16.msra.mxu0 0
    %417 = vmatprep.subr.bf16.mxu0 0
    %418 = vmatpush1.bf16.msra.mxu0 0
    %419 = vmatprep.subr.bf16.mxu0 0
    %420 = vmatpush1.bf16.msra.mxu0 0
    %421 = vmatprep.subr.bf16.mxu0 0
    %422 = vmatpush1.bf16.msra.mxu0 0
    %423 = vmatprep.subr.bf16.mxu0 0
    %424 = vmatpush1.bf16.msra.mxu0 0
    %425 = vmatprep.subr.bf16.mxu0 0
    %426 = vmatpush1.bf16.msra.mxu0 0
    %427 = vmatprep.subr.bf16.mxu0 0
    %428 = vmatpush1.bf16.msra.mxu0 0
    %429 = vmatprep.mubr.bf16.mxu0 0
    %430 = vmatmul.mubr.bf16.gmra.mrb[0].mxu0 %v112
    %v431 = vpop.f32.mrb[0].mxu0
    %v432 = vadd.f32 %v391, %v431
    %v433 = vpop.f32.mrb[0].mxu0
    %v434 = vadd.f32 %v393, %v433
    %v435 = vpop.f32.mrb[0].mxu0
    %v436 = vpop.f32.mrb[0].mxu0
    %437 = vdwg.mxu0
    %439 = vrot.lane.b32.xlu0 %v432, 64
    %v440 = vpop.permute.xlu0 %439
    %v442 = vmax.f32 %v432, %v440
    %444 = vrot.lane.b32.xlu0 %v434, 64
    %v445 = vpop.permute.xlu0 %444
    %v447 = vmax.f32 %v434, %v445
    %v448 = vmax.f32 %v442, %v447
    %v449 = vld [vmem:[%s2] sm:$0x1]
    %v451 = vlaneseq
    %v452 = vshrl.u32 %v451, 7
    %v453 = vsub.s32 0, %v452
    %v454 = vrot.slane %v449, %v453
    %v456 = vadd.f32 %v448, %v454
    %v457 = vmax.f32 %v456, 0.0
    %v458 = vpack.c.bf16 %v457, %v457
    %v459 = vld [vmem:[%s3] sm:$0xff]
    %v460 = vld [vmem:[%s3 + $0x8] sm:$0xff]
    %v461 = vld [vmem:[%s3 + $0x10] sm:$0xff]
    %v462 = vld [vmem:[%s3 + $0x18] sm:$0xff]
    %v463 = vld [vmem:[%s3 + $0x20] sm:$0xff]
    %v464 = vld [vmem:[%s3 + $0x28] sm:$0xff]
    %v465 = vld [vmem:[%s3 + $0x30] sm:$0xff]
    %v466 = vld [vmem:[%s3 + $0x38] sm:$0xff]
    %v467 = vld [vmem:[%s3 + $0x40] sm:$0xff]
    %v468 = vld [vmem:[%s3 + $0x48] sm:$0xff]
    %v469 = vld [vmem:[%s3 + $0x50] sm:$0xff]
    %v470 = vld [vmem:[%s3 + $0x58] sm:$0xff]
    %v471 = vld [vmem:[%s3 + $0x60] sm:$0xff]
    %v472 = vld [vmem:[%s3 + $0x68] sm:$0xff]
    %v473 = vld [vmem:[%s3 + $0x70] sm:$0xff]
    %v474 = vld [vmem:[%s3 + $0x78] sm:$0xff]
    %v475 = vld [vmem:[%s3 + $0x80] sm:$0xff]
    %v476 = vld [vmem:[%s3 + $0x88] sm:$0xff]
    %v477 = vld [vmem:[%s3 + $0x90] sm:$0xff]
    %v478 = vld [vmem:[%s3 + $0x98] sm:$0xff]
    %v479 = vld [vmem:[%s3 + $0xa0] sm:$0xff]
    %v480 = vld [vmem:[%s3 + $0xa8] sm:$0xff]
    %v481 = vld [vmem:[%s3 + $0xb0] sm:$0xff]
    %v482 = vld [vmem:[%s3 + $0xb8] sm:$0xff]
    %v483 = vld [vmem:[%s3 + $0xc0] sm:$0xff]
    %v484 = vld [vmem:[%s3 + $0xc8] sm:$0xff]
    %v485 = vld [vmem:[%s3 + $0xd0] sm:$0xff]
    %v486 = vld [vmem:[%s3 + $0xd8] sm:$0xff]
    %v487 = vld [vmem:[%s3 + $0xe0] sm:$0xff]
    %v488 = vld [vmem:[%s3 + $0xe8] sm:$0xff]
    %v489 = vld [vmem:[%s3 + $0xf0] sm:$0xff]
    %v490 = vld [vmem:[%s3 + $0xf8] sm:$0xff]
    %v491 = vld [vmem:[%s3 + $0x100] sm:$0xff]
    %v492 = vld [vmem:[%s3 + $0x108] sm:$0xff]
    %v493 = vld [vmem:[%s3 + $0x110] sm:$0xff]
    %v494 = vld [vmem:[%s3 + $0x118] sm:$0xff]
    %v495 = vld [vmem:[%s3 + $0x120] sm:$0xff]
    %v496 = vld [vmem:[%s3 + $0x128] sm:$0xff]
    %v497 = vld [vmem:[%s3 + $0x130] sm:$0xff]
    %v498 = vld [vmem:[%s3 + $0x138] sm:$0xff]
    %v499 = vld [vmem:[%s3 + $0x140] sm:$0xff]
    %v500 = vld [vmem:[%s3 + $0x148] sm:$0xff]
    %v501 = vld [vmem:[%s3 + $0x150] sm:$0xff]
    %v502 = vld [vmem:[%s3 + $0x158] sm:$0xff]
    %v503 = vld [vmem:[%s3 + $0x160] sm:$0xff]
    %v504 = vld [vmem:[%s3 + $0x168] sm:$0xff]
    %v505 = vld [vmem:[%s3 + $0x170] sm:$0xff]
    %v506 = vld [vmem:[%s3 + $0x178] sm:$0xff]
    %v507 = vld [vmem:[%s3 + $0x180] sm:$0xff]
    %v508 = vld [vmem:[%s3 + $0x188] sm:$0xff]
    %v509 = vld [vmem:[%s3 + $0x190] sm:$0xff]
    %v510 = vld [vmem:[%s3 + $0x198] sm:$0xff]
    %v511 = vld [vmem:[%s3 + $0x1a0] sm:$0xff]
    %v512 = vld [vmem:[%s3 + $0x1a8] sm:$0xff]
    %v513 = vld [vmem:[%s3 + $0x1b0] sm:$0xff]
    %v514 = vld [vmem:[%s3 + $0x1b8] sm:$0xff]
    %v515 = vld [vmem:[%s3 + $0x1c0] sm:$0xff]
    %v516 = vld [vmem:[%s3 + $0x1c8] sm:$0xff]
    %v517 = vld [vmem:[%s3 + $0x1d0] sm:$0xff]
    %v518 = vld [vmem:[%s3 + $0x1d8] sm:$0xff]
    %v519 = vld [vmem:[%s3 + $0x1e0] sm:$0xff]
    %v520 = vld [vmem:[%s3 + $0x1e8] sm:$0xff]
    %v521 = vld [vmem:[%s3 + $0x1f0] sm:$0xff]
    %v522 = vld [vmem:[%s3 + $0x1f8] sm:$0xff]
    %v523 = vld [vmem:[%s4] sm:$0xff]
    %v524 = vld [vmem:[%s4 + $0x8] sm:$0xff]
    %v527 = vlaneseq
    %v528 = vshrl.u32 %v527, 7
    %v529 = vsub.s32 0, %v528
    %v530 = vrot.slane %v523, %v529
    %v531 = vlaneseq
    %v532 = vshrl.u32 %v531, 7
    %v533 = vsub.s32 1, %v532
    %v534 = vrot.slane %v523, %v533
    %v535 = vlaneseq
    %v536 = vshrl.u32 %v535, 7
    %v537 = vsub.s32 2, %v536
    %v538 = vrot.slane %v523, %v537
    %v539 = vlaneseq
    %v540 = vshrl.u32 %v539, 7
    %v541 = vsub.s32 3, %v540
    %v542 = vrot.slane %v523, %v541
    %v543 = vlaneseq
    %v544 = vshrl.u32 %v543, 7
    %v545 = vsub.s32 4, %v544
    %v546 = vrot.slane %v523, %v545
    %v547 = vlaneseq
    %v548 = vshrl.u32 %v547, 7
    %v549 = vsub.s32 5, %v548
    %v550 = vrot.slane %v523, %v549
    %v551 = vlaneseq
    %v552 = vshrl.u32 %v551, 7
    %v553 = vsub.s32 6, %v552
    %v554 = vrot.slane %v523, %v553
    %v555 = vlaneseq
    %v556 = vshrl.u32 %v555, 7
    %v557 = vsub.s32 7, %v556
    %v558 = vrot.slane %v523, %v557
    %v559 = vlaneseq
    %v560 = vshrl.u32 %v559, 7
    %v561 = vsub.s32 0, %v560
    %v562 = vrot.slane %v524, %v561
    %v563 = vlaneseq
    %v564 = vshrl.u32 %v563, 7
    %v565 = vsub.s32 1, %v564
    %v566 = vrot.slane %v524, %v565
    %v567 = vlaneseq
    %v568 = vshrl.u32 %v567, 7
    %v569 = vsub.s32 2, %v568
    %v570 = vrot.slane %v524, %v569
    %v571 = vlaneseq
    %v572 = vshrl.u32 %v571, 7
    %v573 = vsub.s32 3, %v572
    %v574 = vrot.slane %v524, %v573
    %v575 = vlaneseq
    %v576 = vshrl.u32 %v575, 7
    %v577 = vsub.s32 4, %v576
    %v578 = vrot.slane %v524, %v577
    %v579 = vlaneseq
    %v580 = vshrl.u32 %v579, 7
    %v581 = vsub.s32 5, %v580
    %v582 = vrot.slane %v524, %v581
    %v583 = vlaneseq
    %v584 = vshrl.u32 %v583, 7
    %v585 = vsub.s32 6, %v584
    %v586 = vrot.slane %v524, %v585
    %v587 = vlaneseq
    %v588 = vshrl.u32 %v587, 7
    %v589 = vsub.s32 7, %v588
    %v590 = vrot.slane %v524, %v589
    %v671 = vunpack.c.l.b16 %v459
    %v672 = vunpack.c.h.b16 %v459
    %v673 = vunpack.c.l.b16 %v460
    %v674 = vunpack.c.h.b16 %v460
    %v675 = vunpack.c.l.b16 %v461
    %v676 = vunpack.c.h.b16 %v461
    %v677 = vunpack.c.l.b16 %v462
    %v678 = vunpack.c.h.b16 %v462
    %v679 = vunpack.c.l.b16 %v463
    %v680 = vunpack.c.h.b16 %v463
    %v681 = vunpack.c.l.b16 %v464
    %v682 = vunpack.c.h.b16 %v464
    %v683 = vunpack.c.l.b16 %v465
    %v684 = vunpack.c.h.b16 %v465
    %v685 = vunpack.c.l.b16 %v466
    %v686 = vunpack.c.h.b16 %v466
    %v687 = vunpack.c.l.b16 %v467
    %v688 = vunpack.c.h.b16 %v467
    %v689 = vunpack.c.l.b16 %v468
    %v690 = vunpack.c.h.b16 %v468
    %v691 = vunpack.c.l.b16 %v469
    %v692 = vunpack.c.h.b16 %v469
    %v693 = vunpack.c.l.b16 %v470
    %v694 = vunpack.c.h.b16 %v470
    %v695 = vunpack.c.l.b16 %v471
    %v696 = vunpack.c.h.b16 %v471
    %v697 = vunpack.c.l.b16 %v472
    %v698 = vunpack.c.h.b16 %v472
    %v699 = vunpack.c.l.b16 %v473
    %v700 = vunpack.c.h.b16 %v473
    %v701 = vunpack.c.l.b16 %v474
    %v702 = vunpack.c.h.b16 %v474
    %v703 = vunpack.c.l.b16 %v475
    %v704 = vunpack.c.h.b16 %v475
    %v705 = vunpack.c.l.b16 %v476
    %v706 = vunpack.c.h.b16 %v476
    %v707 = vunpack.c.l.b16 %v477
    %v708 = vunpack.c.h.b16 %v477
    %v709 = vunpack.c.l.b16 %v478
    %v710 = vunpack.c.h.b16 %v478
    %v711 = vunpack.c.l.b16 %v479
    %v712 = vunpack.c.h.b16 %v479
    %v713 = vunpack.c.l.b16 %v480
    %v714 = vunpack.c.h.b16 %v480
    %v715 = vunpack.c.l.b16 %v481
    %v716 = vunpack.c.h.b16 %v481
    %v717 = vunpack.c.l.b16 %v482
    %v718 = vunpack.c.h.b16 %v482
    %v719 = vunpack.c.l.b16 %v483
    %v720 = vunpack.c.h.b16 %v483
    %v721 = vunpack.c.l.b16 %v484
    %v722 = vunpack.c.h.b16 %v484
    %v723 = vunpack.c.l.b16 %v485
    %v724 = vunpack.c.h.b16 %v485
    %v725 = vunpack.c.l.b16 %v486
    %v726 = vunpack.c.h.b16 %v486
    %v727 = vunpack.c.l.b16 %v487
    %v728 = vunpack.c.h.b16 %v487
    %v729 = vunpack.c.l.b16 %v488
    %v730 = vunpack.c.h.b16 %v488
    %v731 = vunpack.c.l.b16 %v489
    %v732 = vunpack.c.h.b16 %v489
    %v733 = vunpack.c.l.b16 %v490
    %v734 = vunpack.c.h.b16 %v490
    %v735 = vunpack.c.l.b16 %v491
    %v736 = vunpack.c.h.b16 %v491
    %v737 = vunpack.c.l.b16 %v492
    %v738 = vunpack.c.h.b16 %v492
    %v739 = vunpack.c.l.b16 %v493
    %v740 = vunpack.c.h.b16 %v493
    %v741 = vunpack.c.l.b16 %v494
    %v742 = vunpack.c.h.b16 %v494
    %v743 = vunpack.c.l.b16 %v495
    %v744 = vunpack.c.h.b16 %v495
    %v745 = vunpack.c.l.b16 %v496
    %v746 = vunpack.c.h.b16 %v496
    %v747 = vunpack.c.l.b16 %v497
    %v748 = vunpack.c.h.b16 %v497
    %v749 = vunpack.c.l.b16 %v498
    %v750 = vunpack.c.h.b16 %v498
    %v751 = vunpack.c.l.b16 %v499
    %v752 = vunpack.c.h.b16 %v499
    %v753 = vunpack.c.l.b16 %v500
    %v754 = vunpack.c.h.b16 %v500
    %v755 = vunpack.c.l.b16 %v501
    %v756 = vunpack.c.h.b16 %v501
    %v757 = vunpack.c.l.b16 %v502
    %v758 = vunpack.c.h.b16 %v502
    %v759 = vunpack.c.l.b16 %v503
    %v760 = vunpack.c.h.b16 %v503
    %v761 = vunpack.c.l.b16 %v504
    %v762 = vunpack.c.h.b16 %v504
    %v763 = vunpack.c.l.b16 %v505
    %v764 = vunpack.c.h.b16 %v505
    %v765 = vunpack.c.l.b16 %v506
    %v766 = vunpack.c.h.b16 %v506
    %v767 = vunpack.c.l.b16 %v507
    %v768 = vunpack.c.h.b16 %v507
    %v769 = vunpack.c.l.b16 %v508
    %v770 = vunpack.c.h.b16 %v508
    %v771 = vunpack.c.l.b16 %v509
    %v772 = vunpack.c.h.b16 %v509
    %v773 = vunpack.c.l.b16 %v510
    %v774 = vunpack.c.h.b16 %v510
    %v775 = vunpack.c.l.b16 %v511
    %v776 = vunpack.c.h.b16 %v511
    %v777 = vunpack.c.l.b16 %v512
    %v778 = vunpack.c.h.b16 %v512
    %v779 = vunpack.c.l.b16 %v513
    %v780 = vunpack.c.h.b16 %v513
    %v781 = vunpack.c.l.b16 %v514
    %v782 = vunpack.c.h.b16 %v514
    %v783 = vunpack.c.l.b16 %v515
    %v784 = vunpack.c.h.b16 %v515
    %v785 = vunpack.c.l.b16 %v516
    %v786 = vunpack.c.h.b16 %v516
    %v787 = vunpack.c.l.b16 %v517
    %v788 = vunpack.c.h.b16 %v517
    %v789 = vunpack.c.l.b16 %v518
    %v790 = vunpack.c.h.b16 %v518
    %v791 = vunpack.c.l.b16 %v519
    %v792 = vunpack.c.h.b16 %v519
    %v793 = vunpack.c.l.b16 %v520
    %v794 = vunpack.c.h.b16 %v520
    %v795 = vunpack.c.l.b16 %v521
    %v796 = vunpack.c.h.b16 %v521
    %v797 = vunpack.c.l.b16 %v522
    %v798 = vunpack.c.h.b16 %v522
    %v799 = vpack.c.b16 %v687, %v671
    %v800 = vpack.c.b16 %v688, %v672
    %v801 = vpack.c.b16 %v689, %v673
    %v802 = vpack.c.b16 %v690, %v674
    %v803 = vpack.c.b16 %v691, %v675
    %v804 = vpack.c.b16 %v692, %v676
    %v805 = vpack.c.b16 %v693, %v677
    %v806 = vpack.c.b16 %v694, %v678
    %v807 = vpack.c.b16 %v695, %v679
    %v808 = vpack.c.b16 %v696, %v680
    %v809 = vpack.c.b16 %v697, %v681
    %v810 = vpack.c.b16 %v698, %v682
    %v811 = vpack.c.b16 %v699, %v683
    %v812 = vpack.c.b16 %v700, %v684
    %v813 = vpack.c.b16 %v701, %v685
    %v814 = vpack.c.b16 %v702, %v686
    %v815 = vpack.c.b16 %v719, %v703
    %v816 = vpack.c.b16 %v720, %v704
    %v817 = vpack.c.b16 %v721, %v705
    %v818 = vpack.c.b16 %v722, %v706
    %v819 = vpack.c.b16 %v723, %v707
    %v820 = vpack.c.b16 %v724, %v708
    %v821 = vpack.c.b16 %v725, %v709
    %v822 = vpack.c.b16 %v726, %v710
    %v823 = vpack.c.b16 %v727, %v711
    %v824 = vpack.c.b16 %v728, %v712
    %v825 = vpack.c.b16 %v729, %v713
    %v826 = vpack.c.b16 %v730, %v714
    %v827 = vpack.c.b16 %v731, %v715
    %v828 = vpack.c.b16 %v732, %v716
    %v829 = vpack.c.b16 %v733, %v717
    %v830 = vpack.c.b16 %v734, %v718
    %v831 = vpack.c.b16 %v751, %v735
    %v832 = vpack.c.b16 %v752, %v736
    %v833 = vpack.c.b16 %v753, %v737
    %v834 = vpack.c.b16 %v754, %v738
    %v835 = vpack.c.b16 %v755, %v739
    %v836 = vpack.c.b16 %v756, %v740
    %v837 = vpack.c.b16 %v757, %v741
    %v838 = vpack.c.b16 %v758, %v742
    %v839 = vpack.c.b16 %v759, %v743
    %v840 = vpack.c.b16 %v760, %v744
    %v841 = vpack.c.b16 %v761, %v745
    %v842 = vpack.c.b16 %v762, %v746
    %v843 = vpack.c.b16 %v763, %v747
    %v844 = vpack.c.b16 %v764, %v748
    %v845 = vpack.c.b16 %v765, %v749
    %v846 = vpack.c.b16 %v766, %v750
    %v847 = vpack.c.b16 %v783, %v767
    %v848 = vpack.c.b16 %v784, %v768
    %v849 = vpack.c.b16 %v785, %v769
    %v850 = vpack.c.b16 %v786, %v770
    %v851 = vpack.c.b16 %v787, %v771
    %v852 = vpack.c.b16 %v788, %v772
    %v853 = vpack.c.b16 %v789, %v773
    %v854 = vpack.c.b16 %v790, %v774
    %v855 = vpack.c.b16 %v791, %v775
    %v856 = vpack.c.b16 %v792, %v776
    %v857 = vpack.c.b16 %v793, %v777
    %v858 = vpack.c.b16 %v794, %v778
    %v859 = vpack.c.b16 %v795, %v779
    %v860 = vpack.c.b16 %v796, %v780
    %v861 = vpack.c.b16 %v797, %v781
    %v862 = vpack.c.b16 %v798, %v782
    %vm927 = vcmask 523264
    %v929 = vsel %vm927, %v458, 0
    %931 = vmatprep.subr.bf16.mxu0 %v800
    %932 = vmatpush1.bf16.msra.mxu0 %v799
    %933 = vmatprep.subr.bf16.mxu0 %v816
    %934 = vmatpush1.bf16.msra.mxu0 %v815
    %935 = vmatprep.subr.bf16.mxu0 %v832
    %936 = vmatpush1.bf16.msra.mxu0 %v831
    %937 = vmatprep.subr.bf16.mxu0 %v848
    %938 = vmatpush1.bf16.msra.mxu0 %v847
    %939 = vmatprep.subr.bf16.mxu0 0
    %940 = vmatpush1.bf16.msra.mxu0 0
    %941 = vmatprep.subr.bf16.mxu0 0
    %942 = vmatpush1.bf16.msra.mxu0 0
    %943 = vmatprep.subr.bf16.mxu0 0
    %944 = vmatpush1.bf16.msra.mxu0 0
    %945 = vmatprep.subr.bf16.mxu0 0
    %946 = vmatpush1.bf16.msra.mxu0 0
    %947 = vmatprep.subr.bf16.mxu0 0
    %948 = vmatpush1.bf16.msra.mxu0 0
    %949 = vmatprep.subr.bf16.mxu0 0
    %950 = vmatpush1.bf16.msra.mxu0 0
    %951 = vmatprep.subr.bf16.mxu0 0
    %952 = vmatpush1.bf16.msra.mxu0 0
    %953 = vmatprep.subr.bf16.mxu0 0
    %954 = vmatpush1.bf16.msra.mxu0 0
    %955 = vmatprep.subr.bf16.mxu0 0
    %956 = vmatpush1.bf16.msra.mxu0 0
    %957 = vmatprep.subr.bf16.mxu0 0
    %958 = vmatpush1.bf16.msra.mxu0 0
    %959 = vmatprep.subr.bf16.mxu0 0
    %960 = vmatpush1.bf16.msra.mxu0 0
    %961 = vmatprep.subr.bf16.mxu0 0
    %962 = vmatpush1.bf16.msra.mxu0 0
    %963 = vmatprep.mubr.bf16.mxu0 0
    %964 = vmatmul.mubr.bf16.gmra.mrb[0].mxu0 %v929
    %v965 = vpop.f32.mrb[0].mxu0
    %v966 = vadd.f32 %v530, %v965
    %v967 = vpop.f32.mrb[0].mxu0
    %v968 = vadd.f32 %v534, %v967
    %v969 = vpop.f32.mrb[0].mxu0
    %v970 = vpop.f32.mrb[0].mxu0
    %971 = vdwg.mxu0
    %972 = vmatprep.subr.bf16.mxu0 %v802
    %973 = vmatpush1.bf16.msra.mxu0 %v801
    %974 = vmatprep.subr.bf16.mxu0 %v818
    %975 = vmatpush1.bf16.msra.mxu0 %v817
    %976 = vmatprep.subr.bf16.mxu0 %v834
    %977 = vmatpush1.bf16.msra.mxu0 %v833
    %978 = vmatprep.subr.bf16.mxu0 %v850
    %979 = vmatpush1.bf16.msra.mxu0 %v849
    %980 = vmatprep.subr.bf16.mxu0 0
    %981 = vmatpush1.bf16.msra.mxu0 0
    %982 = vmatprep.subr.bf16.mxu0 0
    %983 = vmatpush1.bf16.msra.mxu0 0
    %984 = vmatprep.subr.bf16.mxu0 0
    %985 = vmatpush1.bf16.msra.mxu0 0
    %986 = vmatprep.subr.bf16.mxu0 0
    %987 = vmatpush1.bf16.msra.mxu0 0
    %988 = vmatprep.subr.bf16.mxu0 0
    %989 = vmatpush1.bf16.msra.mxu0 0
    %990 = vmatprep.subr.bf16.mxu0 0
    %991 = vmatpush1.bf16.msra.mxu0 0
    %992 = vmatprep.subr.bf16.mxu0 0
    %993 = vmatpush1.bf16.msra.mxu0 0
    %994 = vmatprep.subr.bf16.mxu0 0
    %995 = vmatpush1.bf16.msra.mxu0 0
    %996 = vmatprep.subr.bf16.mxu0 0
    %997 = vmatpush1.bf16.msra.mxu0 0
    %998 = vmatprep.subr.bf16.mxu0 0
    %999 = vmatpush1.bf16.msra.mxu0 0
    %1000 = vmatprep.subr.bf16.mxu0 0
    %1001 = vmatpush1.bf16.msra.mxu0 0
    %1002 = vmatprep.subr.bf16.mxu0 0
    %1003 = vmatpush1.bf16.msra.mxu0 0
    %1004 = vmatprep.mubr.bf16.mxu0 0
    %1005 = vmatmul.mubr.bf16.gmra.mrb[0].mxu0 %v929
    %v1006 = vpop.f32.mrb[0].mxu0
    %v1007 = vadd.f32 %v538, %v1006
    %v1008 = vpop.f32.mrb[0].mxu0
    %v1009 = vadd.f32 %v542, %v1008
    %v1010 = vpop.f32.mrb[0].mxu0
    %v1011 = vpop.f32.mrb[0].mxu0
    %1012 = vdwg.mxu0
    %1013 = vmatprep.subr.bf16.mxu0 %v804
    %1014 = vmatpush1.bf16.msra.mxu0 %v803
    %1015 = vmatprep.subr.bf16.mxu0 %v820
    %1016 = vmatpush1.bf16.msra.mxu0 %v819
    %1017 = vmatprep.subr.bf16.mxu0 %v836
    %1018 = vmatpush1.bf16.msra.mxu0 %v835
    %1019 = vmatprep.subr.bf16.mxu0 %v852
    %1020 = vmatpush1.bf16.msra.mxu0 %v851
    %1021 = vmatprep.subr.bf16.mxu0 0
    %1022 = vmatpush1.bf16.msra.mxu0 0
    %1023 = vmatprep.subr.bf16.mxu0 0
    %1024 = vmatpush1.bf16.msra.mxu0 0
    %1025 = vmatprep.subr.bf16.mxu0 0
    %1026 = vmatpush1.bf16.msra.mxu0 0
    %1027 = vmatprep.subr.bf16.mxu0 0
    %1028 = vmatpush1.bf16.msra.mxu0 0
    %1029 = vmatprep.subr.bf16.mxu0 0
    %1030 = vmatpush1.bf16.msra.mxu0 0
    %1031 = vmatprep.subr.bf16.mxu0 0
    %1032 = vmatpush1.bf16.msra.mxu0 0
    %1033 = vmatprep.subr.bf16.mxu0 0
    %1034 = vmatpush1.bf16.msra.mxu0 0
    %1035 = vmatprep.subr.bf16.mxu0 0
    %1036 = vmatpush1.bf16.msra.mxu0 0
    %1037 = vmatprep.subr.bf16.mxu0 0
    %1038 = vmatpush1.bf16.msra.mxu0 0
    %1039 = vmatprep.subr.bf16.mxu0 0
    %1040 = vmatpush1.bf16.msra.mxu0 0
    %1041 = vmatprep.subr.bf16.mxu0 0
    %1042 = vmatpush1.bf16.msra.mxu0 0
    %1043 = vmatprep.subr.bf16.mxu0 0
    %1044 = vmatpush1.bf16.msra.mxu0 0
    %1045 = vmatprep.mubr.bf16.mxu0 0
    %1046 = vmatmul.mubr.bf16.gmra.mrb[0].mxu0 %v929
    %v1047 = vpop.f32.mrb[0].mxu0
    %v1048 = vadd.f32 %v546, %v1047
    %v1049 = vpop.f32.mrb[0].mxu0
    %v1050 = vadd.f32 %v550, %v1049
    %v1051 = vpop.f32.mrb[0].mxu0
    %v1052 = vpop.f32.mrb[0].mxu0
    %1053 = vdwg.mxu0
    %1054 = vmatprep.subr.bf16.mxu0 %v806
    %1055 = vmatpush1.bf16.msra.mxu0 %v805
    %1056 = vmatprep.subr.bf16.mxu0 %v822
    %1057 = vmatpush1.bf16.msra.mxu0 %v821
    %1058 = vmatprep.subr.bf16.mxu0 %v838
    %1059 = vmatpush1.bf16.msra.mxu0 %v837
    %1060 = vmatprep.subr.bf16.mxu0 %v854
    %1061 = vmatpush1.bf16.msra.mxu0 %v853
    %1062 = vmatprep.subr.bf16.mxu0 0
    %1063 = vmatpush1.bf16.msra.mxu0 0
    %1064 = vmatprep.subr.bf16.mxu0 0
    %1065 = vmatpush1.bf16.msra.mxu0 0
    %1066 = vmatprep.subr.bf16.mxu0 0
    %1067 = vmatpush1.bf16.msra.mxu0 0
    %1068 = vmatprep.subr.bf16.mxu0 0
    %1069 = vmatpush1.bf16.msra.mxu0 0
    %1070 = vmatprep.subr.bf16.mxu0 0
    %1071 = vmatpush1.bf16.msra.mxu0 0
    %1072 = vmatprep.subr.bf16.mxu0 0
    %1073 = vmatpush1.bf16.msra.mxu0 0
    %1074 = vmatprep.subr.bf16.mxu0 0
    %1075 = vmatpush1.bf16.msra.mxu0 0
    %1076 = vmatprep.subr.bf16.mxu0 0
    %1077 = vmatpush1.bf16.msra.mxu0 0
    %1078 = vmatprep.subr.bf16.mxu0 0
    %1079 = vmatpush1.bf16.msra.mxu0 0
    %1080 = vmatprep.subr.bf16.mxu0 0
    %1081 = vmatpush1.bf16.msra.mxu0 0
    %1082 = vmatprep.subr.bf16.mxu0 0
    %1083 = vmatpush1.bf16.msra.mxu0 0
    %1084 = vmatprep.subr.bf16.mxu0 0
    %1085 = vmatpush1.bf16.msra.mxu0 0
    %1086 = vmatprep.mubr.bf16.mxu0 0
    %1087 = vmatmul.mubr.bf16.gmra.mrb[0].mxu0 %v929
    %v1088 = vpop.f32.mrb[0].mxu0
    %v1089 = vadd.f32 %v554, %v1088
    %v1090 = vpop.f32.mrb[0].mxu0
    %v1091 = vadd.f32 %v558, %v1090
    %v1092 = vpop.f32.mrb[0].mxu0
    %v1093 = vpop.f32.mrb[0].mxu0
    %1094 = vdwg.mxu0
    %1095 = vmatprep.subr.bf16.mxu0 %v808
    %1096 = vmatpush1.bf16.msra.mxu0 %v807
    %1097 = vmatprep.subr.bf16.mxu0 %v824
    %1098 = vmatpush1.bf16.msra.mxu0 %v823
    %1099 = vmatprep.subr.bf16.mxu0 %v840
    %1100 = vmatpush1.bf16.msra.mxu0 %v839
    %1101 = vmatprep.subr.bf16.mxu0 %v856
    %1102 = vmatpush1.bf16.msra.mxu0 %v855
    %1103 = vmatprep.subr.bf16.mxu0 0
    %1104 = vmatpush1.bf16.msra.mxu0 0
    %1105 = vmatprep.subr.bf16.mxu0 0
    %1106 = vmatpush1.bf16.msra.mxu0 0
    %1107 = vmatprep.subr.bf16.mxu0 0
    %1108 = vmatpush1.bf16.msra.mxu0 0
    %1109 = vmatprep.subr.bf16.mxu0 0
    %1110 = vmatpush1.bf16.msra.mxu0 0
    %1111 = vmatprep.subr.bf16.mxu0 0
    %1112 = vmatpush1.bf16.msra.mxu0 0
    %1113 = vmatprep.subr.bf16.mxu0 0
    %1114 = vmatpush1.bf16.msra.mxu0 0
    %1115 = vmatprep.subr.bf16.mxu0 0
    %1116 = vmatpush1.bf16.msra.mxu0 0
    %1117 = vmatprep.subr.bf16.mxu0 0
    %1118 = vmatpush1.bf16.msra.mxu0 0
    %1119 = vmatprep.subr.bf16.mxu0 0
    %1120 = vmatpush1.bf16.msra.mxu0 0
    %1121 = vmatprep.subr.bf16.mxu0 0
    %1122 = vmatpush1.bf16.msra.mxu0 0
    %1123 = vmatprep.subr.bf16.mxu0 0
    %1124 = vmatpush1.bf16.msra.mxu0 0
    %1125 = vmatprep.subr.bf16.mxu0 0
    %1126 = vmatpush1.bf16.msra.mxu0 0
    %1127 = vmatprep.mubr.bf16.mxu0 0
    %1128 = vmatmul.mubr.bf16.gmra.mrb[0].mxu0 %v929
    %v1129 = vpop.f32.mrb[0].mxu0
    %v1130 = vadd.f32 %v562, %v1129
    %v1131 = vpop.f32.mrb[0].mxu0
    %v1132 = vadd.f32 %v566, %v1131
    %v1133 = vpop.f32.mrb[0].mxu0
    %v1134 = vpop.f32.mrb[0].mxu0
    %1135 = vdwg.mxu0
    %1136 = vmatprep.subr.bf16.mxu0 %v810
    %1137 = vmatpush1.bf16.msra.mxu0 %v809
    %1138 = vmatprep.subr.bf16.mxu0 %v826
    %1139 = vmatpush1.bf16.msra.mxu0 %v825
    %1140 = vmatprep.subr.bf16.mxu0 %v842
    %1141 = vmatpush1.bf16.msra.mxu0 %v841
    %1142 = vmatprep.subr.bf16.mxu0 %v858
    %1143 = vmatpush1.bf16.msra.mxu0 %v857
    %1144 = vmatprep.subr.bf16.mxu0 0
    %1145 = vmatpush1.bf16.msra.mxu0 0
    %1146 = vmatprep.subr.bf16.mxu0 0
    %1147 = vmatpush1.bf16.msra.mxu0 0
    %1148 = vmatprep.subr.bf16.mxu0 0
    %1149 = vmatpush1.bf16.msra.mxu0 0
    %1150 = vmatprep.subr.bf16.mxu0 0
    %1151 = vmatpush1.bf16.msra.mxu0 0
    %1152 = vmatprep.subr.bf16.mxu0 0
    %1153 = vmatpush1.bf16.msra.mxu0 0
    %1154 = vmatprep.subr.bf16.mxu0 0
    %1155 = vmatpush1.bf16.msra.mxu0 0
    %1156 = vmatprep.subr.bf16.mxu0 0
    %1157 = vmatpush1.bf16.msra.mxu0 0
    %1158 = vmatprep.subr.bf16.mxu0 0
    %1159 = vmatpush1.bf16.msra.mxu0 0
    %1160 = vmatprep.subr.bf16.mxu0 0
    %1161 = vmatpush1.bf16.msra.mxu0 0
    %1162 = vmatprep.subr.bf16.mxu0 0
    %1163 = vmatpush1.bf16.msra.mxu0 0
    %1164 = vmatprep.subr.bf16.mxu0 0
    %1165 = vmatpush1.bf16.msra.mxu0 0
    %1166 = vmatprep.subr.bf16.mxu0 0
    %1167 = vmatpush1.bf16.msra.mxu0 0
    %1168 = vmatprep.mubr.bf16.mxu0 0
    %1169 = vmatmul.mubr.bf16.gmra.mrb[0].mxu0 %v929
    %v1170 = vpop.f32.mrb[0].mxu0
    %v1171 = vadd.f32 %v570, %v1170
    %v1172 = vpop.f32.mrb[0].mxu0
    %v1173 = vadd.f32 %v574, %v1172
    %v1174 = vpop.f32.mrb[0].mxu0
    %v1175 = vpop.f32.mrb[0].mxu0
    %1176 = vdwg.mxu0
    %1177 = vmatprep.subr.bf16.mxu0 %v812
    %1178 = vmatpush1.bf16.msra.mxu0 %v811
    %1179 = vmatprep.subr.bf16.mxu0 %v828
    %1180 = vmatpush1.bf16.msra.mxu0 %v827
    %1181 = vmatprep.subr.bf16.mxu0 %v844
    %1182 = vmatpush1.bf16.msra.mxu0 %v843
    %1183 = vmatprep.subr.bf16.mxu0 %v860
    %1184 = vmatpush1.bf16.msra.mxu0 %v859
    %1185 = vmatprep.subr.bf16.mxu0 0
    %1186 = vmatpush1.bf16.msra.mxu0 0
    %1187 = vmatprep.subr.bf16.mxu0 0
    %1188 = vmatpush1.bf16.msra.mxu0 0
    %1189 = vmatprep.subr.bf16.mxu0 0
    %1190 = vmatpush1.bf16.msra.mxu0 0
    %1191 = vmatprep.subr.bf16.mxu0 0
    %1192 = vmatpush1.bf16.msra.mxu0 0
    %1193 = vmatprep.subr.bf16.mxu0 0
    %1194 = vmatpush1.bf16.msra.mxu0 0
    %1195 = vmatprep.subr.bf16.mxu0 0
    %1196 = vmatpush1.bf16.msra.mxu0 0
    %1197 = vmatprep.subr.bf16.mxu0 0
    %1198 = vmatpush1.bf16.msra.mxu0 0
    %1199 = vmatprep.subr.bf16.mxu0 0
    %1200 = vmatpush1.bf16.msra.mxu0 0
    %1201 = vmatprep.subr.bf16.mxu0 0
    %1202 = vmatpush1.bf16.msra.mxu0 0
    %1203 = vmatprep.subr.bf16.mxu0 0
    %1204 = vmatpush1.bf16.msra.mxu0 0
    %1205 = vmatprep.subr.bf16.mxu0 0
    %1206 = vmatpush1.bf16.msra.mxu0 0
    %1207 = vmatprep.subr.bf16.mxu0 0
    %1208 = vmatpush1.bf16.msra.mxu0 0
    %1209 = vmatprep.mubr.bf16.mxu0 0
    %1210 = vmatmul.mubr.bf16.gmra.mrb[0].mxu0 %v929
    %v1211 = vpop.f32.mrb[0].mxu0
    %v1212 = vadd.f32 %v578, %v1211
    %v1213 = vpop.f32.mrb[0].mxu0
    %v1214 = vadd.f32 %v582, %v1213
    %v1215 = vpop.f32.mrb[0].mxu0
    %v1216 = vpop.f32.mrb[0].mxu0
    %1217 = vdwg.mxu0
    %1218 = vmatprep.subr.bf16.mxu0 %v814
    %1219 = vmatpush1.bf16.msra.mxu0 %v813
    %1220 = vmatprep.subr.bf16.mxu0 %v830
    %1221 = vmatpush1.bf16.msra.mxu0 %v829
    %1222 = vmatprep.subr.bf16.mxu0 %v846
    %1223 = vmatpush1.bf16.msra.mxu0 %v845
    %1224 = vmatprep.subr.bf16.mxu0 %v862
    %1225 = vmatpush1.bf16.msra.mxu0 %v861
    %1226 = vmatprep.subr.bf16.mxu0 0
    %1227 = vmatpush1.bf16.msra.mxu0 0
    %1228 = vmatprep.subr.bf16.mxu0 0
    %1229 = vmatpush1.bf16.msra.mxu0 0
    %1230 = vmatprep.subr.bf16.mxu0 0
    %1231 = vmatpush1.bf16.msra.mxu0 0
    %1232 = vmatprep.subr.bf16.mxu0 0
    %1233 = vmatpush1.bf16.msra.mxu0 0
    %1234 = vmatprep.subr.bf16.mxu0 0
    %1235 = vmatpush1.bf16.msra.mxu0 0
    %1236 = vmatprep.subr.bf16.mxu0 0
    %1237 = vmatpush1.bf16.msra.mxu0 0
    %1238 = vmatprep.subr.bf16.mxu0 0
    %1239 = vmatpush1.bf16.msra.mxu0 0
    %1240 = vmatprep.subr.bf16.mxu0 0
    %1241 = vmatpush1.bf16.msra.mxu0 0
    %1242 = vmatprep.subr.bf16.mxu0 0
    %1243 = vmatpush1.bf16.msra.mxu0 0
    %1244 = vmatprep.subr.bf16.mxu0 0
    %1245 = vmatpush1.bf16.msra.mxu0 0
    %1246 = vmatprep.subr.bf16.mxu0 0
    %1247 = vmatpush1.bf16.msra.mxu0 0
    %1248 = vmatprep.subr.bf16.mxu0 0
    %1249 = vmatpush1.bf16.msra.mxu0 0
    %1250 = vmatprep.mubr.bf16.mxu0 0
    %1251 = vmatmul.mubr.bf16.gmra.mrb[0].mxu0 %v929
    %v1252 = vpop.f32.mrb[0].mxu0
    %v1253 = vadd.f32 %v586, %v1252
    %v1254 = vpop.f32.mrb[0].mxu0
    %v1255 = vadd.f32 %v590, %v1254
    %v1256 = vpop.f32.mrb[0].mxu0
    %v1257 = vpop.f32.mrb[0].mxu0
    %1258 = vdwg.mxu0
    %v1259 = vpack.c.bf16 %v966, %v966
    %v1260 = vpack.c.bf16 %v968, %v968
    %v1261 = vpack.c.bf16 %v1007, %v1007
    %v1262 = vpack.c.bf16 %v1009, %v1009
    %v1263 = vpack.c.bf16 %v1048, %v1048
    %v1264 = vpack.c.bf16 %v1050, %v1050
    %v1265 = vpack.c.bf16 %v1089, %v1089
    %v1266 = vpack.c.bf16 %v1091, %v1091
    %v1267 = vpack.c.bf16 %v1130, %v1130
    %v1268 = vpack.c.bf16 %v1132, %v1132
    %v1269 = vpack.c.bf16 %v1171, %v1171
    %v1270 = vpack.c.bf16 %v1173, %v1173
    %v1271 = vpack.c.bf16 %v1212, %v1212
    %v1272 = vpack.c.bf16 %v1214, %v1214
    %v1273 = vpack.c.bf16 %v1253, %v1253
    %v1274 = vpack.c.bf16 %v1255, %v1255
    %v1275 = vld [vmem:[%s5] sm:$0xf]
    %v1276 = vld [vmem:[%s5 + $0x4] sm:$0xf]
    %v1277 = vld [vmem:[%s5 + $0x8] sm:$0xf]
    %v1278 = vld [vmem:[%s5 + $0xc] sm:$0xf]
    %v1279 = vld [vmem:[%s5 + $0x10] sm:$0xf]
    %v1280 = vld [vmem:[%s5 + $0x14] sm:$0xf]
    %v1281 = vld [vmem:[%s5 + $0x18] sm:$0xf]
    %v1282 = vld [vmem:[%s5 + $0x1c] sm:$0xf]
    %v1283 = vld [vmem:[%s5 + $0x20] sm:$0xf]
    %v1284 = vld [vmem:[%s5 + $0x24] sm:$0xf]
    %v1285 = vld [vmem:[%s5 + $0x28] sm:$0xf]
    %v1286 = vld [vmem:[%s5 + $0x2c] sm:$0xf]
    %v1287 = vld [vmem:[%s5 + $0x30] sm:$0xf]
    %v1288 = vld [vmem:[%s5 + $0x34] sm:$0xf]
    %v1289 = vld [vmem:[%s5 + $0x38] sm:$0xf]
    %v1290 = vld [vmem:[%s5 + $0x3c] sm:$0xf]
    %v1291 = vld [vmem:[%s5 + $0x40] sm:$0xf]
    %v1292 = vld [vmem:[%s5 + $0x44] sm:$0xf]
    %v1293 = vld [vmem:[%s5 + $0x48] sm:$0xf]
    %v1294 = vld [vmem:[%s5 + $0x4c] sm:$0xf]
    %v1295 = vld [vmem:[%s5 + $0x50] sm:$0xf]
    %v1296 = vld [vmem:[%s5 + $0x54] sm:$0xf]
    %v1297 = vld [vmem:[%s5 + $0x58] sm:$0xf]
    %v1298 = vld [vmem:[%s5 + $0x5c] sm:$0xf]
    %v1299 = vld [vmem:[%s5 + $0x60] sm:$0xf]
    %v1300 = vld [vmem:[%s5 + $0x64] sm:$0xf]
    %v1301 = vld [vmem:[%s5 + $0x68] sm:$0xf]
    %v1302 = vld [vmem:[%s5 + $0x6c] sm:$0xf]
    %v1303 = vld [vmem:[%s5 + $0x70] sm:$0xf]
    %v1304 = vld [vmem:[%s5 + $0x74] sm:$0xf]
    %v1305 = vld [vmem:[%s5 + $0x78] sm:$0xf]
    %v1306 = vld [vmem:[%s5 + $0x7c] sm:$0xf]
    %v1307 = vld [vmem:[%s5 + $0x80] sm:$0xf]
    %v1308 = vld [vmem:[%s5 + $0x84] sm:$0xf]
    %v1309 = vld [vmem:[%s5 + $0x88] sm:$0xf]
    %v1310 = vld [vmem:[%s5 + $0x8c] sm:$0xf]
    %v1311 = vld [vmem:[%s5 + $0x90] sm:$0xf]
    %v1312 = vld [vmem:[%s5 + $0x94] sm:$0xf]
    %v1313 = vld [vmem:[%s5 + $0x98] sm:$0xf]
    %v1314 = vld [vmem:[%s5 + $0x9c] sm:$0xf]
    %v1315 = vld [vmem:[%s5 + $0xa0] sm:$0xf]
    %v1316 = vld [vmem:[%s5 + $0xa4] sm:$0xf]
    %v1317 = vld [vmem:[%s5 + $0xa8] sm:$0xf]
    %v1318 = vld [vmem:[%s5 + $0xac] sm:$0xf]
    %v1319 = vld [vmem:[%s5 + $0xb0] sm:$0xf]
    %v1320 = vld [vmem:[%s5 + $0xb4] sm:$0xf]
    %v1321 = vld [vmem:[%s5 + $0xb8] sm:$0xf]
    %v1322 = vld [vmem:[%s5 + $0xbc] sm:$0xf]
    %v1323 = vld [vmem:[%s5 + $0xc0] sm:$0xf]
    %v1324 = vld [vmem:[%s5 + $0xc4] sm:$0xf]
    %v1325 = vld [vmem:[%s5 + $0xc8] sm:$0xf]
    %v1326 = vld [vmem:[%s5 + $0xcc] sm:$0xf]
    %v1327 = vld [vmem:[%s5 + $0xd0] sm:$0xf]
    %v1328 = vld [vmem:[%s5 + $0xd4] sm:$0xf]
    %v1329 = vld [vmem:[%s5 + $0xd8] sm:$0xf]
    %v1330 = vld [vmem:[%s5 + $0xdc] sm:$0xf]
    %v1331 = vld [vmem:[%s5 + $0xe0] sm:$0xf]
    %v1332 = vld [vmem:[%s5 + $0xe4] sm:$0xf]
    %v1333 = vld [vmem:[%s5 + $0xe8] sm:$0xf]
    %v1334 = vld [vmem:[%s5 + $0xec] sm:$0xf]
    %v1335 = vld [vmem:[%s5 + $0xf0] sm:$0xf]
    %v1336 = vld [vmem:[%s5 + $0xf4] sm:$0xf]
    %v1337 = vld [vmem:[%s5 + $0xf8] sm:$0xf]
    %v1338 = vld [vmem:[%s5 + $0xfc] sm:$0xf]
    %v1339 = vld [vmem:[%s5 + $0x100] sm:$0xf]
    %v1340 = vld [vmem:[%s5 + $0x104] sm:$0xf]
    %v1341 = vld [vmem:[%s5 + $0x108] sm:$0xf]
    %v1342 = vld [vmem:[%s5 + $0x10c] sm:$0xf]
    %v1343 = vld [vmem:[%s5 + $0x110] sm:$0xf]
    %v1344 = vld [vmem:[%s5 + $0x114] sm:$0xf]
    %v1345 = vld [vmem:[%s5 + $0x118] sm:$0xf]
    %v1346 = vld [vmem:[%s5 + $0x11c] sm:$0xf]
    %v1347 = vld [vmem:[%s5 + $0x120] sm:$0xf]
    %v1348 = vld [vmem:[%s5 + $0x124] sm:$0xf]
    %v1349 = vld [vmem:[%s5 + $0x128] sm:$0xf]
    %v1350 = vld [vmem:[%s5 + $0x12c] sm:$0xf]
    %v1351 = vld [vmem:[%s5 + $0x130] sm:$0xf]
    %v1352 = vld [vmem:[%s5 + $0x134] sm:$0xf]
    %v1353 = vld [vmem:[%s5 + $0x138] sm:$0xf]
    %v1354 = vld [vmem:[%s5 + $0x13c] sm:$0xf]
    %v1355 = vld [vmem:[%s5 + $0x140] sm:$0xf]
    %v1356 = vld [vmem:[%s5 + $0x144] sm:$0xf]
    %v1357 = vld [vmem:[%s5 + $0x148] sm:$0xf]
    %v1358 = vld [vmem:[%s5 + $0x14c] sm:$0xf]
    %v1359 = vld [vmem:[%s5 + $0x150] sm:$0xf]
    %v1360 = vld [vmem:[%s5 + $0x154] sm:$0xf]
    %v1361 = vld [vmem:[%s5 + $0x158] sm:$0xf]
    %v1362 = vld [vmem:[%s5 + $0x15c] sm:$0xf]
    %v1363 = vld [vmem:[%s5 + $0x160] sm:$0xf]
    %v1364 = vld [vmem:[%s5 + $0x164] sm:$0xf]
    %v1365 = vld [vmem:[%s5 + $0x168] sm:$0xf]
    %v1366 = vld [vmem:[%s5 + $0x16c] sm:$0xf]
    %v1367 = vld [vmem:[%s5 + $0x170] sm:$0xf]
    %v1368 = vld [vmem:[%s5 + $0x174] sm:$0xf]
    %v1369 = vld [vmem:[%s5 + $0x178] sm:$0xf]
    %v1370 = vld [vmem:[%s5 + $0x17c] sm:$0xf]
    %v1371 = vld [vmem:[%s5 + $0x180] sm:$0xf]
    %v1372 = vld [vmem:[%s5 + $0x184] sm:$0xf]
    %v1373 = vld [vmem:[%s5 + $0x188] sm:$0xf]
    %v1374 = vld [vmem:[%s5 + $0x18c] sm:$0xf]
    %v1375 = vld [vmem:[%s5 + $0x190] sm:$0xf]
    %v1376 = vld [vmem:[%s5 + $0x194] sm:$0xf]
    %v1377 = vld [vmem:[%s5 + $0x198] sm:$0xf]
    %v1378 = vld [vmem:[%s5 + $0x19c] sm:$0xf]
    %v1379 = vld [vmem:[%s5 + $0x1a0] sm:$0xf]
    %v1380 = vld [vmem:[%s5 + $0x1a4] sm:$0xf]
    %v1381 = vld [vmem:[%s5 + $0x1a8] sm:$0xf]
    %v1382 = vld [vmem:[%s5 + $0x1ac] sm:$0xf]
    %v1383 = vld [vmem:[%s5 + $0x1b0] sm:$0xf]
    %v1384 = vld [vmem:[%s5 + $0x1b4] sm:$0xf]
    %v1385 = vld [vmem:[%s5 + $0x1b8] sm:$0xf]
    %v1386 = vld [vmem:[%s5 + $0x1bc] sm:$0xf]
    %v1387 = vld [vmem:[%s5 + $0x1c0] sm:$0xf]
    %v1388 = vld [vmem:[%s5 + $0x1c4] sm:$0xf]
    %v1389 = vld [vmem:[%s5 + $0x1c8] sm:$0xf]
    %v1390 = vld [vmem:[%s5 + $0x1cc] sm:$0xf]
    %v1391 = vld [vmem:[%s5 + $0x1d0] sm:$0xf]
    %v1392 = vld [vmem:[%s5 + $0x1d4] sm:$0xf]
    %v1393 = vld [vmem:[%s5 + $0x1d8] sm:$0xf]
    %v1394 = vld [vmem:[%s5 + $0x1dc] sm:$0xf]
    %v1395 = vld [vmem:[%s5 + $0x1e0] sm:$0xf]
    %v1396 = vld [vmem:[%s5 + $0x1e4] sm:$0xf]
    %v1397 = vld [vmem:[%s5 + $0x1e8] sm:$0xf]
    %v1398 = vld [vmem:[%s5 + $0x1ec] sm:$0xf]
    %v1399 = vld [vmem:[%s5 + $0x1f0] sm:$0xf]
    %v1400 = vld [vmem:[%s5 + $0x1f4] sm:$0xf]
    %v1401 = vld [vmem:[%s5 + $0x1f8] sm:$0xf]
    %v1402 = vld [vmem:[%s5 + $0x1fc] sm:$0xf]
    %v1403 = vld [vmem:[%s5 + $0x200] sm:$0xf]
    %v1404 = vld [vmem:[%s5 + $0x204] sm:$0xf]
    %v1405 = vld [vmem:[%s5 + $0x208] sm:$0xf]
    %v1406 = vld [vmem:[%s5 + $0x20c] sm:$0xf]
    %v1407 = vld [vmem:[%s5 + $0x210] sm:$0xf]
    %v1408 = vld [vmem:[%s5 + $0x214] sm:$0xf]
    %v1409 = vld [vmem:[%s5 + $0x218] sm:$0xf]
    %v1410 = vld [vmem:[%s5 + $0x21c] sm:$0xf]
    %v1411 = vld [vmem:[%s5 + $0x220] sm:$0xf]
    %v1412 = vld [vmem:[%s5 + $0x224] sm:$0xf]
    %v1413 = vld [vmem:[%s5 + $0x228] sm:$0xf]
    %v1414 = vld [vmem:[%s5 + $0x22c] sm:$0xf]
    %v1415 = vld [vmem:[%s5 + $0x230] sm:$0xf]
    %v1416 = vld [vmem:[%s5 + $0x234] sm:$0xf]
    %v1417 = vld [vmem:[%s5 + $0x238] sm:$0xf]
    %v1418 = vld [vmem:[%s5 + $0x23c] sm:$0xf]
    %v1419 = vld [vmem:[%s5 + $0x240] sm:$0xf]
    %v1420 = vld [vmem:[%s5 + $0x244] sm:$0xf]
    %v1421 = vld [vmem:[%s5 + $0x248] sm:$0xf]
    %v1422 = vld [vmem:[%s5 + $0x24c] sm:$0xf]
    %v1423 = vld [vmem:[%s5 + $0x250] sm:$0xf]
    %v1424 = vld [vmem:[%s5 + $0x254] sm:$0xf]
    %v1425 = vld [vmem:[%s5 + $0x258] sm:$0xf]
    %v1426 = vld [vmem:[%s5 + $0x25c] sm:$0xf]
    %v1427 = vld [vmem:[%s5 + $0x260] sm:$0xf]
    %v1428 = vld [vmem:[%s5 + $0x264] sm:$0xf]
    %v1429 = vld [vmem:[%s5 + $0x268] sm:$0xf]
    %v1430 = vld [vmem:[%s5 + $0x26c] sm:$0xf]
    %v1431 = vld [vmem:[%s5 + $0x270] sm:$0xf]
    %v1432 = vld [vmem:[%s5 + $0x274] sm:$0xf]
    %v1433 = vld [vmem:[%s5 + $0x278] sm:$0xf]
    %v1434 = vld [vmem:[%s5 + $0x27c] sm:$0xf]
    %v1435 = vld [vmem:[%s5 + $0x280] sm:$0xf]
    %v1436 = vld [vmem:[%s5 + $0x284] sm:$0xf]
    %v1437 = vld [vmem:[%s5 + $0x288] sm:$0xf]
    %v1438 = vld [vmem:[%s5 + $0x28c] sm:$0xf]
    %v1439 = vld [vmem:[%s5 + $0x290] sm:$0xf]
    %v1440 = vld [vmem:[%s5 + $0x294] sm:$0xf]
    %v1441 = vld [vmem:[%s5 + $0x298] sm:$0xf]
    %v1442 = vld [vmem:[%s5 + $0x29c] sm:$0xf]
    %v1443 = vld [vmem:[%s5 + $0x2a0] sm:$0xf]
    %v1444 = vld [vmem:[%s5 + $0x2a4] sm:$0xf]
    %v1445 = vld [vmem:[%s5 + $0x2a8] sm:$0xf]
    %v1446 = vld [vmem:[%s5 + $0x2ac] sm:$0xf]
    %v1447 = vld [vmem:[%s5 + $0x2b0] sm:$0xf]
    %v1448 = vld [vmem:[%s5 + $0x2b4] sm:$0xf]
    %v1449 = vld [vmem:[%s5 + $0x2b8] sm:$0xf]
    %v1450 = vld [vmem:[%s5 + $0x2bc] sm:$0xf]
    %v1451 = vld [vmem:[%s5 + $0x2c0] sm:$0xf]
    %v1452 = vld [vmem:[%s5 + $0x2c4] sm:$0xf]
    %v1453 = vld [vmem:[%s5 + $0x2c8] sm:$0xf]
    %v1454 = vld [vmem:[%s5 + $0x2cc] sm:$0xf]
    %v1455 = vld [vmem:[%s5 + $0x2d0] sm:$0xf]
    %v1456 = vld [vmem:[%s5 + $0x2d4] sm:$0xf]
    %v1457 = vld [vmem:[%s5 + $0x2d8] sm:$0xf]
    %v1458 = vld [vmem:[%s5 + $0x2dc] sm:$0xf]
    %v1459 = vld [vmem:[%s5 + $0x2e0] sm:$0xf]
    %v1460 = vld [vmem:[%s5 + $0x2e4] sm:$0xf]
    %v1461 = vld [vmem:[%s5 + $0x2e8] sm:$0xf]
    %v1462 = vld [vmem:[%s5 + $0x2ec] sm:$0xf]
    %v1463 = vld [vmem:[%s5 + $0x2f0] sm:$0xf]
    %v1464 = vld [vmem:[%s5 + $0x2f4] sm:$0xf]
    %v1465 = vld [vmem:[%s5 + $0x2f8] sm:$0xf]
    %v1466 = vld [vmem:[%s5 + $0x2fc] sm:$0xf]
    %v1467 = vld [vmem:[%s5 + $0x300] sm:$0xf]
    %v1468 = vld [vmem:[%s5 + $0x304] sm:$0xf]
    %v1469 = vld [vmem:[%s5 + $0x308] sm:$0xf]
    %v1470 = vld [vmem:[%s5 + $0x30c] sm:$0xf]
    %v1471 = vld [vmem:[%s5 + $0x310] sm:$0xf]
    %v1472 = vld [vmem:[%s5 + $0x314] sm:$0xf]
    %v1473 = vld [vmem:[%s5 + $0x318] sm:$0xf]
    %v1474 = vld [vmem:[%s5 + $0x31c] sm:$0xf]
    %v1475 = vld [vmem:[%s5 + $0x320] sm:$0xf]
    %v1476 = vld [vmem:[%s5 + $0x324] sm:$0xf]
    %v1477 = vld [vmem:[%s5 + $0x328] sm:$0xf]
    %v1478 = vld [vmem:[%s5 + $0x32c] sm:$0xf]
    %v1479 = vld [vmem:[%s5 + $0x330] sm:$0xf]
    %v1480 = vld [vmem:[%s5 + $0x334] sm:$0xf]
    %v1481 = vld [vmem:[%s5 + $0x338] sm:$0xf]
    %v1482 = vld [vmem:[%s5 + $0x33c] sm:$0xf]
    %v1483 = vld [vmem:[%s5 + $0x340] sm:$0xf]
    %v1484 = vld [vmem:[%s5 + $0x344] sm:$0xf]
    %v1485 = vld [vmem:[%s5 + $0x348] sm:$0xf]
    %v1486 = vld [vmem:[%s5 + $0x34c] sm:$0xf]
    %v1487 = vld [vmem:[%s5 + $0x350] sm:$0xf]
    %v1488 = vld [vmem:[%s5 + $0x354] sm:$0xf]
    %v1489 = vld [vmem:[%s5 + $0x358] sm:$0xf]
    %v1490 = vld [vmem:[%s5 + $0x35c] sm:$0xf]
    %v1491 = vld [vmem:[%s5 + $0x360] sm:$0xf]
    %v1492 = vld [vmem:[%s5 + $0x364] sm:$0xf]
    %v1493 = vld [vmem:[%s5 + $0x368] sm:$0xf]
    %v1494 = vld [vmem:[%s5 + $0x36c] sm:$0xf]
    %v1495 = vld [vmem:[%s5 + $0x370] sm:$0xf]
    %v1496 = vld [vmem:[%s5 + $0x374] sm:$0xf]
    %v1497 = vld [vmem:[%s5 + $0x378] sm:$0xf]
    %v1498 = vld [vmem:[%s5 + $0x37c] sm:$0xf]
    %v1499 = vld [vmem:[%s5 + $0x380] sm:$0xf]
    %v1500 = vld [vmem:[%s5 + $0x384] sm:$0xf]
    %v1501 = vld [vmem:[%s5 + $0x388] sm:$0xf]
    %v1502 = vld [vmem:[%s5 + $0x38c] sm:$0xf]
    %v1503 = vld [vmem:[%s5 + $0x390] sm:$0xf]
    %v1504 = vld [vmem:[%s5 + $0x394] sm:$0xf]
    %v1505 = vld [vmem:[%s5 + $0x398] sm:$0xf]
    %v1506 = vld [vmem:[%s5 + $0x39c] sm:$0xf]
    %v1507 = vld [vmem:[%s5 + $0x3a0] sm:$0xf]
    %v1508 = vld [vmem:[%s5 + $0x3a4] sm:$0xf]
    %v1509 = vld [vmem:[%s5 + $0x3a8] sm:$0xf]
    %v1510 = vld [vmem:[%s5 + $0x3ac] sm:$0xf]
    %v1511 = vld [vmem:[%s5 + $0x3b0] sm:$0xf]
    %v1512 = vld [vmem:[%s5 + $0x3b4] sm:$0xf]
    %v1513 = vld [vmem:[%s5 + $0x3b8] sm:$0xf]
    %v1514 = vld [vmem:[%s5 + $0x3bc] sm:$0xf]
    %v1515 = vld [vmem:[%s5 + $0x3c0] sm:$0xf]
    %v1516 = vld [vmem:[%s5 + $0x3c4] sm:$0xf]
    %v1517 = vld [vmem:[%s5 + $0x3c8] sm:$0xf]
    %v1518 = vld [vmem:[%s5 + $0x3cc] sm:$0xf]
    %v1519 = vld [vmem:[%s5 + $0x3d0] sm:$0xf]
    %v1520 = vld [vmem:[%s5 + $0x3d4] sm:$0xf]
    %v1521 = vld [vmem:[%s5 + $0x3d8] sm:$0xf]
    %v1522 = vld [vmem:[%s5 + $0x3dc] sm:$0xf]
    %v1523 = vld [vmem:[%s5 + $0x3e0] sm:$0xf]
    %v1524 = vld [vmem:[%s5 + $0x3e4] sm:$0xf]
    %v1525 = vld [vmem:[%s6] sm:$0x1]
    %v1527 = vlaneseq
    %v1528 = vshrl.u32 %v1527, 7
    %v1529 = vsub.s32 0, %v1528
    %v1530 = vrot.slane %v1525, %v1529
    %v1782 = vunpack.c.l.b16 %v1275
    %v1783 = vunpack.c.l.b16 %v1276
    %v1784 = vunpack.c.l.b16 %v1277
    %v1785 = vunpack.c.l.b16 %v1278
    %v1786 = vunpack.c.l.b16 %v1279
    %v1787 = vunpack.c.l.b16 %v1280
    %v1788 = vunpack.c.l.b16 %v1281
    %v1789 = vunpack.c.l.b16 %v1282
    %v1790 = vunpack.c.l.b16 %v1283
    %v1791 = vunpack.c.l.b16 %v1284
    %v1792 = vunpack.c.l.b16 %v1285
    %v1793 = vunpack.c.l.b16 %v1286
    %v1794 = vunpack.c.l.b16 %v1287
    %v1795 = vunpack.c.l.b16 %v1288
    %v1796 = vunpack.c.l.b16 %v1289
    %v1797 = vunpack.c.l.b16 %v1290
    %v1798 = vunpack.c.l.b16 %v1291
    %v1799 = vunpack.c.l.b16 %v1292
    %v1800 = vunpack.c.l.b16 %v1293
    %v1801 = vunpack.c.l.b16 %v1294
    %v1802 = vunpack.c.l.b16 %v1295
    %v1803 = vunpack.c.l.b16 %v1296
    %v1804 = vunpack.c.l.b16 %v1297
    %v1805 = vunpack.c.l.b16 %v1298
    %v1806 = vunpack.c.l.b16 %v1299
    %v1807 = vunpack.c.l.b16 %v1300
    %v1808 = vunpack.c.l.b16 %v1301
    %v1809 = vunpack.c.l.b16 %v1302
    %v1810 = vunpack.c.l.b16 %v1303
    %v1811 = vunpack.c.l.b16 %v1304
    %v1812 = vunpack.c.l.b16 %v1305
    %v1813 = vunpack.c.l.b16 %v1306
    %v1814 = vunpack.c.l.b16 %v1307
    %v1815 = vunpack.c.l.b16 %v1308
    %v1816 = vunpack.c.l.b16 %v1309
    %v1817 = vunpack.c.l.b16 %v1310
    %v1818 = vunpack.c.l.b16 %v1311
    %v1819 = vunpack.c.l.b16 %v1312
    %v1820 = vunpack.c.l.b16 %v1313
    %v1821 = vunpack.c.l.b16 %v1314
    %v1822 = vunpack.c.l.b16 %v1315
    %v1823 = vunpack.c.l.b16 %v1316
    %v1824 = vunpack.c.l.b16 %v1317
    %v1825 = vunpack.c.l.b16 %v1318
    %v1826 = vunpack.c.l.b16 %v1319
    %v1827 = vunpack.c.l.b16 %v1320
    %v1828 = vunpack.c.l.b16 %v1321
    %v1829 = vunpack.c.l.b16 %v1322
    %v1830 = vunpack.c.l.b16 %v1323
    %v1831 = vunpack.c.l.b16 %v1324
    %v1832 = vunpack.c.l.b16 %v1325
    %v1833 = vunpack.c.l.b16 %v1326
    %v1834 = vunpack.c.l.b16 %v1327
    %v1835 = vunpack.c.l.b16 %v1328
    %v1836 = vunpack.c.l.b16 %v1329
    %v1837 = vunpack.c.l.b16 %v1330
    %v1838 = vunpack.c.l.b16 %v1331
    %v1839 = vunpack.c.l.b16 %v1332
    %v1840 = vunpack.c.l.b16 %v1333
    %v1841 = vunpack.c.l.b16 %v1334
    %v1842 = vunpack.c.l.b16 %v1335
    %v1843 = vunpack.c.l.b16 %v1336
    %v1844 = vunpack.c.l.b16 %v1337
    %v1845 = vunpack.c.l.b16 %v1338
    %v1846 = vunpack.c.l.b16 %v1339
    %v1847 = vunpack.c.l.b16 %v1340
    %v1848 = vunpack.c.l.b16 %v1341
    %v1849 = vunpack.c.l.b16 %v1342
    %v1850 = vunpack.c.l.b16 %v1343
    %v1851 = vunpack.c.l.b16 %v1344
    %v1852 = vunpack.c.l.b16 %v1345
    %v1853 = vunpack.c.l.b16 %v1346
    %v1854 = vunpack.c.l.b16 %v1347
    %v1855 = vunpack.c.l.b16 %v1348
    %v1856 = vunpack.c.l.b16 %v1349
    %v1857 = vunpack.c.l.b16 %v1350
    %v1858 = vunpack.c.l.b16 %v1351
    %v1859 = vunpack.c.l.b16 %v1352
    %v1860 = vunpack.c.l.b16 %v1353
    %v1861 = vunpack.c.l.b16 %v1354
    %v1862 = vunpack.c.l.b16 %v1355
    %v1863 = vunpack.c.l.b16 %v1356
    %v1864 = vunpack.c.l.b16 %v1357
    %v1865 = vunpack.c.l.b16 %v1358
    %v1866 = vunpack.c.l.b16 %v1359
    %v1867 = vunpack.c.l.b16 %v1360
    %v1868 = vunpack.c.l.b16 %v1361
    %v1869 = vunpack.c.l.b16 %v1362
    %v1870 = vunpack.c.l.b16 %v1363
    %v1871 = vunpack.c.l.b16 %v1364
    %v1872 = vunpack.c.l.b16 %v1365
    %v1873 = vunpack.c.l.b16 %v1366
    %v1874 = vunpack.c.l.b16 %v1367
    %v1875 = vunpack.c.l.b16 %v1368
    %v1876 = vunpack.c.l.b16 %v1369
    %v1877 = vunpack.c.l.b16 %v1370
    %v1878 = vunpack.c.l.b16 %v1371
    %v1879 = vunpack.c.l.b16 %v1372
    %v1880 = vunpack.c.l.b16 %v1373
    %v1881 = vunpack.c.l.b16 %v1374
    %v1882 = vunpack.c.l.b16 %v1375
    %v1883 = vunpack.c.l.b16 %v1376
    %v1884 = vunpack.c.l.b16 %v1377
    %v1885 = vunpack.c.l.b16 %v1378
    %v1886 = vunpack.c.l.b16 %v1379
    %v1887 = vunpack.c.l.b16 %v1380
    %v1888 = vunpack.c.l.b16 %v1381
    %v1889 = vunpack.c.l.b16 %v1382
    %v1890 = vunpack.c.l.b16 %v1383
    %v1891 = vunpack.c.l.b16 %v1384
    %v1892 = vunpack.c.l.b16 %v1385
    %v1893 = vunpack.c.l.b16 %v1386
    %v1894 = vunpack.c.l.b16 %v1387
    %v1895 = vunpack.c.l.b16 %v1388
    %v1896 = vunpack.c.l.b16 %v1389
    %v1897 = vunpack.c.l.b16 %v1390
    %v1898 = vunpack.c.l.b16 %v1391
    %v1899 = vunpack.c.l.b16 %v1392
    %v1900 = vunpack.c.l.b16 %v1393
    %v1901 = vunpack.c.l.b16 %v1394
    %v1902 = vunpack.c.l.b16 %v1395
    %v1903 = vunpack.c.l.b16 %v1396
    %v1904 = vunpack.c.l.b16 %v1397
    %v1905 = vunpack.c.l.b16 %v1398
    %v1906 = vunpack.c.l.b16 %v1399
    %v1907 = vunpack.c.l.b16 %v1400
    %v1908 = vunpack.c.l.b16 %v1401
    %v1909 = vunpack.c.l.b16 %v1402
    %v1910 = vunpack.c.l.b16 %v1403
    %v1911 = vunpack.c.l.b16 %v1404
    %v1912 = vunpack.c.l.b16 %v1405
    %v1913 = vunpack.c.l.b16 %v1406
    %v1914 = vunpack.c.l.b16 %v1407
    %v1915 = vunpack.c.l.b16 %v1408
    %v1916 = vunpack.c.l.b16 %v1409
    %v1917 = vunpack.c.l.b16 %v1410
    %v1918 = vunpack.c.l.b16 %v1411
    %v1919 = vunpack.c.l.b16 %v1412
    %v1920 = vunpack.c.l.b16 %v1413
    %v1921 = vunpack.c.l.b16 %v1414
    %v1922 = vunpack.c.l.b16 %v1415
    %v1923 = vunpack.c.l.b16 %v1416
    %v1924 = vunpack.c.l.b16 %v1417
    %v1925 = vunpack.c.l.b16 %v1418
    %v1926 = vunpack.c.l.b16 %v1419
    %v1927 = vunpack.c.l.b16 %v1420
    %v1928 = vunpack.c.l.b16 %v1421
    %v1929 = vunpack.c.l.b16 %v1422
    %v1930 = vunpack.c.l.b16 %v1423
    %v1931 = vunpack.c.l.b16 %v1424
    %v1932 = vunpack.c.l.b16 %v1425
    %v1933 = vunpack.c.l.b16 %v1426
    %v1934 = vunpack.c.l.b16 %v1427
    %v1935 = vunpack.c.l.b16 %v1428
    %v1936 = vunpack.c.l.b16 %v1429
    %v1937 = vunpack.c.l.b16 %v1430
    %v1938 = vunpack.c.l.b16 %v1431
    %v1939 = vunpack.c.l.b16 %v1432
    %v1940 = vunpack.c.l.b16 %v1433
    %v1941 = vunpack.c.l.b16 %v1434
    %v1942 = vunpack.c.l.b16 %v1435
    %v1943 = vunpack.c.l.b16 %v1436
    %v1944 = vunpack.c.l.b16 %v1437
    %v1945 = vunpack.c.l.b16 %v1438
    %v1946 = vunpack.c.l.b16 %v1439
    %v1947 = vunpack.c.l.b16 %v1440
    %v1948 = vunpack.c.l.b16 %v1441
    %v1949 = vunpack.c.l.b16 %v1442
    %v1950 = vunpack.c.l.b16 %v1443
    %v1951 = vunpack.c.l.b16 %v1444
    %v1952 = vunpack.c.l.b16 %v1445
    %v1953 = vunpack.c.l.b16 %v1446
    %v1954 = vunpack.c.l.b16 %v1447
    %v1955 = vunpack.c.l.b16 %v1448
    %v1956 = vunpack.c.l.b16 %v1449
    %v1957 = vunpack.c.l.b16 %v1450
    %v1958 = vunpack.c.l.b16 %v1451
    %v1959 = vunpack.c.l.b16 %v1452
    %v1960 = vunpack.c.l.b16 %v1453
    %v1961 = vunpack.c.l.b16 %v1454
    %v1962 = vunpack.c.l.b16 %v1455
    %v1963 = vunpack.c.l.b16 %v1456
    %v1964 = vunpack.c.l.b16 %v1457
    %v1965 = vunpack.c.l.b16 %v1458
    %v1966 = vunpack.c.l.b16 %v1459
    %v1967 = vunpack.c.l.b16 %v1460
    %v1968 = vunpack.c.l.b16 %v1461
    %v1969 = vunpack.c.l.b16 %v1462
    %v1970 = vunpack.c.l.b16 %v1463
    %v1971 = vunpack.c.l.b16 %v1464
    %v1972 = vunpack.c.l.b16 %v1465
    %v1973 = vunpack.c.l.b16 %v1466
    %v1974 = vunpack.c.l.b16 %v1467
    %v1975 = vunpack.c.l.b16 %v1468
    %v1976 = vunpack.c.l.b16 %v1469
    %v1977 = vunpack.c.l.b16 %v1470
    %v1978 = vunpack.c.l.b16 %v1471
    %v1979 = vunpack.c.l.b16 %v1472
    %v1980 = vunpack.c.l.b16 %v1473
    %v1981 = vunpack.c.l.b16 %v1474
    %v1982 = vunpack.c.l.b16 %v1475
    %v1983 = vunpack.c.l.b16 %v1476
    %v1984 = vunpack.c.l.b16 %v1477
    %v1985 = vunpack.c.l.b16 %v1478
    %v1986 = vunpack.c.l.b16 %v1479
    %v1987 = vunpack.c.l.b16 %v1480
    %v1988 = vunpack.c.l.b16 %v1481
    %v1989 = vunpack.c.l.b16 %v1482
    %v1990 = vunpack.c.l.b16 %v1483
    %v1991 = vunpack.c.l.b16 %v1484
    %v1992 = vunpack.c.l.b16 %v1485
    %v1993 = vunpack.c.l.b16 %v1486
    %v1994 = vunpack.c.l.b16 %v1487
    %v1995 = vunpack.c.l.b16 %v1488
    %v1996 = vunpack.c.l.b16 %v1489
    %v1997 = vunpack.c.l.b16 %v1490
    %v1998 = vunpack.c.l.b16 %v1491
    %v1999 = vunpack.c.l.b16 %v1492
    %v2000 = vunpack.c.l.b16 %v1493
    %v2001 = vunpack.c.l.b16 %v1494
    %v2002 = vunpack.c.l.b16 %v1495
    %v2003 = vunpack.c.l.b16 %v1496
    %v2004 = vunpack.c.l.b16 %v1497
    %v2005 = vunpack.c.l.b16 %v1498
    %v2006 = vunpack.c.l.b16 %v1499
    %v2007 = vunpack.c.l.b16 %v1500
    %v2008 = vunpack.c.l.b16 %v1501
    %v2009 = vunpack.c.l.b16 %v1502
    %v2010 = vunpack.c.l.b16 %v1503
    %v2011 = vunpack.c.l.b16 %v1504
    %v2012 = vunpack.c.l.b16 %v1505
    %v2013 = vunpack.c.l.b16 %v1506
    %v2014 = vunpack.c.l.b16 %v1507
    %v2015 = vunpack.c.l.b16 %v1508
    %v2016 = vunpack.c.l.b16 %v1509
    %v2017 = vunpack.c.l.b16 %v1510
    %v2018 = vunpack.c.l.b16 %v1511
    %v2019 = vunpack.c.l.b16 %v1512
    %v2020 = vunpack.c.l.b16 %v1513
    %v2021 = vunpack.c.l.b16 %v1514
    %v2022 = vunpack.c.l.b16 %v1515
    %v2023 = vunpack.c.l.b16 %v1516
    %v2024 = vunpack.c.l.b16 %v1517
    %v2025 = vunpack.c.l.b16 %v1518
    %v2026 = vunpack.c.l.b16 %v1519
    %v2027 = vunpack.c.l.b16 %v1520
    %v2028 = vunpack.c.l.b16 %v1521
    %v2029 = vunpack.c.l.b16 %v1522
    %v2030 = vunpack.c.l.b16 %v1523
    %v2031 = vunpack.c.l.b16 %v1524
    %v2032 = vpack.c.b16 %v1783, %v1782
    %v2033 = vpack.c.b16 %v1785, %v1784
    %v2034 = vpack.c.b16 %v1787, %v1786
    %v2035 = vpack.c.b16 %v1789, %v1788
    %v2036 = vpack.c.b16 %v1791, %v1790
    %v2037 = vpack.c.b16 %v1793, %v1792
    %v2038 = vpack.c.b16 %v1795, %v1794
    %v2039 = vpack.c.b16 %v1797, %v1796
    %v2040 = vpack.c.b16 %v1799, %v1798
    %v2041 = vpack.c.b16 %v1801, %v1800
    %v2042 = vpack.c.b16 %v1803, %v1802
    %v2043 = vpack.c.b16 %v1805, %v1804
    %v2044 = vpack.c.b16 %v1807, %v1806
    %v2045 = vpack.c.b16 %v1809, %v1808
    %v2046 = vpack.c.b16 %v1811, %v1810
    %v2047 = vpack.c.b16 %v1813, %v1812
    %v2048 = vpack.c.b16 %v1815, %v1814
    %v2049 = vpack.c.b16 %v1817, %v1816
    %v2050 = vpack.c.b16 %v1819, %v1818
    %v2051 = vpack.c.b16 %v1821, %v1820
    %v2052 = vpack.c.b16 %v1823, %v1822
    %v2053 = vpack.c.b16 %v1825, %v1824
    %v2054 = vpack.c.b16 %v1827, %v1826
    %v2055 = vpack.c.b16 %v1829, %v1828
    %v2056 = vpack.c.b16 %v1831, %v1830
    %v2057 = vpack.c.b16 %v1833, %v1832
    %v2058 = vpack.c.b16 %v1835, %v1834
    %v2059 = vpack.c.b16 %v1837, %v1836
    %v2060 = vpack.c.b16 %v1839, %v1838
    %v2061 = vpack.c.b16 %v1841, %v1840
    %v2062 = vpack.c.b16 %v1843, %v1842
    %v2063 = vpack.c.b16 %v1845, %v1844
    %v2064 = vpack.c.b16 %v1847, %v1846
    %v2065 = vpack.c.b16 %v1849, %v1848
    %v2066 = vpack.c.b16 %v1851, %v1850
    %v2067 = vpack.c.b16 %v1853, %v1852
    %v2068 = vpack.c.b16 %v1855, %v1854
    %v2069 = vpack.c.b16 %v1857, %v1856
    %v2070 = vpack.c.b16 %v1859, %v1858
    %v2071 = vpack.c.b16 %v1861, %v1860
    %v2072 = vpack.c.b16 %v1863, %v1862
    %v2073 = vpack.c.b16 %v1865, %v1864
    %v2074 = vpack.c.b16 %v1867, %v1866
    %v2075 = vpack.c.b16 %v1869, %v1868
    %v2076 = vpack.c.b16 %v1871, %v1870
    %v2077 = vpack.c.b16 %v1873, %v1872
    %v2078 = vpack.c.b16 %v1875, %v1874
    %v2079 = vpack.c.b16 %v1877, %v1876
    %v2080 = vpack.c.b16 %v1879, %v1878
    %v2081 = vpack.c.b16 %v1881, %v1880
    %v2082 = vpack.c.b16 %v1883, %v1882
    %v2083 = vpack.c.b16 %v1885, %v1884
    %v2084 = vpack.c.b16 %v1887, %v1886
    %v2085 = vpack.c.b16 %v1889, %v1888
    %v2086 = vpack.c.b16 %v1891, %v1890
    %v2087 = vpack.c.b16 %v1893, %v1892
    %v2088 = vpack.c.b16 %v1895, %v1894
    %v2089 = vpack.c.b16 %v1897, %v1896
    %v2090 = vpack.c.b16 %v1899, %v1898
    %v2091 = vpack.c.b16 %v1901, %v1900
    %v2092 = vpack.c.b16 %v1903, %v1902
    %v2093 = vpack.c.b16 %v1905, %v1904
    %v2094 = vpack.c.b16 %v1907, %v1906
    %v2095 = vpack.c.b16 %v1909, %v1908
    %v2096 = vpack.c.b16 %v1911, %v1910
    %v2097 = vpack.c.b16 %v1913, %v1912
    %v2098 = vpack.c.b16 %v1915, %v1914
    %v2099 = vpack.c.b16 %v1917, %v1916
    %v2100 = vpack.c.b16 %v1919, %v1918
    %v2101 = vpack.c.b16 %v1921, %v1920
    %v2102 = vpack.c.b16 %v1923, %v1922
    %v2103 = vpack.c.b16 %v1925, %v1924
    %v2104 = vpack.c.b16 %v1927, %v1926
    %v2105 = vpack.c.b16 %v1929, %v1928
    %v2106 = vpack.c.b16 %v1931, %v1930
    %v2107 = vpack.c.b16 %v1933, %v1932
    %v2108 = vpack.c.b16 %v1935, %v1934
    %v2109 = vpack.c.b16 %v1937, %v1936
    %v2110 = vpack.c.b16 %v1939, %v1938
    %v2111 = vpack.c.b16 %v1941, %v1940
    %v2112 = vpack.c.b16 %v1943, %v1942
    %v2113 = vpack.c.b16 %v1945, %v1944
    %v2114 = vpack.c.b16 %v1947, %v1946
    %v2115 = vpack.c.b16 %v1949, %v1948
    %v2116 = vpack.c.b16 %v1951, %v1950
    %v2117 = vpack.c.b16 %v1953, %v1952
    %v2118 = vpack.c.b16 %v1955, %v1954
    %v2119 = vpack.c.b16 %v1957, %v1956
    %v2120 = vpack.c.b16 %v1959, %v1958
    %v2121 = vpack.c.b16 %v1961, %v1960
    %v2122 = vpack.c.b16 %v1963, %v1962
    %v2123 = vpack.c.b16 %v1965, %v1964
    %v2124 = vpack.c.b16 %v1967, %v1966
    %v2125 = vpack.c.b16 %v1969, %v1968
    %v2126 = vpack.c.b16 %v1971, %v1970
    %v2127 = vpack.c.b16 %v1973, %v1972
    %v2128 = vpack.c.b16 %v1975, %v1974
    %v2129 = vpack.c.b16 %v1977, %v1976
    %v2130 = vpack.c.b16 %v1979, %v1978
    %v2131 = vpack.c.b16 %v1981, %v1980
    %v2132 = vpack.c.b16 %v1983, %v1982
    %v2133 = vpack.c.b16 %v1985, %v1984
    %v2134 = vpack.c.b16 %v1987, %v1986
    %v2135 = vpack.c.b16 %v1989, %v1988
    %v2136 = vpack.c.b16 %v1991, %v1990
    %v2137 = vpack.c.b16 %v1993, %v1992
    %v2138 = vpack.c.b16 %v1995, %v1994
    %v2139 = vpack.c.b16 %v1997, %v1996
    %v2140 = vpack.c.b16 %v1999, %v1998
    %v2141 = vpack.c.b16 %v2001, %v2000
    %v2142 = vpack.c.b16 %v2003, %v2002
    %v2143 = vpack.c.b16 %v2005, %v2004
    %v2144 = vpack.c.b16 %v2007, %v2006
    %v2145 = vpack.c.b16 %v2009, %v2008
    %v2146 = vpack.c.b16 %v2011, %v2010
    %v2147 = vpack.c.b16 %v2013, %v2012
    %v2148 = vpack.c.b16 %v2015, %v2014
    %v2149 = vpack.c.b16 %v2017, %v2016
    %v2150 = vpack.c.b16 %v2019, %v2018
    %v2151 = vpack.c.b16 %v2021, %v2020
    %v2152 = vpack.c.b16 %v2023, %v2022
    %v2153 = vpack.c.b16 %v2025, %v2024
    %v2154 = vpack.c.b16 %v2027, %v2026
    %v2155 = vpack.c.b16 %v2029, %v2028
    %v2156 = vpack.c.b16 %v2031, %v2030
    %vm2282 = vcmask 654336
    %v2284 = vsel %vm2282, %v1274, 0
    %2286 = vmatprep.subr.bf16.mxu0 0
    %2287 = vmatpush1.bf16.msra.mxu0 %v2032
    %2288 = vmatprep.subr.bf16.mxu0 0
    %2289 = vmatpush1.bf16.msra.mxu0 %v2033
    %2290 = vmatprep.subr.bf16.mxu0 0
    %2291 = vmatpush1.bf16.msra.mxu0 %v2034
    %2292 = vmatprep.subr.bf16.mxu0 0
    %2293 = vmatpush1.bf16.msra.mxu0 %v2035
    %2294 = vmatprep.subr.bf16.mxu0 0
    %2295 = vmatpush1.bf16.msra.mxu0 %v2036
    %2296 = vmatprep.subr.bf16.mxu0 0
    %2297 = vmatpush1.bf16.msra.mxu0 %v2037
    %2298 = vmatprep.subr.bf16.mxu0 0
    %2299 = vmatpush1.bf16.msra.mxu0 %v2038
    %2300 = vmatprep.subr.bf16.mxu0 0
    %2301 = vmatpush1.bf16.msra.mxu0 %v2039
    %2302 = vmatprep.subr.bf16.mxu0 0
    %2303 = vmatpush1.bf16.msra.mxu0 %v2040
    %2304 = vmatprep.subr.bf16.mxu0 0
    %2305 = vmatpush1.bf16.msra.mxu0 %v2041
    %2306 = vmatprep.subr.bf16.mxu0 0
    %2307 = vmatpush1.bf16.msra.mxu0 %v2042
    %2308 = vmatprep.subr.bf16.mxu0 0
    %2309 = vmatpush1.bf16.msra.mxu0 %v2043
    %2310 = vmatprep.subr.bf16.mxu0 0
    %2311 = vmatpush1.bf16.msra.mxu0 %v2044
    %2312 = vmatprep.subr.bf16.mxu0 0
    %2313 = vmatpush1.bf16.msra.mxu0 %v2045
    %2314 = vmatprep.subr.bf16.mxu0 0
    %2315 = vmatpush1.bf16.msra.mxu0 %v2046
    %2316 = vmatprep.subr.bf16.mxu0 0
    %2317 = vmatpush1.bf16.msra.mxu0 %v2047
    %2318 = vmatprep.mubr.bf16.mxu0 %v1260
    %2319 = vmatmul.mubr.bf16.gmra.mrb[0].mxu0 %v1259
    %v2320 = vpop.f32.mrb[0].mxu0
    %v2321 = vadd.f32 %v1530, %v2320
    %v2322 = vpop.f32.mrb[0].mxu0
    %v2323 = vpop.f32.mrb[0].mxu0
    %v2324 = vpop.f32.mrb[0].mxu0
    %2325 = vdwg.mxu0
    %2326 = vmatprep.subr.bf16.mxu0 0
    %2327 = vmatpush1.bf16.msra.mxu0 %v2048
    %2328 = vmatprep.subr.bf16.mxu0 0
    %2329 = vmatpush1.bf16.msra.mxu0 %v2049
    %2330 = vmatprep.subr.bf16.mxu0 0
    %2331 = vmatpush1.bf16.msra.mxu0 %v2050
    %2332 = vmatprep.subr.bf16.mxu0 0
    %2333 = vmatpush1.bf16.msra.mxu0 %v2051
    %2334 = vmatprep.subr.bf16.mxu0 0
    %2335 = vmatpush1.bf16.msra.mxu0 %v2052
    %2336 = vmatprep.subr.bf16.mxu0 0
    %2337 = vmatpush1.bf16.msra.mxu0 %v2053
    %2338 = vmatprep.subr.bf16.mxu0 0
    %2339 = vmatpush1.bf16.msra.mxu0 %v2054
    %2340 = vmatprep.subr.bf16.mxu0 0
    %2341 = vmatpush1.bf16.msra.mxu0 %v2055
    %2342 = vmatprep.subr.bf16.mxu0 0
    %2343 = vmatpush1.bf16.msra.mxu0 %v2056
    %2344 = vmatprep.subr.bf16.mxu0 0
    %2345 = vmatpush1.bf16.msra.mxu0 %v2057
    %2346 = vmatprep.subr.bf16.mxu0 0
    %2347 = vmatpush1.bf16.msra.mxu0 %v2058
    %2348 = vmatprep.subr.bf16.mxu0 0
    %2349 = vmatpush1.bf16.msra.mxu0 %v2059
    %2350 = vmatprep.subr.bf16.mxu0 0
    %2351 = vmatpush1.bf16.msra.mxu0 %v2060
    %2352 = vmatprep.subr.bf16.mxu0 0
    %2353 = vmatpush1.bf16.msra.mxu0 %v2061
    %2354 = vmatprep.subr.bf16.mxu0 0
    %2355 = vmatpush1.bf16.msra.mxu0 %v2062
    %2356 = vmatprep.subr.bf16.mxu0 0
    %2357 = vmatpush1.bf16.msra.mxu0 %v2063
    %2358 = vmatprep.mubr.bf16.mxu0 %v1262
    %2359 = vmatmul.mubr.bf16.gmra.mrb[0].mxu0 %v1261
    %v2360 = vpop.f32.mrb[0].mxu0
    %v2361 = vadd.f32 %v2321, %v2360
    %v2362 = vpop.f32.mrb[0].mxu0
    %v2363 = vpop.f32.mrb[0].mxu0
    %v2364 = vpop.f32.mrb[0].mxu0
    %2365 = vdwg.mxu0
    %2366 = vmatprep.subr.bf16.mxu0 0
    %2367 = vmatpush1.bf16.msra.mxu0 %v2064
    %2368 = vmatprep.subr.bf16.mxu0 0
    %2369 = vmatpush1.bf16.msra.mxu0 %v2065
    %2370 = vmatprep.subr.bf16.mxu0 0
    %2371 = vmatpush1.bf16.msra.mxu0 %v2066
    %2372 = vmatprep.subr.bf16.mxu0 0
    %2373 = vmatpush1.bf16.msra.mxu0 %v2067
    %2374 = vmatprep.subr.bf16.mxu0 0
    %2375 = vmatpush1.bf16.msra.mxu0 %v2068
    %2376 = vmatprep.subr.bf16.mxu0 0
    %2377 = vmatpush1.bf16.msra.mxu0 %v2069
    %2378 = vmatprep.subr.bf16.mxu0 0
    %2379 = vmatpush1.bf16.msra.mxu0 %v2070
    %2380 = vmatprep.subr.bf16.mxu0 0
    %2381 = vmatpush1.bf16.msra.mxu0 %v2071
    %2382 = vmatprep.subr.bf16.mxu0 0
    %2383 = vmatpush1.bf16.msra.mxu0 %v2072
    %2384 = vmatprep.subr.bf16.mxu0 0
    %2385 = vmatpush1.bf16.msra.mxu0 %v2073
    %2386 = vmatprep.subr.bf16.mxu0 0
    %2387 = vmatpush1.bf16.msra.mxu0 %v2074
    %2388 = vmatprep.subr.bf16.mxu0 0
    %2389 = vmatpush1.bf16.msra.mxu0 %v2075
    %2390 = vmatprep.subr.bf16.mxu0 0
    %2391 = vmatpush1.bf16.msra.mxu0 %v2076
    %2392 = vmatprep.subr.bf16.mxu0 0
    %2393 = vmatpush1.bf16.msra.mxu0 %v2077
    %2394 = vmatprep.subr.bf16.mxu0 0
    %2395 = vmatpush1.bf16.msra.mxu0 %v2078
    %2396 = vmatprep.subr.bf16.mxu0 0
    %2397 = vmatpush1.bf16.msra.mxu0 %v2079
    %2398 = vmatprep.mubr.bf16.mxu0 %v1264
    %2399 = vmatmul.mubr.bf16.gmra.mrb[0].mxu0 %v1263
    %v2400 = vpop.f32.mrb[0].mxu0
    %v2401 = vadd.f32 %v2361, %v2400
    %v2402 = vpop.f32.mrb[0].mxu0
    %v2403 = vpop.f32.mrb[0].mxu0
    %v2404 = vpop.f32.mrb[0].mxu0
    %2405 = vdwg.mxu0
    %2406 = vmatprep.subr.bf16.mxu0 0
    %2407 = vmatpush1.bf16.msra.mxu0 %v2080
    %2408 = vmatprep.subr.bf16.mxu0 0
    %2409 = vmatpush1.bf16.msra.mxu0 %v2081
    %2410 = vmatprep.subr.bf16.mxu0 0
    %2411 = vmatpush1.bf16.msra.mxu0 %v2082
    %2412 = vmatprep.subr.bf16.mxu0 0
    %2413 = vmatpush1.bf16.msra.mxu0 %v2083
    %2414 = vmatprep.subr.bf16.mxu0 0
    %2415 = vmatpush1.bf16.msra.mxu0 %v2084
    %2416 = vmatprep.subr.bf16.mxu0 0
    %2417 = vmatpush1.bf16.msra.mxu0 %v2085
    %2418 = vmatprep.subr.bf16.mxu0 0
    %2419 = vmatpush1.bf16.msra.mxu0 %v2086
    %2420 = vmatprep.subr.bf16.mxu0 0
    %2421 = vmatpush1.bf16.msra.mxu0 %v2087
    %2422 = vmatprep.subr.bf16.mxu0 0
    %2423 = vmatpush1.bf16.msra.mxu0 %v2088
    %2424 = vmatprep.subr.bf16.mxu0 0
    %2425 = vmatpush1.bf16.msra.mxu0 %v2089
    %2426 = vmatprep.subr.bf16.mxu0 0
    %2427 = vmatpush1.bf16.msra.mxu0 %v2090
    %2428 = vmatprep.subr.bf16.mxu0 0
    %2429 = vmatpush1.bf16.msra.mxu0 %v2091
    %2430 = vmatprep.subr.bf16.mxu0 0
    %2431 = vmatpush1.bf16.msra.mxu0 %v2092
    %2432 = vmatprep.subr.bf16.mxu0 0
    %2433 = vmatpush1.bf16.msra.mxu0 %v2093
    %2434 = vmatprep.subr.bf16.mxu0 0
    %2435 = vmatpush1.bf16.msra.mxu0 %v2094
    %2436 = vmatprep.subr.bf16.mxu0 0
    %2437 = vmatpush1.bf16.msra.mxu0 %v2095
    %2438 = vmatprep.mubr.bf16.mxu0 %v1266
    %2439 = vmatmul.mubr.bf16.gmra.mrb[0].mxu0 %v1265
    %v2440 = vpop.f32.mrb[0].mxu0
    %v2441 = vadd.f32 %v2401, %v2440
    %v2442 = vpop.f32.mrb[0].mxu0
    %v2443 = vpop.f32.mrb[0].mxu0
    %v2444 = vpop.f32.mrb[0].mxu0
    %2445 = vdwg.mxu0
    %2446 = vmatprep.subr.bf16.mxu0 0
    %2447 = vmatpush1.bf16.msra.mxu0 %v2096
    %2448 = vmatprep.subr.bf16.mxu0 0
    %2449 = vmatpush1.bf16.msra.mxu0 %v2097
    %2450 = vmatprep.subr.bf16.mxu0 0
    %2451 = vmatpush1.bf16.msra.mxu0 %v2098
    %2452 = vmatprep.subr.bf16.mxu0 0
    %2453 = vmatpush1.bf16.msra.mxu0 %v2099
    %2454 = vmatprep.subr.bf16.mxu0 0
    %2455 = vmatpush1.bf16.msra.mxu0 %v2100
    %2456 = vmatprep.subr.bf16.mxu0 0
    %2457 = vmatpush1.bf16.msra.mxu0 %v2101
    %2458 = vmatprep.subr.bf16.mxu0 0
    %2459 = vmatpush1.bf16.msra.mxu0 %v2102
    %2460 = vmatprep.subr.bf16.mxu0 0
    %2461 = vmatpush1.bf16.msra.mxu0 %v2103
    %2462 = vmatprep.subr.bf16.mxu0 0
    %2463 = vmatpush1.bf16.msra.mxu0 %v2104
    %2464 = vmatprep.subr.bf16.mxu0 0
    %2465 = vmatpush1.bf16.msra.mxu0 %v2105
    %2466 = vmatprep.subr.bf16.mxu0 0
    %2467 = vmatpush1.bf16.msra.mxu0 %v2106
    %2468 = vmatprep.subr.bf16.mxu0 0
    %2469 = vmatpush1.bf16.msra.mxu0 %v2107
    %2470 = vmatprep.subr.bf16.mxu0 0
    %2471 = vmatpush1.bf16.msra.mxu0 %v2108
    %2472 = vmatprep.subr.bf16.mxu0 0
    %2473 = vmatpush1.bf16.msra.mxu0 %v2109
    %2474 = vmatprep.subr.bf16.mxu0 0
    %2475 = vmatpush1.bf16.msra.mxu0 %v2110
    %2476 = vmatprep.subr.bf16.mxu0 0
    %2477 = vmatpush1.bf16.msra.mxu0 %v2111
    %2478 = vmatprep.mubr.bf16.mxu0 %v1268
    %2479 = vmatmul.mubr.bf16.gmra.mrb[0].mxu0 %v1267
    %v2480 = vpop.f32.mrb[0].mxu0
    %v2481 = vadd.f32 %v2441, %v2480
    %v2482 = vpop.f32.mrb[0].mxu0
    %v2483 = vpop.f32.mrb[0].mxu0
    %v2484 = vpop.f32.mrb[0].mxu0
    %2485 = vdwg.mxu0
    %2486 = vmatprep.subr.bf16.mxu0 0
    %2487 = vmatpush1.bf16.msra.mxu0 %v2112
    %2488 = vmatprep.subr.bf16.mxu0 0
    %2489 = vmatpush1.bf16.msra.mxu0 %v2113
    %2490 = vmatprep.subr.bf16.mxu0 0
    %2491 = vmatpush1.bf16.msra.mxu0 %v2114
    %2492 = vmatprep.subr.bf16.mxu0 0
    %2493 = vmatpush1.bf16.msra.mxu0 %v2115
    %2494 = vmatprep.subr.bf16.mxu0 0
    %2495 = vmatpush1.bf16.msra.mxu0 %v2116
    %2496 = vmatprep.subr.bf16.mxu0 0
    %2497 = vmatpush1.bf16.msra.mxu0 %v2117
    %2498 = vmatprep.subr.bf16.mxu0 0
    %2499 = vmatpush1.bf16.msra.mxu0 %v2118
    %2500 = vmatprep.subr.bf16.mxu0 0
    %2501 = vmatpush1.bf16.msra.mxu0 %v2119
    %2502 = vmatprep.subr.bf16.mxu0 0
    %2503 = vmatpush1.bf16.msra.mxu0 %v2120
    %2504 = vmatprep.subr.bf16.mxu0 0
    %2505 = vmatpush1.bf16.msra.mxu0 %v2121
    %2506 = vmatprep.subr.bf16.mxu0 0
    %2507 = vmatpush1.bf16.msra.mxu0 %v2122
    %2508 = vmatprep.subr.bf16.mxu0 0
    %2509 = vmatpush1.bf16.msra.mxu0 %v2123
    %2510 = vmatprep.subr.bf16.mxu0 0
    %2511 = vmatpush1.bf16.msra.mxu0 %v2124
    %2512 = vmatprep.subr.bf16.mxu0 0
    %2513 = vmatpush1.bf16.msra.mxu0 %v2125
    %2514 = vmatprep.subr.bf16.mxu0 0
    %2515 = vmatpush1.bf16.msra.mxu0 %v2126
    %2516 = vmatprep.subr.bf16.mxu0 0
    %2517 = vmatpush1.bf16.msra.mxu0 %v2127
    %2518 = vmatprep.mubr.bf16.mxu0 %v1270
    %2519 = vmatmul.mubr.bf16.gmra.mrb[0].mxu0 %v1269
    %v2520 = vpop.f32.mrb[0].mxu0
    %v2521 = vadd.f32 %v2481, %v2520
    %v2522 = vpop.f32.mrb[0].mxu0
    %v2523 = vpop.f32.mrb[0].mxu0
    %v2524 = vpop.f32.mrb[0].mxu0
    %2525 = vdwg.mxu0
    %2526 = vmatprep.subr.bf16.mxu0 0
    %2527 = vmatpush1.bf16.msra.mxu0 %v2128
    %2528 = vmatprep.subr.bf16.mxu0 0
    %2529 = vmatpush1.bf16.msra.mxu0 %v2129
    %2530 = vmatprep.subr.bf16.mxu0 0
    %2531 = vmatpush1.bf16.msra.mxu0 %v2130
    %2532 = vmatprep.subr.bf16.mxu0 0
    %2533 = vmatpush1.bf16.msra.mxu0 %v2131
    %2534 = vmatprep.subr.bf16.mxu0 0
    %2535 = vmatpush1.bf16.msra.mxu0 %v2132
    %2536 = vmatprep.subr.bf16.mxu0 0
    %2537 = vmatpush1.bf16.msra.mxu0 %v2133
    %2538 = vmatprep.subr.bf16.mxu0 0
    %2539 = vmatpush1.bf16.msra.mxu0 %v2134
    %2540 = vmatprep.subr.bf16.mxu0 0
    %2541 = vmatpush1.bf16.msra.mxu0 %v2135
    %2542 = vmatprep.subr.bf16.mxu0 0
    %2543 = vmatpush1.bf16.msra.mxu0 %v2136
    %2544 = vmatprep.subr.bf16.mxu0 0
    %2545 = vmatpush1.bf16.msra.mxu0 %v2137
    %2546 = vmatprep.subr.bf16.mxu0 0
    %2547 = vmatpush1.bf16.msra.mxu0 %v2138
    %2548 = vmatprep.subr.bf16.mxu0 0
    %2549 = vmatpush1.bf16.msra.mxu0 %v2139
    %2550 = vmatprep.subr.bf16.mxu0 0
    %2551 = vmatpush1.bf16.msra.mxu0 %v2140
    %2552 = vmatprep.subr.bf16.mxu0 0
    %2553 = vmatpush1.bf16.msra.mxu0 %v2141
    %2554 = vmatprep.subr.bf16.mxu0 0
    %2555 = vmatpush1.bf16.msra.mxu0 %v2142
    %2556 = vmatprep.subr.bf16.mxu0 0
    %2557 = vmatpush1.bf16.msra.mxu0 %v2143
    %2558 = vmatprep.mubr.bf16.mxu0 %v1272
    %2559 = vmatmul.mubr.bf16.gmra.mrb[0].mxu0 %v1271
    %v2560 = vpop.f32.mrb[0].mxu0
    %v2561 = vadd.f32 %v2521, %v2560
    %v2562 = vpop.f32.mrb[0].mxu0
    %v2563 = vpop.f32.mrb[0].mxu0
    %v2564 = vpop.f32.mrb[0].mxu0
    %2565 = vdwg.mxu0
    %2566 = vmatprep.subr.bf16.mxu0 0
    %2567 = vmatpush1.bf16.msra.mxu0 %v2144
    %2568 = vmatprep.subr.bf16.mxu0 0
    %2569 = vmatpush1.bf16.msra.mxu0 %v2145
    %2570 = vmatprep.subr.bf16.mxu0 0
    %2571 = vmatpush1.bf16.msra.mxu0 %v2146
    %2572 = vmatprep.subr.bf16.mxu0 0
    %2573 = vmatpush1.bf16.msra.mxu0 %v2147
    %2574 = vmatprep.subr.bf16.mxu0 0
    %2575 = vmatpush1.bf16.msra.mxu0 %v2148
    %2576 = vmatprep.subr.bf16.mxu0 0
    %2577 = vmatpush1.bf16.msra.mxu0 %v2149
    %2578 = vmatprep.subr.bf16.mxu0 0
    %2579 = vmatpush1.bf16.msra.mxu0 %v2150
    %2580 = vmatprep.subr.bf16.mxu0 0
    %2581 = vmatpush1.bf16.msra.mxu0 %v2151
    %2582 = vmatprep.subr.bf16.mxu0 0
    %2583 = vmatpush1.bf16.msra.mxu0 %v2152
    %2584 = vmatprep.subr.bf16.mxu0 0
    %2585 = vmatpush1.bf16.msra.mxu0 %v2153
    %2586 = vmatprep.subr.bf16.mxu0 0
    %2587 = vmatpush1.bf16.msra.mxu0 %v2154
    %2588 = vmatprep.subr.bf16.mxu0 0
    %2589 = vmatpush1.bf16.msra.mxu0 %v2155
    %2590 = vmatprep.subr.bf16.mxu0 0
    %2591 = vmatpush1.bf16.msra.mxu0 %v2156
    %2592 = vmatprep.subr.bf16.mxu0 0
    %2593 = vmatpush1.bf16.msra.mxu0 0
    %2594 = vmatprep.subr.bf16.mxu0 0
    %2595 = vmatpush1.bf16.msra.mxu0 0
    %2596 = vmatprep.subr.bf16.mxu0 0
    %2597 = vmatpush1.bf16.msra.mxu0 0
    %2598 = vmatprep.mubr.bf16.mxu0 %v2284
    %2599 = vmatmul.mubr.bf16.gmra.mrb[0].mxu0 %v1273
    %v2600 = vpop.f32.mrb[0].mxu0
    %v2601 = vadd.f32 %v2561, %v2600
    %v2602 = vpop.f32.mrb[0].mxu0
    %v2603 = vpop.f32.mrb[0].mxu0
    %v2604 = vpop.f32.mrb[0].mxu0
    %2605 = vdwg.mxu0
    %v2606 = vpack.c.bf16 %v2601, %v2601
    %v2607 = vld [vmem:[%s7] sm:$0xf]
    %v2608 = vld [vmem:[%s7 + $0x4] sm:$0xf]
    %v2609 = vld [vmem:[%s7 + $0x8] sm:$0xf]
    %v2610 = vld [vmem:[%s7 + $0xc] sm:$0xf]
    %v2611 = vld [vmem:[%s7 + $0x10] sm:$0xf]
    %v2612 = vld [vmem:[%s7 + $0x14] sm:$0xf]
    %v2613 = vld [vmem:[%s7 + $0x18] sm:$0xf]
    %v2614 = vld [vmem:[%s7 + $0x1c] sm:$0xf]
    %v2615 = vld [vmem:[%s7 + $0x20] sm:$0xf]
    %v2616 = vld [vmem:[%s7 + $0x24] sm:$0xf]
    %v2617 = vld [vmem:[%s7 + $0x28] sm:$0xf]
    %v2618 = vld [vmem:[%s7 + $0x2c] sm:$0xf]
    %v2619 = vld [vmem:[%s7 + $0x30] sm:$0xf]
    %v2620 = vld [vmem:[%s7 + $0x34] sm:$0xf]
    %v2621 = vld [vmem:[%s7 + $0x38] sm:$0xf]
    %v2622 = vld [vmem:[%s8] sm:$0x1]
    %v2624 = vlaneseq
    %v2625 = vshrl.u32 %v2624, 7
    %v2626 = vsub.s32 0, %v2625
    %v2627 = vrot.slane %v2622, %v2626
    %v2644 = vunpack.c.l.b16 %v2607
    %v2645 = vunpack.c.l.b16 %v2608
    %v2646 = vunpack.c.l.b16 %v2609
    %v2647 = vunpack.c.l.b16 %v2610
    %v2648 = vunpack.c.l.b16 %v2611
    %v2649 = vunpack.c.l.b16 %v2612
    %v2650 = vunpack.c.l.b16 %v2613
    %v2651 = vunpack.c.l.b16 %v2614
    %v2652 = vunpack.c.l.b16 %v2615
    %v2653 = vunpack.c.l.b16 %v2616
    %v2654 = vunpack.c.l.b16 %v2617
    %v2655 = vunpack.c.l.b16 %v2618
    %v2656 = vunpack.c.l.b16 %v2619
    %v2657 = vunpack.c.l.b16 %v2620
    %v2658 = vunpack.c.l.b16 %v2621
    %v2659 = vpack.c.b16 %v2645, %v2644
    %v2660 = vpack.c.b16 %v2647, %v2646
    %v2661 = vpack.c.b16 %v2649, %v2648
    %v2662 = vpack.c.b16 %v2651, %v2650
    %v2663 = vpack.c.b16 %v2653, %v2652
    %v2664 = vpack.c.b16 %v2655, %v2654
    %v2665 = vpack.c.b16 %v2657, %v2656
    %v2666 = vpack.c.b16 %v2658, %v2658
    %vm2674 = vcmask 982016
    %v2676 = vsel %vm2674, %v2606, 0
    %vm2678 = vcmask 1043456
    %v2680 = vsel %vm2678, %v2666, 0
    %2682 = vmatprep.subr.bf16.mxu0 0
    %2683 = vmatpush1.bf16.msra.mxu0 %v2659
    %2684 = vmatprep.subr.bf16.mxu0 0
    %2685 = vmatpush1.bf16.msra.mxu0 %v2660
    %2686 = vmatprep.subr.bf16.mxu0 0
    %2687 = vmatpush1.bf16.msra.mxu0 %v2661
    %2688 = vmatprep.subr.bf16.mxu0 0
    %2689 = vmatpush1.bf16.msra.mxu0 %v2662
    %2690 = vmatprep.subr.bf16.mxu0 0
    %2691 = vmatpush1.bf16.msra.mxu0 %v2663
    %2692 = vmatprep.subr.bf16.mxu0 0
    %2693 = vmatpush1.bf16.msra.mxu0 %v2664
    %2694 = vmatprep.subr.bf16.mxu0 0
    %2695 = vmatpush1.bf16.msra.mxu0 %v2665
    %2696 = vmatprep.subr.bf16.mxu0 0
    %2697 = vmatpush1.bf16.msra.mxu0 %v2680
    %2698 = vmatprep.subr.bf16.mxu0 0
    %2699 = vmatpush1.bf16.msra.mxu0 0
    %2700 = vmatprep.subr.bf16.mxu0 0
    %2701 = vmatpush1.bf16.msra.mxu0 0
    %2702 = vmatprep.subr.bf16.mxu0 0
    %2703 = vmatpush1.bf16.msra.mxu0 0
    %2704 = vmatprep.subr.bf16.mxu0 0
    %2705 = vmatpush1.bf16.msra.mxu0 0
    %2706 = vmatprep.subr.bf16.mxu0 0
    %2707 = vmatpush1.bf16.msra.mxu0 0
    %2708 = vmatprep.subr.bf16.mxu0 0
    %2709 = vmatpush1.bf16.msra.mxu0 0
    %2710 = vmatprep.subr.bf16.mxu0 0
    %2711 = vmatpush1.bf16.msra.mxu0 0
    %2712 = vmatprep.subr.bf16.mxu0 0
    %2713 = vmatpush1.bf16.msra.mxu0 0
    %2714 = vmatprep.mubr.bf16.mxu0 0
    %2715 = vmatmul.mubr.bf16.gmra.mrb[0].mxu0 %v2676
    %v2716 = vpop.f32.mrb[0].mxu0
    %v2717 = vadd.f32 %v2627, %v2716
    %v2718 = vpop.f32.mrb[0].mxu0
    %v2719 = vpop.f32.mrb[0].mxu0
    %v2720 = vpop.f32.mrb[0].mxu0
    %2721 = vdwg.mxu0
    %v2722 = vpack.c.bf16 %v2717, %v2717
    %v2723 = vld [vmem:[%s9] sm:$0xf]
    %v2724 = vld [vmem:[%s9 + $0x4] sm:$0xf]
    %v2725 = vld [vmem:[%s9 + $0x8] sm:$0xf]
    %v2726 = vld [vmem:[%s9 + $0xc] sm:$0xf]
    %v2727 = vld [vmem:[%s9 + $0x10] sm:$0xf]
    %v2728 = vld [vmem:[%s9 + $0x14] sm:$0xf]
    %v2729 = vld [vmem:[%s9 + $0x18] sm:$0xf]
    %v2730 = vld [vmem:[%s9 + $0x1c] sm:$0xf]
    %v2731 = vld [vmem:[%s9 + $0x20] sm:$0xf]
    %v2732 = vld [vmem:[%s9 + $0x24] sm:$0xf]
    %v2733 = vld [vmem:[%s9 + $0x28] sm:$0x3]
    %v2734 = vld [vmem:[%s10] sm:$0x1]
    %v2736 = vlaneseq
    %v2737 = vshrl.u32 %v2736, 7
    %v2738 = vsub.s32 0, %v2737
    %v2739 = vrot.slane %v2734, %v2738
    %v2752 = vunpack.c.l.b16 %v2723
    %v2753 = vunpack.c.l.b16 %v2724
    %v2754 = vunpack.c.l.b16 %v2725
    %v2755 = vunpack.c.l.b16 %v2726
    %v2756 = vunpack.c.l.b16 %v2727
    %v2757 = vunpack.c.l.b16 %v2728
    %v2758 = vunpack.c.l.b16 %v2729
    %v2759 = vunpack.c.l.b16 %v2730
    %v2760 = vunpack.c.l.b16 %v2731
    %v2761 = vunpack.c.l.b16 %v2732
    %v2762 = vunpack.c.l.b16 %v2733
    %v2763 = vpack.c.b16 %v2753, %v2752
    %v2764 = vpack.c.b16 %v2755, %v2754
    %v2765 = vpack.c.b16 %v2757, %v2756
    %v2766 = vpack.c.b16 %v2759, %v2758
    %v2767 = vpack.c.b16 %v2761, %v2760
    %v2768 = vpack.c.b16 %v2762, %v2762
    %vm2774 = vcmask 687104
    %v2776 = vsel %vm2774, %v2722, 0
    %vm2778 = vcmask 1041408
    %v2780 = vsel %vm2778, %v2768, 0
    %2782 = vmatprep.subr.bf16.mxu0 0
    %2783 = vmatpush1.bf16.msra.mxu0 %v2763
    %2784 = vmatprep.subr.bf16.mxu0 0
    %2785 = vmatpush1.bf16.msra.mxu0 %v2764
    %2786 = vmatprep.subr.bf16.mxu0 0
    %2787 = vmatpush1.bf16.msra.mxu0 %v2765
    %2788 = vmatprep.subr.bf16.mxu0 0
    %2789 = vmatpush1.bf16.msra.mxu0 %v2766
    %2790 = vmatprep.subr.bf16.mxu0 0
    %2791 = vmatpush1.bf16.msra.mxu0 %v2767
    %2792 = vmatprep.subr.bf16.mxu0 0
    %2793 = vmatpush1.bf16.msra.mxu0 %v2780
    %2794 = vmatprep.subr.bf16.mxu0 0
    %2795 = vmatpush1.bf16.msra.mxu0 0
    %2796 = vmatprep.subr.bf16.mxu0 0
    %2797 = vmatpush1.bf16.msra.mxu0 0
    %2798 = vmatprep.subr.bf16.mxu0 0
    %2799 = vmatpush1.bf16.msra.mxu0 0
    %2800 = vmatprep.subr.bf16.mxu0 0
    %2801 = vmatpush1.bf16.msra.mxu0 0
    %2802 = vmatprep.subr.bf16.mxu0 0
    %2803 = vmatpush1.bf16.msra.mxu0 0
    %2804 = vmatprep.subr.bf16.mxu0 0
    %2805 = vmatpush1.bf16.msra.mxu0 0
    %2806 = vmatprep.subr.bf16.mxu0 0
    %2807 = vmatpush1.bf16.msra.mxu0 0
    %2808 = vmatprep.subr.bf16.mxu0 0
    %2809 = vmatpush1.bf16.msra.mxu0 0
    %2810 = vmatprep.subr.bf16.mxu0 0
    %2811 = vmatpush1.bf16.msra.mxu0 0
    %2812 = vmatprep.subr.bf16.mxu0 0
    %2813 = vmatpush1.bf16.msra.mxu0 0
    %2814 = vmatprep.mubr.bf16.mxu0 0
    %2815 = vmatmul.mubr.bf16.gmra.mrb[0].mxu0 %v2776
    %v2816 = vpop.f32.mrb[0].mxu0
    %v2817 = vadd.f32 %v2739, %v2816
    %v2818 = vpop.f32.mrb[0].mxu0
    %v2819 = vpop.f32.mrb[0].mxu0
    %v2820 = vpop.f32.mrb[0].mxu0
    %2821 = vdwg.mxu0
    %vm2822 = vcmask 74752
    %v2823 = vsel %vm2822, %v2817, -inf
    %2824 = vmax.xlane.f32.xlu0 %v2823
    %v2825 = vpop.xlane.xlu0 %2824
    %v2826 = vsub.f32 %v2817, %v2825
    %v2827 = vmul.f32 %v2826, 1.442695
    %v2828 = vpow.pop %v2827
    %v2829 = vsel %vm2822, %v2828, 0.0
    %2830 = vadd.xlane.f32.xlu0 %v2829
    %v2831 = vpop.xlane.xlu0 %2830
    %v2832 = vlog2.pop %v2831
    %v2833 = vmul.f32 %v2832, 0.6931472
    %v2834 = vsub.f32 %v2826, %v2833
    %2835 = vst.msk [vmem:[#allocation2] sm:$0x3] %vm2822, %v2834
    // Predicated region
    $region46: #{net1_forward.3} parent=1 // pred_check
      _
    $region47: #{net1_forward.3} parent=1 // pred_check_branch
      %2837 = sbr.rel (0) target = $region49
    $region48: #{net1_forward.3} parent=1 // pred_region
      %s2839 = ssub.s32 32, 32
      %2840 = vsyncadd [#allocation3], %s2839
      %s2842 = sshll.u32 [#allocation2], 4
      %s2843 = int_to_ptr.vmem [resolvable:$true] %s2842
      %2845 = dma.vmem_to_hbm [thread:$0]  %s2843, 32, %s11, [#allocation3]
    $region49: #{net1_forward.3} parent=1 // pred_fallthru
      _
    // Predicated region
    $region50: #{net1_forward.3} parent=1 // pred_check
      _
    $region51: #{net1_forward.3} parent=1 // pred_check_branch
      %2847 = sbr.rel (0) target = $region53
    $region52: #{net1_forward.3} parent=1 // pred_region
      %2848 = dma.done [#allocation3], 32
    $region53: #{net1_forward.3} parent=1 // pred_fallthru
      _
    %2849 = vsyncpa [#allocation3], 1

</llo_original>
